<compile_context>
chip_gen: v7x
topology: tpu7x:2x2x1
jax: 0.10.0
libtpu: 0.0.40
codegen_flags: <defaults>
</compile_context>

<pallas_src>
import functools

import jax
import jax.numpy as jnp
from jax.experimental import pallas as pl
from jax.experimental.pallas import tpu as pltpu

TM_MAX = 512   # max patch rows per tile (sized with v7x's 64 MiB VMEM in mind)
LANES = 128    # pad output channels to a multiple of the 128-lane axis


def _round_up(x, m):
    return (x + m - 1) // m * m


# ----------------------------------------------------------------------------
# Pallas kernels
# ----------------------------------------------------------------------------
def _conv_act_kernel(p_ref, w_ref, b_ref, o_ref, *, act):
    """o = act(patches @ W + b); bf16 MXU matmul, f32 epilogue."""
    z = jnp.dot(p_ref[...], w_ref[...], preferred_element_type=jnp.float32)
    z = z + b_ref[...]
    if act == "lrelu":
        z = jnp.where(z >= 0, z, 0.2 * z)
    o_ref[...] = z.astype(o_ref.dtype)


def _conv_bias_stats_kernel(p_ref, w_ref, b_ref, z_ref, s_ref, *, tm, m_real):
    """BN pass 1: z = patches @ W + b (tiled output) plus per-channel sum and
    sum-of-squares accumulated across the M grid axis (padded rows masked out)."""
    i = pl.program_id(0)
    z = jnp.dot(p_ref[...], w_ref[...], preferred_element_type=jnp.float32)
    z = z + b_ref[...]
    z_ref[...] = z

    row = jax.lax.broadcasted_iota(jnp.int32, z.shape, 0) + i * tm
    zm = jnp.where(row < m_real, z, 0.0)
    s1 = jnp.sum(zm, axis=0, keepdims=True)          # (1, OCp) per-channel sum
    s2 = jnp.sum(zm * zm, axis=0, keepdims=True)     # (1, OCp) per-channel sum sq
    srow = jax.lax.broadcasted_iota(jnp.int32, s_ref.shape, 0)
    upd = jnp.where(srow == 0, s1, 0.0) + jnp.where(srow == 1, s2, 0.0)

    @pl.when(i == 0)
    def _():
        s_ref[...] = jnp.zeros_like(s_ref)

    s_ref[...] += upd


def _scale_shift_lrelu_kernel(z_ref, sc_ref, sh_ref, o_ref):
    """BN pass 2: o = leaky_relu(z * scale + shift, 0.2)."""
    y = z_ref[...] * sc_ref[...] + sh_ref[...]
    o_ref[...] = jnp.where(y >= 0, y, 0.2 * y).astype(o_ref.dtype)


def _final_conv_mean_kernel(p_ref, w_ref, b_ref, o_ref, *, tms, ms_real, use_sigmoid):
    """Final OC=1 conv fused with sigmoid and per-sample mean.
    Accumulates mean(sigmoid(conv(x_n)))  into o_ref[n, 0] across the m grid axis."""
    n = pl.program_id(0)
    m = pl.program_id(1)

    @pl.when(jnp.logical_and(n == 0, m == 0))
    def _():
        o_ref[...] = jnp.zeros_like(o_ref)

    z = jnp.dot(p_ref[0], w_ref[...], preferred_element_type=jnp.float32)
    z = z + b_ref[...]
    if use_sigmoid:
        z = jax.nn.sigmoid(z)
    lane = jax.lax.broadcasted_iota(jnp.int32, z.shape, 1)
    row = jax.lax.broadcasted_iota(jnp.int32, z.shape, 0) + m * tms
    mask = jnp.logical_and(lane == 0, row < ms_real)   # real channel & real rows only
    part = jnp.sum(jnp.where(mask, z, 0.0)) * (1.0 / ms_real)

    orow = jax.lax.broadcasted_iota(jnp.int32, o_ref.shape, 0)
    ocol = jax.lax.broadcasted_iota(jnp.int32, o_ref.shape, 1)
    o_ref[...] += jnp.where(jnp.logical_and(orow == n, ocol == 0), part, 0.0)


# ----------------------------------------------------------------------------
# Plain-JAX glue: patch extraction, weight packing, tiling helpers
# ----------------------------------------------------------------------------
def _im2col_nhwc(x, k, stride, pad):
    """x: (N, H, W, C) -> patches (N*OH*OW, k*k*C), row layout (kh, kw, c)."""
    N, H, W, C = x.shape
    xp = jnp.pad(x, ((0, 0), (pad, pad), (pad, pad), (0, 0)))
    OH = (H + 2 * pad - k) // stride + 1
    OW = (W + 2 * pad - k) // stride + 1
    ri = jnp.arange(OH)[:, None] * stride + jnp.arange(k)[None, :]
    ci = jnp.arange(OW)[:, None] * stride + jnp.arange(k)[None, :]
    p = xp[:, ri]                      # (N, OH, kh, Wp, C)
    p = p[:, :, :, ci]                 # (N, OH, kh, OW, kw, C)
    p = p.transpose(0, 1, 3, 2, 4, 5)  # (N, OH, OW, kh, kw, C)
    return p.reshape(N * OH * OW, k * k * C), OH, OW


def _pack_weight(w, b, ic_pad, oc_pad):
    """PyTorch (OC, IC, KH, KW) weight -> (KH*KW*ic_pad, oc_pad) bf16 matrix that
    matches the (kh, kw, c) patch layout; bias -> (1, oc_pad) f32. Zero padding."""
    OC, IC, KH, KW = w.shape
    wp = jnp.pad(w, ((0, oc_pad - OC), (0, ic_pad - IC), (0, 0), (0, 0)))
    wm = jnp.transpose(wp, (2, 3, 1, 0)).reshape(KH * KW * ic_pad, oc_pad)
    bm = jnp.pad(b, (0, oc_pad - OC)).reshape(1, oc_pad)
    return wm.astype(jnp.bfloat16), bm.astype(jnp.float32)


def _tile_rows(m):
    tm = min(TM_MAX, _round_up(m, 8))
    return tm, _round_up(m, tm)


def _pad_rows(a, m_pad):
    return a if a.shape[0] == m_pad else jnp.pad(a, ((0, m_pad - a.shape[0]), (0, 0)))


# ----------------------------------------------------------------------------
# Layer wrappers
# ----------------------------------------------------------------------------
def _conv_act_layer(x, w, b, stride, pad, act):
    """NHWC in (channels possibly zero-padded) -> NHWC out, OC padded to 128."""
    N, _, _, C = x.shape
    oc_pad = _round_up(w.shape[0], LANES)
    patches, OH, OW = _im2col_nhwc(x, w.shape[2], stride, pad)
    M = patches.shape[0]
    TM, Mp = _tile_rows(M)
    patches = _pad_rows(patches, Mp).astype(jnp.bfloat16)
    wm, bm = _pack_weight(w, b, C, oc_pad)
    K = wm.shape[0]

    out = pl.pallas_call(
        functools.partial(_conv_act_kernel, act=act),
        out_shape=jax.ShapeDtypeStruct((Mp, oc_pad), jnp.bfloat16),
        grid=(Mp // TM,),
        in_specs=[
            pl.BlockSpec((TM, K), lambda i: (i, 0)),        # patch tiles (pipelined)
            pl.BlockSpec((K, oc_pad), lambda i: (0, 0)),    # weights resident
            pl.BlockSpec((1, oc_pad), lambda i: (0, 0)),    # bias resident
        ],
        out_specs=pl.BlockSpec((TM, oc_pad), lambda i: (i, 0)),
        compiler_params=pltpu.CompilerParams(dimension_semantics=("parallel",)),
    )(patches, wm, bm)
    return out[:M].reshape(N, OH, OW, oc_pad)


def _conv_bn_lrelu_layer(x, w, b, gamma, beta, stride, pad, eps=1e-5):
    N, _, _, C = x.shape
    OC = w.shape[0]
    oc_pad = _round_up(OC, LANES)
    patches, OH, OW = _im2col_nhwc(x, w.shape[2], stride, pad)
    M = patches.shape[0]
    TM, Mp = _tile_rows(M)
    patches = _pad_rows(patches, Mp).astype(jnp.bfloat16)
    wm, bm = _pack_weight(w, b, C, oc_pad)
    K = wm.shape[0]

    # Pass 1: tiled conv + bias, accumulating per-channel sum / sum-of-squares.
    z, stats = pl.pallas_call(
        functools.partial(_conv_bias_stats_kernel, tm=TM, m_real=M),
        out_shape=(jax.ShapeDtypeStruct((Mp, oc_pad), jnp.float32),
                   jax.ShapeDtypeStruct((8, oc_pad), jnp.float32)),
        grid=(Mp // TM,),
        in_specs=[
            pl.BlockSpec((TM, K), lambda i: (i, 0)),
            pl.BlockSpec((K, oc_pad), lambda i: (0, 0)),
            pl.BlockSpec((1, oc_pad), lambda i: (0, 0)),
        ],
        out_specs=(pl.BlockSpec((TM, oc_pad), lambda i: (i, 0)),
                   pl.BlockSpec((8, oc_pad), lambda i: (0, 0))),  # resident accumulator
        compiler_params=pltpu.CompilerParams(dimension_semantics=("arbitrary",)),
    )(patches, wm, bm)

    # Tiny per-channel math (training-mode batch stats, biased variance, eps=1e-5).
    mean = stats[0] / M
    var = jnp.maximum(stats[1] / M - mean * mean, 0.0)
    g = jnp.pad(gamma, (0, oc_pad - OC))
    be = jnp.pad(beta, (0, oc_pad - OC))
    scale = (g * jax.lax.rsqrt(var + eps)).reshape(1, oc_pad).astype(jnp.float32)
    shift = (be - mean * scale[0]).reshape(1, oc_pad).astype(jnp.float32)

    # Pass 2: tiled normalize + LeakyReLU(0.2).
    out = pl.pallas_call(
        _scale_shift_lrelu_kernel,
        out_shape=jax.ShapeDtypeStruct((Mp, oc_pad), jnp.bfloat16),
        grid=(Mp // TM,),
        in_specs=[
            pl.BlockSpec((TM, oc_pad), lambda i: (i, 0)),
            pl.BlockSpec((1, oc_pad), lambda i: (0, 0)),
            pl.BlockSpec((1, oc_pad), lambda i: (0, 0)),
        ],
        out_specs=pl.BlockSpec((TM, oc_pad), lambda i: (i, 0)),
        compiler_params=pltpu.CompilerParams(dimension_semantics=("parallel",)),
    )(z, scale, shift)
    return out[:M].reshape(N, OH, OW, oc_pad)


def _final_conv_sigmoid_mean(x, w, b, use_sigmoid):
    """Final Conv(k=4, s=1, p=2, OC=1) fused with sigmoid and per-sample mean."""
    N, _, _, C = x.shape
    oc_pad = LANES
    patches, OH, OW = _im2col_nhwc(x, w.shape[2], stride=1, pad=2)
    Ms = OH * OW
    K = patches.shape[1]
    TMS, Msp = _tile_rows(Ms)
    patches = patches.reshape(N, Ms, K)
    patches = jnp.pad(patches, ((0, 0), (0, Msp - Ms), (0, 0))).astype(jnp.bfloat16)
    wm, bm = _pack_weight(w, b, C, oc_pad)

    sums = pl.pallas_call(
        functools.partial(_final_conv_mean_kernel, tms=TMS, ms_real=Ms,
                          use_sigmoid=use_sigmoid),
        out_shape=jax.ShapeDtypeStruct((N, LANES), jnp.float32),
        grid=(N, Msp // TMS),
        in_specs=[
            pl.BlockSpec((1, TMS, K), lambda n, m: (n, m, 0)),
            pl.BlockSpec((K, oc_pad), lambda n, m: (0, 0)),
            pl.BlockSpec((1, oc_pad), lambda n, m: (0, 0)),
        ],
        out_specs=pl.BlockSpec((N, LANES), lambda n, m: (0, 0)),  # resident accumulator
        compiler_params=pltpu.CompilerParams(
            dimension_semantics=("arbitrary", "arbitrary")),
    )(patches, wm, bm)
    return sums[:, 0]


# ----------------------------------------------------------------------------
# NLayerDiscriminator forward
# ----------------------------------------------------------------------------
def init_params(key, input_nc, ndf, n_layers):
    params = {}
    chans = [(input_nc, ndf)]
    nf_mult = 1
    for n in range(1, n_layers + 1):
        nf_mult_prev = nf_mult
        nf_mult = min(2 ** n, 8)
        chans.append((ndf * nf_mult_prev, ndf * nf_mult))
    chans.append((ndf * nf_mult, 1))           # final conv -> 1 channel

    keys = jax.random.split(key, len(chans))
    for i, ((ic, oc), k) in enumerate(zip(chans, keys)):
        params[f"w{i}"] = 0.02 * jax.random.normal(k, (oc, ic, 4, 4), jnp.float32)
        params[f"b{i}"] = jnp.zeros((oc,), jnp.float32)
        if 1 <= i <= n_layers:                 # batch-normed layers
            params[f"g{i}"] = jnp.ones((oc,), jnp.float32)
            params[f"beta{i}"] = jnp.zeros((oc,), jnp.float32)
    return params


def n_layer_discriminator(x_nchw, params, n_layers=3, use_sigmoid=True):
    # NCHW -> NHWC once at the model boundary; activations stay NHWC bf16 with
    # channels zero-padded to 128 lanes between layers (zeros stay exactly zero
    # through conv / BN / LeakyReLU, so real-channel values are unchanged).
    x = jnp.transpose(x_nchw, (0, 2, 3, 1)).astype(jnp.bfloat16)
    # layer 0: Conv(s=2, p=1) + LeakyReLU(0.2), no norm
    x = _conv_act_layer(x, params["w0"], params["b0"], stride=2, pad=1, act="lrelu")
    # layers 1..n_layers: Conv + BatchNorm(batch stats) + LeakyReLU(0.2)
    for n in range(1, n_layers + 1):
        stride = 1 if n == n_layers else 2
        x = _conv_bn_lrelu_layer(x, params[f"w{n}"], params[f"b{n}"],
                                 params[f"g{n}"], params[f"beta{n}"],
                                 stride=stride, pad=1)
    # final: Conv(k=4, s=1, p=2) -> 1 channel, sigmoid, out.view(N,-1).mean(1) fused
    last = n_layers + 1
    return _final_conv_sigmoid_mean(x, params[f"w{last}"], params[f"b{last}"],
                                    use_sigmoid)


# ----------------------------------------------------------------------------
if __name__ == "__main__":
    key = jax.random.PRNGKey(0)
    k_x, k_p = jax.random.split(key)

    # Small but structurally faithful config: input_nc=4, ndf=8, n_layers=3.
    INPUT_NC, NDF, N_LAYERS = 4, 8, 3
    x = jax.random.normal(k_x, (2, INPUT_NC, 16, 16), jnp.float32)  # NCHW like PyTorch
    params = init_params(k_p, INPUT_NC, NDF, N_LAYERS)

    fwd = jax.jit(functools.partial(n_layer_discriminator,
                                    n_layers=N_LAYERS, use_sigmoid=True))
    out = jax.block_until_ready(fwd(x, params))
    assert out.shape == (2,), out.shape
    assert bool(jnp.all(jnp.isfinite(out)))
    print("KERNEL_OK")
</pallas_src>

<mosaic_0001>
module attributes {stable_mosaic.version = 11 : i64} {
  func.func @_conv_act_kernel(%arg0: i32, %arg1: memref<128x64xbf16, #tpu.memory_space<vmem>>, %arg2: memref<64x128xbf16, #tpu.memory_space<vmem>>, %arg3: memref<1x128xf32, #tpu.memory_space<vmem>>, %arg4: memref<128x128xbf16, #tpu.memory_space<vmem>>) attributes {dimension_semantics = [#tpu.dimension_semantics<parallel>], iteration_bounds = array<i64: 1>, scalar_prefetch = 0 : i64, scratch_operands = 0 : i64, tpu.core_type = #tpu.core_type<tc>, window_params = [{transform_indices = @transform_0, window_bounds = array<i64: 128, 64>}, {pipeline_mode = #tpu.pipeline_mode<synchronous>, transform_indices = @transform_1, window_bounds = array<i64: 64, 128>}, {pipeline_mode = #tpu.pipeline_mode<synchronous>, transform_indices = @transform_2, window_bounds = array<i64: 1, 128>}, {transform_indices = @transform_3, window_bounds = array<i64: 128, 128>}]} {
    %c0 = arith.constant 0 : index
    %c0_0 = arith.constant 0 : index
    %0 = vector.load %arg1[%c0, %c0_0] : memref<128x64xbf16, #tpu.memory_space<vmem>>, vector<128x64xbf16>
    %c0_1 = arith.constant 0 : index
    %c0_2 = arith.constant 0 : index
    %1 = vector.load %arg2[%c0_1, %c0_2] : memref<64x128xbf16, #tpu.memory_space<vmem>>, vector<64x128xbf16>
    %cst = arith.constant dense<0.000000e+00> : vector<128x128xf32>
    %2 = tpu.matmul %0, %1, %cst {dimension_numbers = #tpu.dot_dimension_numbers<[1], [0], [0], [1], [0, 0, 1, 1], [], []>} : vector<128x64xbf16>, vector<64x128xbf16>, vector<128x128xf32> -> vector<128x128xf32>
    %c0_3 = arith.constant 0 : index
    %c0_4 = arith.constant 0 : index
    %3 = vector.load %arg3[%c0_3, %c0_4] : memref<1x128xf32, #tpu.memory_space<vmem>>, vector<1x128xf32>
    %4 = vector.broadcast %3 : vector<1x128xf32> to vector<128x128xf32>
    %5 = arith.addf %2, %4 : vector<128x128xf32>
    %cst_5 = arith.constant 0.000000e+00 : f32
    %6 = vector.broadcast %cst_5 : f32 to vector<128x128xf32>
    %7 = arith.cmpf oge, %5, %6 : vector<128x128xf32>
    %cst_6 = arith.constant 2.000000e-01 : f32
    %8 = vector.broadcast %cst_6 : f32 to vector<128x128xf32>
    %9 = arith.mulf %8, %5 : vector<128x128xf32>
    %10 = arith.select %7, %5, %9 : vector<128x128xi1>, vector<128x128xf32>
    %11 = arith.truncf %10 : vector<128x128xf32> to vector<128x128xbf16>
    %c0_7 = arith.constant 0 : index
    %c0_8 = arith.constant 0 : index
    %12 = vector.load %arg4[%c0_7, %c0_8] : memref<128x128xbf16, #tpu.memory_space<vmem>>, vector<128x128xbf16>
    tpu.vector_store %arg4[%c0_7, %c0_8], %11 {strides = array<i32>} : memref<128x128xbf16, #tpu.memory_space<vmem>>, vector<128x128xbf16>,
    return
  }
  func.func @transform_0(%arg0: i32) -> (i32, i32) {
    %c0_i32 = arith.constant 0 : i32
    %c0_i32_0 = arith.constant 0 : i32
    return %arg0, %c0_i32 : i32, i32
  }
  func.func @transform_1(%arg0: i32) -> (i32, i32) {
    %c0_i32 = arith.constant 0 : i32
    %c0_i32_0 = arith.constant 0 : i32
    %c0_i32_1 = arith.constant 0 : i32
    return %c0_i32, %c0_i32_0 : i32, i32
  }
  func.func @transform_2(%arg0: i32) -> (i32, i32) {
    %c0_i32 = arith.constant 0 : i32
    %c0_i32_0 = arith.constant 0 : i32
    %c0_i32_1 = arith.constant 0 : i32
    return %c0_i32, %c0_i32_0 : i32, i32
  }
  func.func @transform_3(%arg0: i32) -> (i32, i32) {
    %c0_i32 = arith.constant 0 : i32
    %c0_i32_0 = arith.constant 0 : i32
    return %arg0, %c0_i32 : i32, i32
  }
}

module attributes {stable_mosaic.version = 11 : i64} {
  func.func @_conv_bias_stats_kernel(%arg0: i32, %arg1: memref<32x2048xbf16, #tpu.memory_space<vmem>>, %arg2: memref<2048x128xbf16, #tpu.memory_space<vmem>>, %arg3: memref<1x128xf32, #tpu.memory_space<vmem>>, %arg4: memref<32x128xf32, #tpu.memory_space<vmem>>, %arg5: memref<8x128xf32, #tpu.memory_space<vmem>>) attributes {dimension_semantics = [#tpu.dimension_semantics<arbitrary>], iteration_bounds = array<i64: 1>, scalar_prefetch = 0 : i64, scratch_operands = 0 : i64, tpu.core_type = #tpu.core_type<tc>, window_params = [{transform_indices = @transform_0, window_bounds = array<i64: 32, 2048>}, {pipeline_mode = #tpu.pipeline_mode<synchronous>, transform_indices = @transform_1, window_bounds = array<i64: 2048, 128>}, {pipeline_mode = #tpu.pipeline_mode<synchronous>, transform_indices = @transform_2, window_bounds = array<i64: 1, 128>}, {transform_indices = @transform_3, window_bounds = array<i64: 32, 128>}, {pipeline_mode = #tpu.pipeline_mode<synchronous>, transform_indices = @transform_4, window_bounds = array<i64: 8, 128>}]} {
    %c0 = arith.constant 0 : index
    %c0_0 = arith.constant 0 : index
    %0 = vector.load %arg1[%c0, %c0_0] : memref<32x2048xbf16, #tpu.memory_space<vmem>>, vector<32x2048xbf16>
    %c0_1 = arith.constant 0 : index
    %c0_2 = arith.constant 0 : index
    %1 = vector.load %arg2[%c0_1, %c0_2] : memref<2048x128xbf16, #tpu.memory_space<vmem>>, vector<2048x128xbf16>
    %cst = arith.constant dense<0.000000e+00> : vector<32x128xf32>
    %2 = tpu.matmul %0, %1, %cst {dimension_numbers = #tpu.dot_dimension_numbers<[1], [0], [0], [1], [0, 0, 1, 1], [], []>} : vector<32x2048xbf16>, vector<2048x128xbf16>, vector<32x128xf32> -> vector<32x128xf32>
    %c0_3 = arith.constant 0 : index
    %c0_4 = arith.constant 0 : index
    %3 = vector.load %arg3[%c0_3, %c0_4] : memref<1x128xf32, #tpu.memory_space<vmem>>, vector<1x128xf32>
    %4 = vector.broadcast %3 : vector<1x128xf32> to vector<32x128xf32>
    %5 = arith.addf %2, %4 : vector<32x128xf32>
    %c0_5 = arith.constant 0 : index
    %c0_6 = arith.constant 0 : index
    %6 = vector.load %arg4[%c0_5, %c0_6] : memref<32x128xf32, #tpu.memory_space<vmem>>, vector<32x128xf32>
    tpu.vector_store %arg4[%c0_5, %c0_6], %5 {strides = array<i32>} : memref<32x128xf32, #tpu.memory_space<vmem>>, vector<32x128xf32>,
    %7 = tpu.iota {dimensions = array<i32: 0>} : vector<32x128xi32>
    %c32_i32 = arith.constant 32 : i32
    %8 = arith.muli %arg0, %c32_i32 : i32
    %9 = vector.broadcast %8 : i32 to vector<32x128xi32>
    %10 = arith.addi %7, %9 : vector<32x128xi32>
    %c32_i32_7 = arith.constant 32 : i32
    %11 = vector.broadcast %c32_i32_7 : i32 to vector<32x128xi32>
    %12 = arith.cmpi slt, %10, %11 : vector<32x128xi32>
    %cst_8 = arith.constant 0.000000e+00 : f32
    %13 = vector.broadcast %cst_8 : f32 to vector<32x128xf32>
    %14 = arith.select %12, %5, %13 : vector<32x128xi1>, vector<32x128xf32>
    %cst_9 = arith.constant dense<0.000000e+00> : vector<128xf32>
    %15 = vector.multi_reduction <add>, %14, %cst_9 [0] : vector<32x128xf32> to vector<128xf32>
    %16 = vector.shape_cast %15 : vector<128xf32> to vector<1x128xf32>
    %17 = arith.mulf %14, %14 : vector<32x128xf32>
    %cst_10 = arith.constant dense<0.000000e+00> : vector<128xf32>
    %18 = vector.multi_reduction <add>, %17, %cst_10 [0] : vector<32x128xf32> to vector<128xf32>
    %19 = vector.shape_cast %18 : vector<128xf32> to vector<1x128xf32>
    %20 = tpu.iota {dimensions = array<i32: 0>} : vector<8x128xi32>
    %c0_i32 = arith.constant 0 : i32
    %21 = vector.broadcast %c0_i32 : i32 to vector<8x128xi32>
    %22 = arith.cmpi eq, %20, %21 : vector<8x128xi32>
    %cst_11 = arith.constant 0.000000e+00 : f32
    %23 = vector.shape_cast %16 : vector<1x128xf32> to vector<1x128xf32>
    %24 = vector.broadcast %23 : vector<1x128xf32> to vector<8x128xf32>
    %25 = vector.broadcast %cst_11 : f32 to vector<8x128xf32>
    %26 = arith.select %22, %24, %25 : vector<8x128xi1>, vector<8x128xf32>
    %c1_i32 = arith.constant 1 : i32
    %27 = vector.broadcast %c1_i32 : i32 to vector<8x128xi32>
    %28 = arith.cmpi eq, %20, %27 : vector<8x128xi32>
    %cst_12 = arith.constant 0.000000e+00 : f32
    %29 = vector.shape_cast %19 : vector<1x128xf32> to vector<1x128xf32>
    %30 = vector.broadcast %29 : vector<1x128xf32> to vector<8x128xf32>
    %31 = vector.broadcast %cst_12 : f32 to vector<8x128xf32>
    %32 = arith.select %28, %30, %31 : vector<8x128xi1>, vector<8x128xf32>
    %33 = arith.addf %26, %32 : vector<8x128xf32>
    %c0_i32_13 = arith.constant 0 : i32
    %34 = arith.cmpi eq, %arg0, %c0_i32_13 : i32
    %35 = arith.extui %34 : i1 to i32
    %c0_i32_14 = arith.constant 0 : i32
    %36 = arith.cmpi ne, %35, %c0_i32_14 : i32
    scf.if %36 {
      %cst_19 = arith.constant 0.000000e+00 : f32
      %40 = vector.broadcast %cst_19 : f32 to vector<8x128xf32>
      %c0_20 = arith.constant 0 : index
      %c0_21 = arith.constant 0 : index
      %41 = vector.load %arg5[%c0_20, %c0_21] : memref<8x128xf32, #tpu.memory_space<vmem>>, vector<8x128xf32>
      tpu.vector_store %arg5[%c0_20, %c0_21], %40 {strides = array<i32>} : memref<8x128xf32, #tpu.memory_space<vmem>>, vector<8x128xf32>,
    } else {
    }
    %c0_15 = arith.constant 0 : index
    %c0_16 = arith.constant 0 : index
    %37 = vector.load %arg5[%c0_15, %c0_16] : memref<8x128xf32, #tpu.memory_space<vmem>>, vector<8x128xf32>
    %38 = arith.addf %37, %33 : vector<8x128xf32>
    %c0_17 = arith.constant 0 : index
    %c0_18 = arith.constant 0 : index
    %39 = vector.load %arg5[%c0_17, %c0_18] : memref<8x128xf32, #tpu.memory_space<vmem>>, vector<8x128xf32>
    tpu.vector_store %arg5[%c0_17, %c0_18], %38 {strides = array<i32>} : memref<8x128xf32, #tpu.memory_space<vmem>>, vector<8x128xf32>,
    return
  }
  func.func @transform_0(%arg0: i32) -> (i32, i32) {
    %c0_i32 = arith.constant 0 : i32
    %c0_i32_0 = arith.constant 0 : i32
    return %arg0, %c0_i32 : i32, i32
  }
  func.func @transform_1(%arg0: i32) -> (i32, i32) {
    %c0_i32 = arith.constant 0 : i32
    %c0_i32_0 = arith.constant 0 : i32
    %c0_i32_1 = arith.constant 0 : i32
    return %c0_i32, %c0_i32_0 : i32, i32
  }
  func.func @transform_2(%arg0: i32) -> (i32, i32) {
    %c0_i32 = arith.constant 0 : i32
    %c0_i32_0 = arith.constant 0 : i32
    %c0_i32_1 = arith.constant 0 : i32
    return %c0_i32, %c0_i32_0 : i32, i32
  }
  func.func @transform_3(%arg0: i32) -> (i32, i32) {
    %c0_i32 = arith.constant 0 : i32
    %c0_i32_0 = arith.constant 0 : i32
    return %arg0, %c0_i32 : i32, i32
  }
  func.func @transform_4(%arg0: i32) -> (i32, i32) {
    %c0_i32 = arith.constant 0 : i32
    %c0_i32_0 = arith.constant 0 : i32
    %c0_i32_1 = arith.constant 0 : i32
    return %c0_i32, %c0_i32_0 : i32, i32
  }
}

module attributes {stable_mosaic.version = 11 : i64} {
  func.func @_scale_shift_lrelu_kernel(%arg0: i32, %arg1: memref<32x128xf32, #tpu.memory_space<vmem>>, %arg2: memref<1x128xf32, #tpu.memory_space<vmem>>, %arg3: memref<1x128xf32, #tpu.memory_space<vmem>>, %arg4: memref<32x128xbf16, #tpu.memory_space<vmem>>) attributes {dimension_semantics = [#tpu.dimension_semantics<parallel>], iteration_bounds = array<i64: 1>, scalar_prefetch = 0 : i64, scratch_operands = 0 : i64, tpu.core_type = #tpu.core_type<tc>, window_params = [{transform_indices = @transform_0, window_bounds = array<i64: 32, 128>}, {pipeline_mode = #tpu.pipeline_mode<synchronous>, transform_indices = @transform_1, window_bounds = array<i64: 1, 128>}, {pipeline_mode = #tpu.pipeline_mode<synchronous>, transform_indices = @transform_2, window_bounds = array<i64: 1, 128>}, {transform_indices = @transform_3, window_bounds = array<i64: 32, 128>}]} {
    %c0 = arith.constant 0 : index
    %c0_0 = arith.constant 0 : index
    %0 = vector.load %arg1[%c0, %c0_0] : memref<32x128xf32, #tpu.memory_space<vmem>>, vector<32x128xf32>
    %c0_1 = arith.constant 0 : index
    %c0_2 = arith.constant 0 : index
    %1 = vector.load %arg2[%c0_1, %c0_2] : memref<1x128xf32, #tpu.memory_space<vmem>>, vector<1x128xf32>
    %2 = vector.broadcast %1 : vector<1x128xf32> to vector<32x128xf32>
    %3 = arith.mulf %0, %2 : vector<32x128xf32>
    %c0_3 = arith.constant 0 : index
    %c0_4 = arith.constant 0 : index
    %4 = vector.load %arg3[%c0_3, %c0_4] : memref<1x128xf32, #tpu.memory_space<vmem>>, vector<1x128xf32>
    %5 = vector.broadcast %4 : vector<1x128xf32> to vector<32x128xf32>
    %6 = arith.addf %3, %5 : vector<32x128xf32>
    %cst = arith.constant 0.000000e+00 : f32
    %7 = vector.broadcast %cst : f32 to vector<32x128xf32>
    %8 = arith.cmpf oge, %6, %7 : vector<32x128xf32>
    %cst_5 = arith.constant 2.000000e-01 : f32
    %9 = vector.broadcast %cst_5 : f32 to vector<32x128xf32>
    %10 = arith.mulf %9, %6 : vector<32x128xf32>
    %11 = arith.select %8, %6, %10 : vector<32x128xi1>, vector<32x128xf32>
    %12 = arith.truncf %11 : vector<32x128xf32> to vector<32x128xbf16>
    %c0_6 = arith.constant 0 : index
    %c0_7 = arith.constant 0 : index
    %13 = vector.load %arg4[%c0_6, %c0_7] : memref<32x128xbf16, #tpu.memory_space<vmem>>, vector<32x128xbf16>
    tpu.vector_store %arg4[%c0_6, %c0_7], %12 {strides = array<i32>} : memref<32x128xbf16, #tpu.memory_space<vmem>>, vector<32x128xbf16>,
    return
  }
  func.func @transform_0(%arg0: i32) -> (i32, i32) {
    %c0_i32 = arith.constant 0 : i32
    %c0_i32_0 = arith.constant 0 : i32
    return %arg0, %c0_i32 : i32, i32
  }
  func.func @transform_1(%arg0: i32) -> (i32, i32) {
    %c0_i32 = arith.constant 0 : i32
    %c0_i32_0 = arith.constant 0 : i32
    %c0_i32_1 = arith.constant 0 : i32
    return %c0_i32, %c0_i32_0 : i32, i32
  }
  func.func @transform_2(%arg0: i32) -> (i32, i32) {
    %c0_i32 = arith.constant 0 : i32
    %c0_i32_0 = arith.constant 0 : i32
    %c0_i32_1 = arith.constant 0 : i32
    return %c0_i32, %c0_i32_0 : i32, i32
  }
  func.func @transform_3(%arg0: i32) -> (i32, i32) {
    %c0_i32 = arith.constant 0 : i32
    %c0_i32_0 = arith.constant 0 : i32
    return %arg0, %c0_i32 : i32, i32
  }
}

module attributes {stable_mosaic.version = 11 : i64} {
  func.func @_conv_bias_stats_kernel(%arg0: i32, %arg1: memref<8x2048xbf16, #tpu.memory_space<vmem>>, %arg2: memref<2048x128xbf16, #tpu.memory_space<vmem>>, %arg3: memref<1x128xf32, #tpu.memory_space<vmem>>, %arg4: memref<8x128xf32, #tpu.memory_space<vmem>>, %arg5: memref<8x128xf32, #tpu.memory_space<vmem>>) attributes {dimension_semantics = [#tpu.dimension_semantics<arbitrary>], iteration_bounds = array<i64: 1>, scalar_prefetch = 0 : i64, scratch_operands = 0 : i64, tpu.core_type = #tpu.core_type<tc>, window_params = [{transform_indices = @transform_0, window_bounds = array<i64: 8, 2048>}, {pipeline_mode = #tpu.pipeline_mode<synchronous>, transform_indices = @transform_1, window_bounds = array<i64: 2048, 128>}, {pipeline_mode = #tpu.pipeline_mode<synchronous>, transform_indices = @transform_2, window_bounds = array<i64: 1, 128>}, {transform_indices = @transform_3, window_bounds = array<i64: 8, 128>}, {pipeline_mode = #tpu.pipeline_mode<synchronous>, transform_indices = @transform_4, window_bounds = array<i64: 8, 128>}]} {
    %c0 = arith.constant 0 : index
    %c0_0 = arith.constant 0 : index
    %0 = vector.load %arg1[%c0, %c0_0] : memref<8x2048xbf16, #tpu.memory_space<vmem>>, vector<8x2048xbf16>
    %c0_1 = arith.constant 0 : index
    %c0_2 = arith.constant 0 : index
    %1 = vector.load %arg2[%c0_1, %c0_2] : memref<2048x128xbf16, #tpu.memory_space<vmem>>, vector<2048x128xbf16>
    %cst = arith.constant dense<0.000000e+00> : vector<8x128xf32>
    %2 = tpu.matmul %0, %1, %cst {dimension_numbers = #tpu.dot_dimension_numbers<[1], [0], [0], [1], [0, 0, 1, 1], [], []>} : vector<8x2048xbf16>, vector<2048x128xbf16>, vector<8x128xf32> -> vector<8x128xf32>
    %c0_3 = arith.constant 0 : index
    %c0_4 = arith.constant 0 : index
    %3 = vector.load %arg3[%c0_3, %c0_4] : memref<1x128xf32, #tpu.memory_space<vmem>>, vector<1x128xf32>
    %4 = vector.broadcast %3 : vector<1x128xf32> to vector<8x128xf32>
    %5 = arith.addf %2, %4 : vector<8x128xf32>
    %c0_5 = arith.constant 0 : index
    %c0_6 = arith.constant 0 : index
    %6 = vector.load %arg4[%c0_5, %c0_6] : memref<8x128xf32, #tpu.memory_space<vmem>>, vector<8x128xf32>
    tpu.vector_store %arg4[%c0_5, %c0_6], %5 {strides = array<i32>} : memref<8x128xf32, #tpu.memory_space<vmem>>, vector<8x128xf32>,
    %7 = tpu.iota {dimensions = array<i32: 0>} : vector<8x128xi32>
    %c8_i32 = arith.constant 8 : i32
    %8 = arith.muli %arg0, %c8_i32 : i32
    %9 = vector.broadcast %8 : i32 to vector<8x128xi32>
    %10 = arith.addi %7, %9 : vector<8x128xi32>
    %c8_i32_7 = arith.constant 8 : i32
    %11 = vector.broadcast %c8_i32_7 : i32 to vector<8x128xi32>
    %12 = arith.cmpi slt, %10, %11 : vector<8x128xi32>
    %cst_8 = arith.constant 0.000000e+00 : f32
    %13 = vector.broadcast %cst_8 : f32 to vector<8x128xf32>
    %14 = arith.select %12, %5, %13 : vector<8x128xi1>, vector<8x128xf32>
    %cst_9 = arith.constant dense<0.000000e+00> : vector<128xf32>
    %15 = vector.multi_reduction <add>, %14, %cst_9 [0] : vector<8x128xf32> to vector<128xf32>
    %16 = vector.shape_cast %15 : vector<128xf32> to vector<1x128xf32>
    %17 = arith.mulf %14, %14 : vector<8x128xf32>
    %cst_10 = arith.constant dense<0.000000e+00> : vector<128xf32>
    %18 = vector.multi_reduction <add>, %17, %cst_10 [0] : vector<8x128xf32> to vector<128xf32>
    %19 = vector.shape_cast %18 : vector<128xf32> to vector<1x128xf32>
    %20 = tpu.iota {dimensions = array<i32: 0>} : vector<8x128xi32>
    %c0_i32 = arith.constant 0 : i32
    %21 = vector.broadcast %c0_i32 : i32 to vector<8x128xi32>
    %22 = arith.cmpi eq, %20, %21 : vector<8x128xi32>
    %cst_11 = arith.constant 0.000000e+00 : f32
    %23 = vector.shape_cast %16 : vector<1x128xf32> to vector<1x128xf32>
    %24 = vector.broadcast %23 : vector<1x128xf32> to vector<8x128xf32>
    %25 = vector.broadcast %cst_11 : f32 to vector<8x128xf32>
    %26 = arith.select %22, %24, %25 : vector<8x128xi1>, vector<8x128xf32>
    %c1_i32 = arith.constant 1 : i32
    %27 = vector.broadcast %c1_i32 : i32 to vector<8x128xi32>
    %28 = arith.cmpi eq, %20, %27 : vector<8x128xi32>
    %cst_12 = arith.constant 0.000000e+00 : f32
    %29 = vector.shape_cast %19 : vector<1x128xf32> to vector<1x128xf32>
    %30 = vector.broadcast %29 : vector<1x128xf32> to vector<8x128xf32>
    %31 = vector.broadcast %cst_12 : f32 to vector<8x128xf32>
    %32 = arith.select %28, %30, %31 : vector<8x128xi1>, vector<8x128xf32>
    %33 = arith.addf %26, %32 : vector<8x128xf32>
    %c0_i32_13 = arith.constant 0 : i32
    %34 = arith.cmpi eq, %arg0, %c0_i32_13 : i32
    %35 = arith.extui %34 : i1 to i32
    %c0_i32_14 = arith.constant 0 : i32
    %36 = arith.cmpi ne, %35, %c0_i32_14 : i32
    scf.if %36 {
      %cst_19 = arith.constant 0.000000e+00 : f32
      %40 = vector.broadcast %cst_19 : f32 to vector<8x128xf32>
      %c0_20 = arith.constant 0 : index
      %c0_21 = arith.constant 0 : index
      %41 = vector.load %arg5[%c0_20, %c0_21] : memref<8x128xf32, #tpu.memory_space<vmem>>, vector<8x128xf32>
      tpu.vector_store %arg5[%c0_20, %c0_21], %40 {strides = array<i32>} : memref<8x128xf32, #tpu.memory_space<vmem>>, vector<8x128xf32>,
    } else {
    }
    %c0_15 = arith.constant 0 : index
    %c0_16 = arith.constant 0 : index
    %37 = vector.load %arg5[%c0_15, %c0_16] : memref<8x128xf32, #tpu.memory_space<vmem>>, vector<8x128xf32>
    %38 = arith.addf %37, %33 : vector<8x128xf32>
    %c0_17 = arith.constant 0 : index
    %c0_18 = arith.constant 0 : index
    %39 = vector.load %arg5[%c0_17, %c0_18] : memref<8x128xf32, #tpu.memory_space<vmem>>, vector<8x128xf32>
    tpu.vector_store %arg5[%c0_17, %c0_18], %38 {strides = array<i32>} : memref<8x128xf32, #tpu.memory_space<vmem>>, vector<8x128xf32>,
    return
  }
  func.func @transform_0(%arg0: i32) -> (i32, i32) {
    %c0_i32 = arith.constant 0 : i32
    %c0_i32_0 = arith.constant 0 : i32
    return %arg0, %c0_i32 : i32, i32
  }
  func.func @transform_1(%arg0: i32) -> (i32, i32) {
    %c0_i32 = arith.constant 0 : i32
    %c0_i32_0 = arith.constant 0 : i32
    %c0_i32_1 = arith.constant 0 : i32
    return %c0_i32, %c0_i32_0 : i32, i32
  }
  func.func @transform_2(%arg0: i32) -> (i32, i32) {
    %c0_i32 = arith.constant 0 : i32
    %c0_i32_0 = arith.constant 0 : i32
    %c0_i32_1 = arith.constant 0 : i32
    return %c0_i32, %c0_i32_0 : i32, i32
  }
  func.func @transform_3(%arg0: i32) -> (i32, i32) {
    %c0_i32 = arith.constant 0 : i32
    %c0_i32_0 = arith.constant 0 : i32
    return %arg0, %c0_i32 : i32, i32
  }
  func.func @transform_4(%arg0: i32) -> (i32, i32) {
    %c0_i32 = arith.constant 0 : i32
    %c0_i32_0 = arith.constant 0 : i32
    %c0_i32_1 = arith.constant 0 : i32
    return %c0_i32, %c0_i32_0 : i32, i32
  }
}

module attributes {stable_mosaic.version = 11 : i64} {
  func.func @_scale_shift_lrelu_kernel(%arg0: i32, %arg1: memref<8x128xf32, #tpu.memory_space<vmem>>, %arg2: memref<1x128xf32, #tpu.memory_space<vmem>>, %arg3: memref<1x128xf32, #tpu.memory_space<vmem>>, %arg4: memref<8x128xbf16, #tpu.memory_space<vmem>>) attributes {dimension_semantics = [#tpu.dimension_semantics<parallel>], iteration_bounds = array<i64: 1>, scalar_prefetch = 0 : i64, scratch_operands = 0 : i64, tpu.core_type = #tpu.core_type<tc>, window_params = [{transform_indices = @transform_0, window_bounds = array<i64: 8, 128>}, {pipeline_mode = #tpu.pipeline_mode<synchronous>, transform_indices = @transform_1, window_bounds = array<i64: 1, 128>}, {pipeline_mode = #tpu.pipeline_mode<synchronous>, transform_indices = @transform_2, window_bounds = array<i64: 1, 128>}, {transform_indices = @transform_3, window_bounds = array<i64: 8, 128>}]} {
    %c0 = arith.constant 0 : index
    %c0_0 = arith.constant 0 : index
    %0 = vector.load %arg1[%c0, %c0_0] : memref<8x128xf32, #tpu.memory_space<vmem>>, vector<8x128xf32>
    %c0_1 = arith.constant 0 : index
    %c0_2 = arith.constant 0 : index
    %1 = vector.load %arg2[%c0_1, %c0_2] : memref<1x128xf32, #tpu.memory_space<vmem>>, vector<1x128xf32>
    %2 = vector.broadcast %1 : vector<1x128xf32> to vector<8x128xf32>
    %3 = arith.mulf %0, %2 : vector<8x128xf32>
    %c0_3 = arith.constant 0 : index
    %c0_4 = arith.constant 0 : index
    %4 = vector.load %arg3[%c0_3, %c0_4] : memref<1x128xf32, #tpu.memory_space<vmem>>, vector<1x128xf32>
    %5 = vector.broadcast %4 : vector<1x128xf32> to vector<8x128xf32>
    %6 = arith.addf %3, %5 : vector<8x128xf32>
    %cst = arith.constant 0.000000e+00 : f32
    %7 = vector.broadcast %cst : f32 to vector<8x128xf32>
    %8 = arith.cmpf oge, %6, %7 : vector<8x128xf32>
    %cst_5 = arith.constant 2.000000e-01 : f32
    %9 = vector.broadcast %cst_5 : f32 to vector<8x128xf32>
    %10 = arith.mulf %9, %6 : vector<8x128xf32>
    %11 = arith.select %8, %6, %10 : vector<8x128xi1>, vector<8x128xf32>
    %12 = arith.truncf %11 : vector<8x128xf32> to vector<8x128xbf16>
    %c0_6 = arith.constant 0 : index
    %c0_7 = arith.constant 0 : index
    %13 = vector.load %arg4[%c0_6, %c0_7] : memref<8x128xbf16, #tpu.memory_space<vmem>>, vector<8x128xbf16>
    tpu.vector_store %arg4[%c0_6, %c0_7], %12 {strides = array<i32>} : memref<8x128xbf16, #tpu.memory_space<vmem>>, vector<8x128xbf16>,
    return
  }
  func.func @transform_0(%arg0: i32) -> (i32, i32) {
    %c0_i32 = arith.constant 0 : i32
    %c0_i32_0 = arith.constant 0 : i32
    return %arg0, %c0_i32 : i32, i32
  }
  func.func @transform_1(%arg0: i32) -> (i32, i32) {
    %c0_i32 = arith.constant 0 : i32
    %c0_i32_0 = arith.constant 0 : i32
    %c0_i32_1 = arith.constant 0 : i32
    return %c0_i32, %c0_i32_0 : i32, i32
  }
  func.func @transform_2(%arg0: i32) -> (i32, i32) {
    %c0_i32 = arith.constant 0 : i32
    %c0_i32_0 = arith.constant 0 : i32
    %c0_i32_1 = arith.constant 0 : i32
    return %c0_i32, %c0_i32_0 : i32, i32
  }
  func.func @transform_3(%arg0: i32) -> (i32, i32) {
    %c0_i32 = arith.constant 0 : i32
    %c0_i32_0 = arith.constant 0 : i32
    return %arg0, %c0_i32 : i32, i32
  }
}

module attributes {stable_mosaic.version = 11 : i64} {
  func.func @_conv_bias_stats_kernel(%arg0: i32, %arg1: memref<8x2048xbf16, #tpu.memory_space<vmem>>, %arg2: memref<2048x128xbf16, #tpu.memory_space<vmem>>, %arg3: memref<1x128xf32, #tpu.memory_space<vmem>>, %arg4: memref<8x128xf32, #tpu.memory_space<vmem>>, %arg5: memref<8x128xf32, #tpu.memory_space<vmem>>) attributes {dimension_semantics = [#tpu.dimension_semantics<arbitrary>], iteration_bounds = array<i64: 1>, scalar_prefetch = 0 : i64, scratch_operands = 0 : i64, tpu.core_type = #tpu.core_type<tc>, window_params = [{transform_indices = @transform_0, window_bounds = array<i64: 8, 2048>}, {pipeline_mode = #tpu.pipeline_mode<synchronous>, transform_indices = @transform_1, window_bounds = array<i64: 2048, 128>}, {pipeline_mode = #tpu.pipeline_mode<synchronous>, transform_indices = @transform_2, window_bounds = array<i64: 1, 128>}, {transform_indices = @transform_3, window_bounds = array<i64: 8, 128>}, {pipeline_mode = #tpu.pipeline_mode<synchronous>, transform_indices = @transform_4, window_bounds = array<i64: 8, 128>}]} {
    %c0 = arith.constant 0 : index
    %c0_0 = arith.constant 0 : index
    %0 = vector.load %arg1[%c0, %c0_0] : memref<8x2048xbf16, #tpu.memory_space<vmem>>, vector<8x2048xbf16>
    %c0_1 = arith.constant 0 : index
    %c0_2 = arith.constant 0 : index
    %1 = vector.load %arg2[%c0_1, %c0_2] : memref<2048x128xbf16, #tpu.memory_space<vmem>>, vector<2048x128xbf16>
    %cst = arith.constant dense<0.000000e+00> : vector<8x128xf32>
    %2 = tpu.matmul %0, %1, %cst {dimension_numbers = #tpu.dot_dimension_numbers<[1], [0], [0], [1], [0, 0, 1, 1], [], []>} : vector<8x2048xbf16>, vector<2048x128xbf16>, vector<8x128xf32> -> vector<8x128xf32>
    %c0_3 = arith.constant 0 : index
    %c0_4 = arith.constant 0 : index
    %3 = vector.load %arg3[%c0_3, %c0_4] : memref<1x128xf32, #tpu.memory_space<vmem>>, vector<1x128xf32>
    %4 = vector.broadcast %3 : vector<1x128xf32> to vector<8x128xf32>
    %5 = arith.addf %2, %4 : vector<8x128xf32>
    %c0_5 = arith.constant 0 : index
    %c0_6 = arith.constant 0 : index
    %6 = vector.load %arg4[%c0_5, %c0_6] : memref<8x128xf32, #tpu.memory_space<vmem>>, vector<8x128xf32>
    tpu.vector_store %arg4[%c0_5, %c0_6], %5 {strides = array<i32>} : memref<8x128xf32, #tpu.memory_space<vmem>>, vector<8x128xf32>,
    %7 = tpu.iota {dimensions = array<i32: 0>} : vector<8x128xi32>
    %c8_i32 = arith.constant 8 : i32
    %8 = arith.muli %arg0, %c8_i32 : i32
    %9 = vector.broadcast %8 : i32 to vector<8x128xi32>
    %10 = arith.addi %7, %9 : vector<8x128xi32>
    %c2_i32 = arith.constant 2 : i32
    %11 = vector.broadcast %c2_i32 : i32 to vector<8x128xi32>
    %12 = arith.cmpi slt, %10, %11 : vector<8x128xi32>
    %cst_7 = arith.constant 0.000000e+00 : f32
    %13 = vector.broadcast %cst_7 : f32 to vector<8x128xf32>
    %14 = arith.select %12, %5, %13 : vector<8x128xi1>, vector<8x128xf32>
    %cst_8 = arith.constant dense<0.000000e+00> : vector<128xf32>
    %15 = vector.multi_reduction <add>, %14, %cst_8 [0] : vector<8x128xf32> to vector<128xf32>
    %16 = vector.shape_cast %15 : vector<128xf32> to vector<1x128xf32>
    %17 = arith.mulf %14, %14 : vector<8x128xf32>
    %cst_9 = arith.constant dense<0.000000e+00> : vector<128xf32>
    %18 = vector.multi_reduction <add>, %17, %cst_9 [0] : vector<8x128xf32> to vector<128xf32>
    %19 = vector.shape_cast %18 : vector<128xf32> to vector<1x128xf32>
    %20 = tpu.iota {dimensions = array<i32: 0>} : vector<8x128xi32>
    %c0_i32 = arith.constant 0 : i32
    %21 = vector.broadcast %c0_i32 : i32 to vector<8x128xi32>
    %22 = arith.cmpi eq, %20, %21 : vector<8x128xi32>
    %cst_10 = arith.constant 0.000000e+00 : f32
    %23 = vector.shape_cast %16 : vector<1x128xf32> to vector<1x128xf32>
    %24 = vector.broadcast %23 : vector<1x128xf32> to vector<8x128xf32>
    %25 = vector.broadcast %cst_10 : f32 to vector<8x128xf32>
    %26 = arith.select %22, %24, %25 : vector<8x128xi1>, vector<8x128xf32>
    %c1_i32 = arith.constant 1 : i32
    %27 = vector.broadcast %c1_i32 : i32 to vector<8x128xi32>
    %28 = arith.cmpi eq, %20, %27 : vector<8x128xi32>
    %cst_11 = arith.constant 0.000000e+00 : f32
    %29 = vector.shape_cast %19 : vector<1x128xf32> to vector<1x128xf32>
    %30 = vector.broadcast %29 : vector<1x128xf32> to vector<8x128xf32>
    %31 = vector.broadcast %cst_11 : f32 to vector<8x128xf32>
    %32 = arith.select %28, %30, %31 : vector<8x128xi1>, vector<8x128xf32>
    %33 = arith.addf %26, %32 : vector<8x128xf32>
    %c0_i32_12 = arith.constant 0 : i32
    %34 = arith.cmpi eq, %arg0, %c0_i32_12 : i32
    %35 = arith.extui %34 : i1 to i32
    %c0_i32_13 = arith.constant 0 : i32
    %36 = arith.cmpi ne, %35, %c0_i32_13 : i32
    scf.if %36 {
      %cst_18 = arith.constant 0.000000e+00 : f32
      %40 = vector.broadcast %cst_18 : f32 to vector<8x128xf32>
      %c0_19 = arith.constant 0 : index
      %c0_20 = arith.constant 0 : index
      %41 = vector.load %arg5[%c0_19, %c0_20] : memref<8x128xf32, #tpu.memory_space<vmem>>, vector<8x128xf32>
      tpu.vector_store %arg5[%c0_19, %c0_20], %40 {strides = array<i32>} : memref<8x128xf32, #tpu.memory_space<vmem>>, vector<8x128xf32>,
    } else {
    }
    %c0_14 = arith.constant 0 : index
    %c0_15 = arith.constant 0 : index
    %37 = vector.load %arg5[%c0_14, %c0_15] : memref<8x128xf32, #tpu.memory_space<vmem>>, vector<8x128xf32>
    %38 = arith.addf %37, %33 : vector<8x128xf32>
    %c0_16 = arith.constant 0 : index
    %c0_17 = arith.constant 0 : index
    %39 = vector.load %arg5[%c0_16, %c0_17] : memref<8x128xf32, #tpu.memory_space<vmem>>, vector<8x128xf32>
    tpu.vector_store %arg5[%c0_16, %c0_17], %38 {strides = array<i32>} : memref<8x128xf32, #tpu.memory_space<vmem>>, vector<8x128xf32>,
    return
  }
  func.func @transform_0(%arg0: i32) -> (i32, i32) {
    %c0_i32 = arith.constant 0 : i32
    %c0_i32_0 = arith.constant 0 : i32
    return %arg0, %c0_i32 : i32, i32
  }
  func.func @transform_1(%arg0: i32) -> (i32, i32) {
    %c0_i32 = arith.constant 0 : i32
    %c0_i32_0 = arith.constant 0 : i32
    %c0_i32_1 = arith.constant 0 : i32
    return %c0_i32, %c0_i32_0 : i32, i32
  }
  func.func @transform_2(%arg0: i32) -> (i32, i32) {
    %c0_i32 = arith.constant 0 : i32
    %c0_i32_0 = arith.constant 0 : i32
    %c0_i32_1 = arith.constant 0 : i32
    return %c0_i32, %c0_i32_0 : i32, i32
  }
  func.func @transform_3(%arg0: i32) -> (i32, i32) {
    %c0_i32 = arith.constant 0 : i32
    %c0_i32_0 = arith.constant 0 : i32
    return %arg0, %c0_i32 : i32, i32
  }
  func.func @transform_4(%arg0: i32) -> (i32, i32) {
    %c0_i32 = arith.constant 0 : i32
    %c0_i32_0 = arith.constant 0 : i32
    %c0_i32_1 = arith.constant 0 : i32
    return %c0_i32, %c0_i32_0 : i32, i32
  }
}

module attributes {stable_mosaic.version = 11 : i64} {
  func.func @_final_conv_mean_kernel(%arg0: i32, %arg1: i32, %arg2: memref<1x8x2048xbf16, #tpu.memory_space<vmem>>, %arg3: memref<2048x128xbf16, #tpu.memory_space<vmem>>, %arg4: memref<1x128xf32, #tpu.memory_space<vmem>>, %arg5: memref<2x128xf32, #tpu.memory_space<vmem>>) attributes {dimension_semantics = [#tpu.dimension_semantics<arbitrary>, #tpu.dimension_semantics<arbitrary>], iteration_bounds = array<i64: 2, 1>, scalar_prefetch = 0 : i64, scratch_operands = 0 : i64, tpu.core_type = #tpu.core_type<tc>, window_params = [{transform_indices = @transform_0, window_bounds = array<i64: 1, 8, 2048>}, {pipeline_mode = #tpu.pipeline_mode<synchronous>, transform_indices = @transform_1, window_bounds = array<i64: 2048, 128>}, {pipeline_mode = #tpu.pipeline_mode<synchronous>, transform_indices = @transform_2, window_bounds = array<i64: 1, 128>}, {pipeline_mode = #tpu.pipeline_mode<synchronous>, transform_indices = @transform_3, window_bounds = array<i64: 2, 128>}]} {
    %c0_i32 = arith.constant 0 : i32
    %0 = arith.cmpi eq, %arg0, %c0_i32 : i32
    %c0_i32_0 = arith.constant 0 : i32
    %1 = arith.cmpi eq, %arg1, %c0_i32_0 : i32
    %2 = arith.andi %0, %1 : i1
    %3 = arith.extui %2 : i1 to i32
    %c0_i32_1 = arith.constant 0 : i32
    %4 = arith.cmpi ne, %3, %c0_i32_1 : i32
    scf.if %4 {
      %cst_19 = arith.constant 0.000000e+00 : f32
      %47 = vector.broadcast %cst_19 : f32 to vector<2x128xf32>
      %c0_20 = arith.constant 0 : index
      %c0_21 = arith.constant 0 : index
      %48 = vector.load %arg5[%c0_20, %c0_21] : memref<2x128xf32, #tpu.memory_space<vmem>>, vector<2x128xf32>
      tpu.vector_store %arg5[%c0_20, %c0_21], %47 {strides = array<i32>} : memref<2x128xf32, #tpu.memory_space<vmem>>, vector<2x128xf32>,
    } else {
    }
    %c0 = arith.constant 0 : index
    %c0_2 = arith.constant 0 : index
    %c0_3 = arith.constant 0 : index
    %5 = vector.load %arg2[%c0, %c0_2, %c0_3] : memref<1x8x2048xbf16, #tpu.memory_space<vmem>>, vector<1x8x2048xbf16>
    %6 = vector.shape_cast %5 : vector<1x8x2048xbf16> to vector<8x2048xbf16>
    %c0_4 = arith.constant 0 : index
    %c0_5 = arith.constant 0 : index
    %7 = vector.load %arg3[%c0_4, %c0_5] : memref<2048x128xbf16, #tpu.memory_space<vmem>>, vector<2048x128xbf16>
    %cst = arith.constant dense<0.000000e+00> : vector<8x128xf32>
    %8 = tpu.matmul %6, %7, %cst {dimension_numbers = #tpu.dot_dimension_numbers<[1], [0], [0], [1], [0, 0, 1, 1], [], []>} : vector<8x2048xbf16>, vector<2048x128xbf16>, vector<8x128xf32> -> vector<8x128xf32>
    %c0_6 = arith.constant 0 : index
    %c0_7 = arith.constant 0 : index
    %9 = vector.load %arg4[%c0_6, %c0_7] : memref<1x128xf32, #tpu.memory_space<vmem>>, vector<1x128xf32>
    %10 = vector.broadcast %9 : vector<1x128xf32> to vector<8x128xf32>
    %11 = arith.addf %8, %10 : vector<8x128xf32>
    %12 = arith.negf %11 : vector<8x128xf32>
    %13 = math.exp %12 : vector<8x128xf32>
    %cst_8 = arith.constant 1.000000e+00 : f32
    %14 = vector.broadcast %cst_8 : f32 to vector<8x128xf32>
    %15 = arith.addf %14, %13 : vector<8x128xf32>
    %16 = arith.divf %14, %15 : vector<8x128xf32>
    %17 = tpu.iota {dimensions = array<i32: 1>} : vector<8x128xi32>
    %18 = tpu.iota {dimensions = array<i32: 0>} : vector<8x128xi32>
    %c8_i32 = arith.constant 8 : i32
    %19 = arith.muli %arg1, %c8_i32 : i32
    %20 = vector.broadcast %19 : i32 to vector<8x128xi32>
    %21 = arith.addi %18, %20 : vector<8x128xi32>
    %c0_i32_9 = arith.constant 0 : i32
    %22 = vector.broadcast %c0_i32_9 : i32 to vector<8x128xi32>
    %23 = arith.cmpi eq, %17, %22 : vector<8x128xi32>
    %c4_i32 = arith.constant 4 : i32
    %24 = vector.broadcast %c4_i32 : i32 to vector<8x128xi32>
    %25 = arith.cmpi slt, %21, %24 : vector<8x128xi32>
    %26 = arith.andi %23, %25 : vector<8x128xi1>
    %cst_10 = arith.constant 0.000000e+00 : f32
    %27 = vector.broadcast %cst_10 : f32 to vector<8x128xf32>
    %28 = arith.select %26, %16, %27 : vector<8x128xi1>, vector<8x128xf32>
    %29 = vector.shape_cast %28 : vector<8x128xf32> to vector<1x8x128xf32>
    %cst_11 = arith.constant dense<0.000000e+00> : vector<1xf32>
    %30 = vector.multi_reduction <add>, %29, %cst_11 [1, 2] : vector<1x8x128xf32> to vector<1xf32>
    %31 = vector.shape_cast %30 : vector<1xf32> to vector<1x1x1xf32>
    %32 = vector.extract %31[0, 0, 0] : f32 from vector<1x1x1xf32>
    %cst_12 = arith.constant 2.500000e-01 : f32
    %33 = arith.mulf %32, %cst_12 : f32
    %34 = tpu.iota {dimensions = array<i32: 0>} : vector<2x128xi32>
    %35 = tpu.iota {dimensions = array<i32: 1>} : vector<2x128xi32>
    %c0_13 = arith.constant 0 : index
    %c0_14 = arith.constant 0 : index
    %36 = vector.load %arg5[%c0_13, %c0_14] : memref<2x128xf32, #tpu.memory_space<vmem>>, vector<2x128xf32>
    %37 = vector.broadcast %arg0 : i32 to vector<2x128xi32>
    %38 = arith.cmpi eq, %34, %37 : vector<2x128xi32>
    %c0_i32_15 = arith.constant 0 : i32
    %39 = vector.broadcast %c0_i32_15 : i32 to vector<2x128xi32>
    %40 = arith.cmpi eq, %35, %39 : vector<2x128xi32>
    %41 = arith.andi %38, %40 : vector<2x128xi1>
    %cst_16 = arith.constant 0.000000e+00 : f32
    %42 = vector.broadcast %33 : f32 to vector<2x128xf32>
    %43 = vector.broadcast %cst_16 : f32 to vector<2x128xf32>
    %44 = arith.select %41, %42, %43 : vector<2x128xi1>, vector<2x128xf32>
    %45 = arith.addf %36, %44 : vector<2x128xf32>
    %c0_17 = arith.constant 0 : index
    %c0_18 = arith.constant 0 : index
    %46 = vector.load %arg5[%c0_17, %c0_18] : memref<2x128xf32, #tpu.memory_space<vmem>>, vector<2x128xf32>
    tpu.vector_store %arg5[%c0_17, %c0_18], %45 {strides = array<i32>} : memref<2x128xf32, #tpu.memory_space<vmem>>, vector<2x128xf32>,
    return
  }
  func.func @transform_0(%arg0: i32, %arg1: i32) -> (i32, i32, i32) {
    %c0_i32 = arith.constant 0 : i32
    %c0_i32_0 = arith.constant 0 : i32
    return %arg0, %arg1, %c0_i32 : i32, i32, i32
  }
  func.func @transform_1(%arg0: i32, %arg1: i32) -> (i32, i32) {
    %c0_i32 = arith.constant 0 : i32
    %c0_i32_0 = arith.constant 0 : i32
    %c0_i32_1 = arith.constant 0 : i32
    return %c0_i32, %c0_i32_0 : i32, i32
  }
  func.func @transform_2(%arg0: i32, %arg1: i32) -> (i32, i32) {
    %c0_i32 = arith.constant 0 : i32
    %c0_i32_0 = arith.constant 0 : i32
    %c0_i32_1 = arith.constant 0 : i32
    return %c0_i32, %c0_i32_0 : i32, i32
  }
  func.func @transform_3(%arg0: i32, %arg1: i32) -> (i32, i32) {
    %c0_i32 = arith.constant 0 : i32
    %c0_i32_0 = arith.constant 0 : i32
    %c0_i32_1 = arith.constant 0 : i32
    return %c0_i32, %c0_i32_0 : i32, i32
  }
}

</mosaic_0001>

<llo_original>
// kernel: n_layer_discriminator.8
$region0: #{n_layer_discriminator.8}
  #allocation0 [shape = 'u32[]', space=smem, size = 0x4, offset = 0x4, fixed_abs, tag = 'smem constant byte address 0x4 - core index']
  #allocation1 [shape = 'u32[144,128]{1,0:T(1,128)}', space=vmem, size = 0x12000, scoped, tag = 'internal scratch']
  %s0 = inlined_call_operand.vmem [shape: bf16[128,64], index: 0, kind: input, shape index: {}]
  %s1 = inlined_call_operand.vmem [shape: bf16[64,128], index: 1, kind: input, shape index: {}]
  %s2 = inlined_call_operand.vmem [shape: f32[1,128], index: 2, kind: input, shape index: {}]
  %s3 = inlined_call_operand.vmem [shape: bf16[128,128], index: 3, kind: output, shape index: {}]
  %s4 = sld [smem:[#allocation0]]
  $region22: #{n_layer_discriminator.8} parent=0
    _
  %s6 = ssub.s32 1, %s4
  %s7 = scalar_select 0, %s6, %s4
  // Predicated region
  $region2: #{n_layer_discriminator.8} parent=0 // pred_check
    _
  $region3: #{n_layer_discriminator.8} parent=0 // pred_check_branch
    %9 = sbr.rel (0) target = $region5
  $region4: #{n_layer_discriminator.8} parent=0 // pred_region
    _
  $region5: #{n_layer_discriminator.8} parent=0 // pred_fallthru
    _
  // Predicated region
  $region6: #{n_layer_discriminator.8} parent=0 // pred_check
    _
  $region7: #{n_layer_discriminator.8} parent=0 // pred_check_branch
    %11 = sbr.rel (0) target = $region9
  $region8: #{n_layer_discriminator.8} parent=0 // pred_region
    _
  $region9: #{n_layer_discriminator.8} parent=0 // pred_fallthru
    _
  // Predicated region
  $region10: #{n_layer_discriminator.8} parent=0 // pred_check
    _
  $region11: #{n_layer_discriminator.8} parent=0 // pred_check_branch
    %13 = sbr.rel (0) target = $region13
  $region12: #{n_layer_discriminator.8} parent=0 // pred_region
    _
  $region13: #{n_layer_discriminator.8} parent=0 // pred_fallthru
    _
  %v15 = vld [vmem:[%s0] sm:$0xf]
  %v16 = vld [vmem:[%s0 + $0x4] sm:$0xf]
  %v17 = vld [vmem:[%s0 + $0x8] sm:$0xf]
  %v18 = vld [vmem:[%s0 + $0xc] sm:$0xf]
  %v19 = vld [vmem:[%s0 + $0x10] sm:$0xf]
  %v20 = vld [vmem:[%s0 + $0x14] sm:$0xf]
  %v21 = vld [vmem:[%s0 + $0x18] sm:$0xf]
  %v22 = vld [vmem:[%s0 + $0x1c] sm:$0xf]
  %v23 = vld [vmem:[%s0 + $0x20] sm:$0xf]
  %v24 = vld [vmem:[%s0 + $0x24] sm:$0xf]
  %v25 = vld [vmem:[%s0 + $0x28] sm:$0xf]
  %v26 = vld [vmem:[%s0 + $0x2c] sm:$0xf]
  %v27 = vld [vmem:[%s0 + $0x30] sm:$0xf]
  %v28 = vld [vmem:[%s0 + $0x34] sm:$0xf]
  %v29 = vld [vmem:[%s0 + $0x38] sm:$0xf]
  %v30 = vld [vmem:[%s0 + $0x3c] sm:$0xf]
  %v31 = vld [vmem:[%s1] sm:$0xf]
  %v32 = vld [vmem:[%s1 + $0x4] sm:$0xf]
  %v33 = vld [vmem:[%s1 + $0x8] sm:$0xf]
  %v34 = vld [vmem:[%s1 + $0xc] sm:$0xf]
  %v35 = vld [vmem:[%s1 + $0x10] sm:$0xf]
  %v36 = vld [vmem:[%s1 + $0x14] sm:$0xf]
  %v37 = vld [vmem:[%s1 + $0x18] sm:$0xf]
  %v38 = vld [vmem:[%s1 + $0x1c] sm:$0xf]
  %v39 = vld [vmem:[%s2] sm:$0x1]
  %v41 = vlaneseq
  %v42 = vshrl.u32 %v41, 7
  %v43 = vsub.s32 0, %v42
  %v44 = vrot.slane %v39, %v43
  %v62 = vunpack.c.l.b16 %v15
  %v63 = vunpack.c.l.b16 %v16
  %v64 = vunpack.c.l.b16 %v17
  %v65 = vunpack.c.l.b16 %v18
  %v66 = vunpack.c.l.b16 %v19
  %v67 = vunpack.c.l.b16 %v20
  %v68 = vunpack.c.l.b16 %v21
  %v69 = vunpack.c.l.b16 %v22
  %v70 = vunpack.c.l.b16 %v23
  %v71 = vunpack.c.l.b16 %v24
  %v72 = vunpack.c.l.b16 %v25
  %v73 = vunpack.c.l.b16 %v26
  %v74 = vunpack.c.l.b16 %v27
  %v75 = vunpack.c.l.b16 %v28
  %v76 = vunpack.c.l.b16 %v29
  %v77 = vunpack.c.l.b16 %v30
  %v78 = vpack.c.b16 %v63, %v62
  %v79 = vpack.c.b16 %v65, %v64
  %v80 = vpack.c.b16 %v67, %v66
  %v81 = vpack.c.b16 %v69, %v68
  %v82 = vpack.c.b16 %v71, %v70
  %v83 = vpack.c.b16 %v73, %v72
  %v84 = vpack.c.b16 %v75, %v74
  %v85 = vpack.c.b16 %v77, %v76
  %v94 = vunpack.c.l.b16 %v31
  %v95 = vunpack.c.l.b16 %v32
  %v96 = vunpack.c.l.b16 %v33
  %v97 = vunpack.c.l.b16 %v34
  %v98 = vunpack.c.l.b16 %v35
  %v99 = vunpack.c.l.b16 %v36
  %v100 = vunpack.c.l.b16 %v37
  %v101 = vunpack.c.l.b16 %v38
  %v102 = vpack.c.b16 %v95, %v94
  %v103 = vpack.c.b16 %v97, %v96
  %v104 = vpack.c.b16 %v99, %v98
  %v105 = vpack.c.b16 %v101, %v100
  %vm110 = vcmask 523264
  %v112 = vsel %vm110, %v78, 0
  %v115 = vsel %vm110, %v79, 0
  %v118 = vsel %vm110, %v80, 0
  %v121 = vsel %vm110, %v81, 0
  %v124 = vsel %vm110, %v82, 0
  %v127 = vsel %vm110, %v83, 0
  %v130 = vsel %vm110, %v84, 0
  %v133 = vsel %vm110, %v85, 0
  %135 = vmatprep.subr.bf16.mxu0 0
  %136 = vmatpush1.bf16.msra.mxu0 %v102
  %137 = vmatprep.subr.bf16.mxu0 0
  %138 = vmatpush1.bf16.msra.mxu0 %v103
  %139 = vmatprep.subr.bf16.mxu0 0
  %140 = vmatpush1.bf16.msra.mxu0 %v104
  %141 = vmatprep.subr.bf16.mxu0 0
  %142 = vmatpush1.bf16.msra.mxu0 %v105
  %143 = vmatprep.subr.bf16.mxu0 0
  %144 = vmatpush1.bf16.msra.mxu0 0
  %145 = vmatprep.subr.bf16.mxu0 0
  %146 = vmatpush1.bf16.msra.mxu0 0
  %147 = vmatprep.subr.bf16.mxu0 0
  %148 = vmatpush1.bf16.msra.mxu0 0
  %149 = vmatprep.subr.bf16.mxu0 0
  %150 = vmatpush1.bf16.msra.mxu0 0
  %151 = vmatprep.subr.bf16.mxu0 0
  %152 = vmatpush1.bf16.msra.mxu0 0
  %153 = vmatprep.subr.bf16.mxu0 0
  %154 = vmatpush1.bf16.msra.mxu0 0
  %155 = vmatprep.subr.bf16.mxu0 0
  %156 = vmatpush1.bf16.msra.mxu0 0
  %157 = vmatprep.subr.bf16.mxu0 0
  %158 = vmatpush1.bf16.msra.mxu0 0
  %159 = vmatprep.subr.bf16.mxu0 0
  %160 = vmatpush1.bf16.msra.mxu0 0
  %161 = vmatprep.subr.bf16.mxu0 0
  %162 = vmatpush1.bf16.msra.mxu0 0
  %163 = vmatprep.subr.bf16.mxu0 0
  %164 = vmatpush1.bf16.msra.mxu0 0
  %165 = vmatprep.subr.bf16.mxu0 0
  %166 = vmatpush1.bf16.msra.mxu0 0
  %167 = vmatprep.mubr.bf16.mxu0 0
  %168 = vmatmul.mubr.bf16.gmra.mrb[0].mxu0 %v112
  %v169 = vpop.f32.mrb[0].mxu0
  %v170 = vadd.f32 %v44, %v169
  %v171 = vpop.f32.mrb[0].mxu0
  %v172 = vpop.f32.mrb[0].mxu0
  %v173 = vadd.f32 %v44, %v172
  %v174 = vpop.f32.mrb[0].mxu0
  %175 = vmatprep.mubr.bf16.mxu0 0
  %176 = vmatmul.mubr.bf16.gmra.mrb[0].mxu0 %v115
  %v177 = vpop.f32.mrb[0].mxu0
  %v178 = vadd.f32 %v44, %v177
  %v179 = vpop.f32.mrb[0].mxu0
  %v180 = vpop.f32.mrb[0].mxu0
  %v181 = vadd.f32 %v44, %v180
  %v182 = vpop.f32.mrb[0].mxu0
  %183 = vmatprep.mubr.bf16.mxu0 0
  %184 = vmatmul.mubr.bf16.gmra.mrb[0].mxu0 %v118
  %v185 = vpop.f32.mrb[0].mxu0
  %v186 = vadd.f32 %v44, %v185
  %v187 = vpop.f32.mrb[0].mxu0
  %v188 = vpop.f32.mrb[0].mxu0
  %v189 = vadd.f32 %v44, %v188
  %v190 = vpop.f32.mrb[0].mxu0
  %191 = vmatprep.mubr.bf16.mxu0 0
  %192 = vmatmul.mubr.bf16.gmra.mrb[0].mxu0 %v121
  %v193 = vpop.f32.mrb[0].mxu0
  %v194 = vadd.f32 %v44, %v193
  %v195 = vpop.f32.mrb[0].mxu0
  %v196 = vpop.f32.mrb[0].mxu0
  %v197 = vadd.f32 %v44, %v196
  %v198 = vpop.f32.mrb[0].mxu0
  %199 = vmatprep.mubr.bf16.mxu0 0
  %200 = vmatmul.mubr.bf16.gmra.mrb[0].mxu0 %v124
  %v201 = vpop.f32.mrb[0].mxu0
  %v202 = vadd.f32 %v44, %v201
  %v203 = vpop.f32.mrb[0].mxu0
  %v204 = vpop.f32.mrb[0].mxu0
  %v205 = vadd.f32 %v44, %v204
  %v206 = vpop.f32.mrb[0].mxu0
  %207 = vmatprep.mubr.bf16.mxu0 0
  %208 = vmatmul.mubr.bf16.gmra.mrb[0].mxu0 %v127
  %v209 = vpop.f32.mrb[0].mxu0
  %v210 = vadd.f32 %v44, %v209
  %v211 = vpop.f32.mrb[0].mxu0
  %v212 = vpop.f32.mrb[0].mxu0
  %v213 = vadd.f32 %v44, %v212
  %v214 = vpop.f32.mrb[0].mxu0
  %215 = vmatprep.mubr.bf16.mxu0 0
  %216 = vmatmul.mubr.bf16.gmra.mrb[0].mxu0 %v130
  %v217 = vpop.f32.mrb[0].mxu0
  %v218 = vadd.f32 %v44, %v217
  %v219 = vpop.f32.mrb[0].mxu0
  %v220 = vpop.f32.mrb[0].mxu0
  %v221 = vadd.f32 %v44, %v220
  %v222 = vpop.f32.mrb[0].mxu0
  %223 = vmatprep.mubr.bf16.mxu0 0
  %224 = vmatmul.mubr.bf16.gmra.mrb[0].mxu0 %v133
  %v225 = vpop.f32.mrb[0].mxu0
  %v226 = vadd.f32 %v44, %v225
  %v227 = vpop.f32.mrb[0].mxu0
  %v228 = vpop.f32.mrb[0].mxu0
  %v229 = vadd.f32 %v44, %v228
  %v230 = vpop.f32.mrb[0].mxu0
  %231 = vdwg.mxu0
  %vm232 = vcmp.ge.f32.partialorder %v170, 0.0
  %vm233 = vcmp.ge.f32.partialorder %v173, 0.0
  %vm234 = vcmp.ge.f32.partialorder %v178, 0.0
  %vm235 = vcmp.ge.f32.partialorder %v181, 0.0
  %vm236 = vcmp.ge.f32.partialorder %v186, 0.0
  %vm237 = vcmp.ge.f32.partialorder %v189, 0.0
  %vm238 = vcmp.ge.f32.partialorder %v194, 0.0
  %vm239 = vcmp.ge.f32.partialorder %v197, 0.0
  %vm240 = vcmp.ge.f32.partialorder %v202, 0.0
  %vm241 = vcmp.ge.f32.partialorder %v205, 0.0
  %vm242 = vcmp.ge.f32.partialorder %v210, 0.0
  %vm243 = vcmp.ge.f32.partialorder %v213, 0.0
  %vm244 = vcmp.ge.f32.partialorder %v218, 0.0
  %vm245 = vcmp.ge.f32.partialorder %v221, 0.0
  %vm246 = vcmp.ge.f32.partialorder %v226, 0.0
  %vm247 = vcmp.ge.f32.partialorder %v229, 0.0
  %v248 = vmul.f32 %v170, 0.2
  %v249 = vmul.f32 %v173, 0.2
  %v250 = vmul.f32 %v178, 0.2
  %v251 = vmul.f32 %v181, 0.2
  %v252 = vmul.f32 %v186, 0.2
  %v253 = vmul.f32 %v189, 0.2
  %v254 = vmul.f32 %v194, 0.2
  %v255 = vmul.f32 %v197, 0.2
  %v256 = vmul.f32 %v202, 0.2
  %v257 = vmul.f32 %v205, 0.2
  %v258 = vmul.f32 %v210, 0.2
  %v259 = vmul.f32 %v213, 0.2
  %v260 = vmul.f32 %v218, 0.2
  %v261 = vmul.f32 %v221, 0.2
  %v262 = vmul.f32 %v226, 0.2
  %v263 = vmul.f32 %v229, 0.2
  %v264 = vsel %vm232, %v170, %v248
  %v265 = vsel %vm233, %v173, %v249
  %v266 = vsel %vm234, %v178, %v250
  %v267 = vsel %vm235, %v181, %v251
  %v268 = vsel %vm236, %v186, %v252
  %v269 = vsel %vm237, %v189, %v253
  %v270 = vsel %vm238, %v194, %v254
  %v271 = vsel %vm239, %v197, %v255
  %v272 = vsel %vm240, %v202, %v256
  %v273 = vsel %vm241, %v205, %v257
  %v274 = vsel %vm242, %v210, %v258
  %v275 = vsel %vm243, %v213, %v259
  %v276 = vsel %vm244, %v218, %v260
  %v277 = vsel %vm245, %v221, %v261
  %v278 = vsel %vm246, %v226, %v262
  %v279 = vsel %vm247, %v229, %v263
  %v280 = vpack.c.bf16 %v265, %v264
  %v281 = vpack.c.bf16 %v267, %v266
  %v282 = vpack.c.bf16 %v269, %v268
  %v283 = vpack.c.bf16 %v271, %v270
  %v284 = vpack.c.bf16 %v273, %v272
  %v285 = vpack.c.bf16 %v275, %v274
  %v286 = vpack.c.bf16 %v277, %v276
  %v287 = vpack.c.bf16 %v279, %v278
  %v296 = vunpack.c.l.b16 %v280
  %v297 = vunpack.c.h.b16 %v280
  %v298 = vunpack.c.l.b16 %v281
  %v299 = vunpack.c.h.b16 %v281
  %v300 = vunpack.c.l.b16 %v282
  %v301 = vunpack.c.h.b16 %v282
  %v302 = vunpack.c.l.b16 %v283
  %v303 = vunpack.c.h.b16 %v283
  %v304 = vunpack.c.l.b16 %v284
  %v305 = vunpack.c.h.b16 %v284
  %v306 = vunpack.c.l.b16 %v285
  %v307 = vunpack.c.h.b16 %v285
  %v308 = vunpack.c.l.b16 %v286
  %v309 = vunpack.c.h.b16 %v286
  %v310 = vunpack.c.l.b16 %v287
  %v311 = vunpack.c.h.b16 %v287
  %v312 = vpack.c.b16 %v296, %v296
  %v313 = vpack.c.b16 %v297, %v297
  %v314 = vpack.c.b16 %v298, %v298
  %v315 = vpack.c.b16 %v299, %v299
  %v316 = vpack.c.b16 %v300, %v300
  %v317 = vpack.c.b16 %v301, %v301
  %v318 = vpack.c.b16 %v302, %v302
  %v319 = vpack.c.b16 %v303, %v303
  %v320 = vpack.c.b16 %v304, %v304
  %v321 = vpack.c.b16 %v305, %v305
  %v322 = vpack.c.b16 %v306, %v306
  %v323 = vpack.c.b16 %v307, %v307
  %v324 = vpack.c.b16 %v308, %v308
  %v325 = vpack.c.b16 %v309, %v309
  %v326 = vpack.c.b16 %v310, %v310
  %v327 = vpack.c.b16 %v311, %v311
  %344 = vst [vmem:[%s3] sm:$0xf] %v312
  %345 = vst [vmem:[%s3 + $0x4] sm:$0xf] %v313
  %346 = vst [vmem:[%s3 + $0x8] sm:$0xf] %v314
  %347 = vst [vmem:[%s3 + $0xc] sm:$0xf] %v315
  %348 = vst [vmem:[%s3 + $0x10] sm:$0xf] %v316
  %349 = vst [vmem:[%s3 + $0x14] sm:$0xf] %v317
  %350 = vst [vmem:[%s3 + $0x18] sm:$0xf] %v318
  %351 = vst [vmem:[%s3 + $0x1c] sm:$0xf] %v319
  %352 = vst [vmem:[%s3 + $0x20] sm:$0xf] %v320
  %353 = vst [vmem:[%s3 + $0x24] sm:$0xf] %v321
  %354 = vst [vmem:[%s3 + $0x28] sm:$0xf] %v322
  %355 = vst [vmem:[%s3 + $0x2c] sm:$0xf] %v323
  %356 = vst [vmem:[%s3 + $0x30] sm:$0xf] %v324
  %357 = vst [vmem:[%s3 + $0x34] sm:$0xf] %v325
  %358 = vst [vmem:[%s3 + $0x38] sm:$0xf] %v326
  %359 = vst [vmem:[%s3 + $0x3c] sm:$0xf] %v327
  // Predicated region
  $region14: #{n_layer_discriminator.8} parent=0 // pred_check
    _
  $region15: #{n_layer_discriminator.8} parent=0 // pred_check_branch
    %361 = sbr.rel (0) target = $region17
  $region16: #{n_layer_discriminator.8} parent=0 // pred_region
    _
  $region17: #{n_layer_discriminator.8} parent=0 // pred_fallthru
    _
  // Predicated region
  $region18: #{n_layer_discriminator.8} parent=0 // pred_check
    _
  $region19: #{n_layer_discriminator.8} parent=0 // pred_check_branch
    %363 = sbr.rel (0) target = $region21
  $region20: #{n_layer_discriminator.8} parent=0 // pred_region
    _
  $region21: #{n_layer_discriminator.8} parent=0 // pred_fallthru
    _

// kernel: n_layer_discriminator.10
$region0: #{n_layer_discriminator.10}
  #allocation0 [shape = 'u32[]', space=smem, size = 0x4, offset = 0x4, fixed_abs, tag = 'smem constant byte address 0x4 - core index']
  #allocation1 [shape = 'u32[144,128]{1,0:T(1,128)}', space=vmem, size = 0x12000, scoped, tag = 'internal scratch']
  %s0 = inlined_call_operand.vmem [shape: f32[32,128], index: 0, kind: input, shape index: {}]
  %s1 = inlined_call_operand.vmem [shape: f32[1,128], index: 1, kind: input, shape index: {}]
  %s2 = inlined_call_operand.vmem [shape: f32[1,128], index: 2, kind: input, shape index: {}]
  %s3 = inlined_call_operand.vmem [shape: bf16[32,128], index: 3, kind: output, shape index: {}]
  %s4 = sld [smem:[#allocation0]]
  $region22: #{n_layer_discriminator.10} parent=0
    _
  %s6 = ssub.s32 1, %s4
  %s7 = scalar_select 0, %s6, %s4
  // Predicated region
  $region2: #{n_layer_discriminator.10} parent=0 // pred_check
    _
  $region3: #{n_layer_discriminator.10} parent=0 // pred_check_branch
    %9 = sbr.rel (0) target = $region5
  $region4: #{n_layer_discriminator.10} parent=0 // pred_region
    _
  $region5: #{n_layer_discriminator.10} parent=0 // pred_fallthru
    _
  // Predicated region
  $region6: #{n_layer_discriminator.10} parent=0 // pred_check
    _
  $region7: #{n_layer_discriminator.10} parent=0 // pred_check_branch
    %11 = sbr.rel (0) target = $region9
  $region8: #{n_layer_discriminator.10} parent=0 // pred_region
    _
  $region9: #{n_layer_discriminator.10} parent=0 // pred_fallthru
    _
  // Predicated region
  $region10: #{n_layer_discriminator.10} parent=0 // pred_check
    _
  $region11: #{n_layer_discriminator.10} parent=0 // pred_check_branch
    %13 = sbr.rel (0) target = $region13
  $region12: #{n_layer_discriminator.10} parent=0 // pred_region
    _
  $region13: #{n_layer_discriminator.10} parent=0 // pred_fallthru
    _
  %v14 = vld [vmem:[%s0] sm:$0xff]
  %v15 = vld [vmem:[%s0 + $0x8] sm:$0xff]
  %v16 = vld [vmem:[%s0 + $0x10] sm:$0xff]
  %v17 = vld [vmem:[%s0 + $0x18] sm:$0xff]
  %v18 = vld [vmem:[%s1] sm:$0x1]
  %v20 = vlaneseq
  %v21 = vshrl.u32 %v20, 7
  %v22 = vsub.s32 0, %v21
  %v23 = vrot.slane %v18, %v22
  %v25 = vmul.f32 %v14, %v23
  %v26 = vmul.f32 %v15, %v23
  %v27 = vmul.f32 %v16, %v23
  %v28 = vmul.f32 %v17, %v23
  %v29 = vld [vmem:[%s2] sm:$0x1]
  %v31 = vlaneseq
  %v32 = vshrl.u32 %v31, 7
  %v33 = vsub.s32 0, %v32
  %v34 = vrot.slane %v29, %v33
  %v36 = vadd.f32 %v25, %v34
  %v37 = vadd.f32 %v26, %v34
  %v38 = vadd.f32 %v27, %v34
  %v39 = vadd.f32 %v28, %v34
  %vm40 = vcmp.ge.f32.partialorder %v36, 0.0
  %vm41 = vcmp.ge.f32.partialorder %v37, 0.0
  %vm42 = vcmp.ge.f32.partialorder %v38, 0.0
  %vm43 = vcmp.ge.f32.partialorder %v39, 0.0
  %v44 = vmul.f32 %v36, 0.2
  %v45 = vmul.f32 %v37, 0.2
  %v46 = vmul.f32 %v38, 0.2
  %v47 = vmul.f32 %v39, 0.2
  %v48 = vsel %vm40, %v36, %v44
  %v49 = vsel %vm41, %v37, %v45
  %v50 = vsel %vm42, %v38, %v46
  %v51 = vsel %vm43, %v39, %v47
  %v52 = vpack.c.bf16 %v49, %v48
  %v53 = vpack.c.bf16 %v51, %v50
  %v56 = vunpack.c.l.b16 %v52
  %v57 = vunpack.c.h.b16 %v52
  %v58 = vunpack.c.l.b16 %v53
  %v59 = vunpack.c.h.b16 %v53
  %v60 = vpack.c.b16 %v56, %v56
  %v61 = vpack.c.b16 %v57, %v57
  %v62 = vpack.c.b16 %v58, %v58
  %v63 = vpack.c.b16 %v59, %v59
  %68 = vst [vmem:[%s3] sm:$0xf] %v60
  %69 = vst [vmem:[%s3 + $0x4] sm:$0xf] %v61
  %70 = vst [vmem:[%s3 + $0x8] sm:$0xf] %v62
  %71 = vst [vmem:[%s3 + $0xc] sm:$0xf] %v63
  // Predicated region
  $region14: #{n_layer_discriminator.10} parent=0 // pred_check
    _
  $region15: #{n_layer_discriminator.10} parent=0 // pred_check_branch
    %73 = sbr.rel (0) target = $region17
  $region16: #{n_layer_discriminator.10} parent=0 // pred_region
    _
  $region17: #{n_layer_discriminator.10} parent=0 // pred_fallthru
    _
  // Predicated region
  $region18: #{n_layer_discriminator.10} parent=0 // pred_check
    _
  $region19: #{n_layer_discriminator.10} parent=0 // pred_check_branch
    %75 = sbr.rel (0) target = $region21
  $region20: #{n_layer_discriminator.10} parent=0 // pred_region
    _
  $region21: #{n_layer_discriminator.10} parent=0 // pred_fallthru
    _

// kernel: n_layer_discriminator.9
$region0: #{n_layer_discriminator.9}
  #allocation0 [shape = 'u32[]', space=smem, size = 0x4, offset = 0x4, fixed_abs, tag = 'smem constant byte address 0x4 - core index']
  #allocation1 [shape = 'u32[144,128]{1,0:T(1,128)}', space=vmem, size = 0x12000, scoped, tag = 'internal scratch']
  %s0 = inlined_call_operand.vmem [shape: bf16[32,2048], index: 0, kind: input, shape index: {}]
  %s1 = inlined_call_operand.vmem [shape: bf16[2048,128], index: 1, kind: input, shape index: {}]
  %s2 = inlined_call_operand.vmem [shape: f32[1,128], index: 2, kind: input, shape index: {}]
  %s3 = inlined_call_operand.vmem [shape: f32[32,128], index: 3, kind: output, shape index: {0}]
  %s4 = inlined_call_operand.vmem [shape: f32[8,128], index: 4, kind: output, shape index: {1}]
  %5 = xla_tuple %s3, %s4
  %s6 = sld [smem:[#allocation0]]
  $region34: #{n_layer_discriminator.9} parent=0
    _
  %s8 = ssub.s32 1, %s6
  %s9 = scalar_select 0, %s8, %s6
  // Predicated region
  $region2: #{n_layer_discriminator.9} parent=0 // pred_check
    _
  $region3: #{n_layer_discriminator.9} parent=0 // pred_check_branch
    %11 = sbr.rel (0) target = $region5
  $region4: #{n_layer_discriminator.9} parent=0 // pred_region
    _
  $region5: #{n_layer_discriminator.9} parent=0 // pred_fallthru
    _
  // Predicated region
  $region6: #{n_layer_discriminator.9} parent=0 // pred_check
    _
  $region7: #{n_layer_discriminator.9} parent=0 // pred_check_branch
    %13 = sbr.rel (0) target = $region9
  $region8: #{n_layer_discriminator.9} parent=0 // pred_region
    _
  $region9: #{n_layer_discriminator.9} parent=0 // pred_fallthru
    _
  // Predicated region
  $region10: #{n_layer_discriminator.9} parent=0 // pred_check
    _
  $region11: #{n_layer_discriminator.9} parent=0 // pred_check_branch
    %15 = sbr.rel (0) target = $region13
  $region12: #{n_layer_discriminator.9} parent=0 // pred_region
    _
  $region13: #{n_layer_discriminator.9} parent=0 // pred_fallthru
    _
  %v17 = vld [vmem:[%s0] sm:$0xff]
  %v18 = vld [vmem:[%s0 + $0x8] sm:$0xff]
  %v19 = vld [vmem:[%s0 + $0x10] sm:$0xff]
  %v20 = vld [vmem:[%s0 + $0x18] sm:$0xff]
  %v21 = vld [vmem:[%s0 + $0x20] sm:$0xff]
  %v22 = vld [vmem:[%s0 + $0x28] sm:$0xff]
  %v23 = vld [vmem:[%s0 + $0x30] sm:$0xff]
  %v24 = vld [vmem:[%s0 + $0x38] sm:$0xff]
  %v25 = vld [vmem:[%s0 + $0x40] sm:$0xff]
  %v26 = vld [vmem:[%s0 + $0x48] sm:$0xff]
  %v27 = vld [vmem:[%s0 + $0x50] sm:$0xff]
  %v28 = vld [vmem:[%s0 + $0x58] sm:$0xff]
  %v29 = vld [vmem:[%s0 + $0x60] sm:$0xff]
  %v30 = vld [vmem:[%s0 + $0x68] sm:$0xff]
  %v31 = vld [vmem:[%s0 + $0x70] sm:$0xff]
  %v32 = vld [vmem:[%s0 + $0x78] sm:$0xff]
  %v33 = vld [vmem:[%s0 + $0x80] sm:$0xff]
  %v34 = vld [vmem:[%s0 + $0x88] sm:$0xff]
  %v35 = vld [vmem:[%s0 + $0x90] sm:$0xff]
  %v36 = vld [vmem:[%s0 + $0x98] sm:$0xff]
  %v37 = vld [vmem:[%s0 + $0xa0] sm:$0xff]
  %v38 = vld [vmem:[%s0 + $0xa8] sm:$0xff]
  %v39 = vld [vmem:[%s0 + $0xb0] sm:$0xff]
  %v40 = vld [vmem:[%s0 + $0xb8] sm:$0xff]
  %v41 = vld [vmem:[%s0 + $0xc0] sm:$0xff]
  %v42 = vld [vmem:[%s0 + $0xc8] sm:$0xff]
  %v43 = vld [vmem:[%s0 + $0xd0] sm:$0xff]
  %v44 = vld [vmem:[%s0 + $0xd8] sm:$0xff]
  %v45 = vld [vmem:[%s0 + $0xe0] sm:$0xff]
  %v46 = vld [vmem:[%s0 + $0xe8] sm:$0xff]
  %v47 = vld [vmem:[%s0 + $0xf0] sm:$0xff]
  %v48 = vld [vmem:[%s0 + $0xf8] sm:$0xff]
  %v49 = vld [vmem:[%s1] sm:$0xf]
  %v50 = vld [vmem:[%s1 + $0x4] sm:$0xf]
  %v51 = vld [vmem:[%s1 + $0x8] sm:$0xf]
  %v52 = vld [vmem:[%s1 + $0xc] sm:$0xf]
  %v53 = vld [vmem:[%s1 + $0x10] sm:$0xf]
  %v54 = vld [vmem:[%s1 + $0x14] sm:$0xf]
  %v55 = vld [vmem:[%s1 + $0x18] sm:$0xf]
  %v56 = vld [vmem:[%s1 + $0x1c] sm:$0xf]
  %v57 = vld [vmem:[%s1 + $0x20] sm:$0xf]
  %v58 = vld [vmem:[%s1 + $0x24] sm:$0xf]
  %v59 = vld [vmem:[%s1 + $0x28] sm:$0xf]
  %v60 = vld [vmem:[%s1 + $0x2c] sm:$0xf]
  %v61 = vld [vmem:[%s1 + $0x30] sm:$0xf]
  %v62 = vld [vmem:[%s1 + $0x34] sm:$0xf]
  %v63 = vld [vmem:[%s1 + $0x38] sm:$0xf]
  %v64 = vld [vmem:[%s1 + $0x3c] sm:$0xf]
  %v65 = vld [vmem:[%s1 + $0x40] sm:$0xf]
  %v66 = vld [vmem:[%s1 + $0x44] sm:$0xf]
  %v67 = vld [vmem:[%s1 + $0x48] sm:$0xf]
  %v68 = vld [vmem:[%s1 + $0x4c] sm:$0xf]
  %v69 = vld [vmem:[%s1 + $0x50] sm:$0xf]
  %v70 = vld [vmem:[%s1 + $0x54] sm:$0xf]
  %v71 = vld [vmem:[%s1 + $0x58] sm:$0xf]
  %v72 = vld [vmem:[%s1 + $0x5c] sm:$0xf]
  %v73 = vld [vmem:[%s1 + $0x60] sm:$0xf]
  %v74 = vld [vmem:[%s1 + $0x64] sm:$0xf]
  %v75 = vld [vmem:[%s1 + $0x68] sm:$0xf]
  %v76 = vld [vmem:[%s1 + $0x6c] sm:$0xf]
  %v77 = vld [vmem:[%s1 + $0x70] sm:$0xf]
  %v78 = vld [vmem:[%s1 + $0x74] sm:$0xf]
  %v79 = vld [vmem:[%s1 + $0x78] sm:$0xf]
  %v80 = vld [vmem:[%s1 + $0x7c] sm:$0xf]
  %v81 = vld [vmem:[%s1 + $0x80] sm:$0xf]
  %v82 = vld [vmem:[%s1 + $0x84] sm:$0xf]
  %v83 = vld [vmem:[%s1 + $0x88] sm:$0xf]
  %v84 = vld [vmem:[%s1 + $0x8c] sm:$0xf]
  %v85 = vld [vmem:[%s1 + $0x90] sm:$0xf]
  %v86 = vld [vmem:[%s1 + $0x94] sm:$0xf]
  %v87 = vld [vmem:[%s1 + $0x98] sm:$0xf]
  %v88 = vld [vmem:[%s1 + $0x9c] sm:$0xf]
  %v89 = vld [vmem:[%s1 + $0xa0] sm:$0xf]
  %v90 = vld [vmem:[%s1 + $0xa4] sm:$0xf]
  %v91 = vld [vmem:[%s1 + $0xa8] sm:$0xf]
  %v92 = vld [vmem:[%s1 + $0xac] sm:$0xf]
  %v93 = vld [vmem:[%s1 + $0xb0] sm:$0xf]
  %v94 = vld [vmem:[%s1 + $0xb4] sm:$0xf]
  %v95 = vld [vmem:[%s1 + $0xb8] sm:$0xf]
  %v96 = vld [vmem:[%s1 + $0xbc] sm:$0xf]
  %v97 = vld [vmem:[%s1 + $0xc0] sm:$0xf]
  %v98 = vld [vmem:[%s1 + $0xc4] sm:$0xf]
  %v99 = vld [vmem:[%s1 + $0xc8] sm:$0xf]
  %v100 = vld [vmem:[%s1 + $0xcc] sm:$0xf]
  %v101 = vld [vmem:[%s1 + $0xd0] sm:$0xf]
  %v102 = vld [vmem:[%s1 + $0xd4] sm:$0xf]
  %v103 = vld [vmem:[%s1 + $0xd8] sm:$0xf]
  %v104 = vld [vmem:[%s1 + $0xdc] sm:$0xf]
  %v105 = vld [vmem:[%s1 + $0xe0] sm:$0xf]
  %v106 = vld [vmem:[%s1 + $0xe4] sm:$0xf]
  %v107 = vld [vmem:[%s1 + $0xe8] sm:$0xf]
  %v108 = vld [vmem:[%s1 + $0xec] sm:$0xf]
  %v109 = vld [vmem:[%s1 + $0xf0] sm:$0xf]
  %v110 = vld [vmem:[%s1 + $0xf4] sm:$0xf]
  %v111 = vld [vmem:[%s1 + $0xf8] sm:$0xf]
  %v112 = vld [vmem:[%s1 + $0xfc] sm:$0xf]
  %v113 = vld [vmem:[%s1 + $0x100] sm:$0xf]
  %v114 = vld [vmem:[%s1 + $0x104] sm:$0xf]
  %v115 = vld [vmem:[%s1 + $0x108] sm:$0xf]
  %v116 = vld [vmem:[%s1 + $0x10c] sm:$0xf]
  %v117 = vld [vmem:[%s1 + $0x110] sm:$0xf]
  %v118 = vld [vmem:[%s1 + $0x114] sm:$0xf]
  %v119 = vld [vmem:[%s1 + $0x118] sm:$0xf]
  %v120 = vld [vmem:[%s1 + $0x11c] sm:$0xf]
  %v121 = vld [vmem:[%s1 + $0x120] sm:$0xf]
  %v122 = vld [vmem:[%s1 + $0x124] sm:$0xf]
  %v123 = vld [vmem:[%s1 + $0x128] sm:$0xf]
  %v124 = vld [vmem:[%s1 + $0x12c] sm:$0xf]
  %v125 = vld [vmem:[%s1 + $0x130] sm:$0xf]
  %v126 = vld [vmem:[%s1 + $0x134] sm:$0xf]
  %v127 = vld [vmem:[%s1 + $0x138] sm:$0xf]
  %v128 = vld [vmem:[%s1 + $0x13c] sm:$0xf]
  %v129 = vld [vmem:[%s1 + $0x140] sm:$0xf]
  %v130 = vld [vmem:[%s1 + $0x144] sm:$0xf]
  %v131 = vld [vmem:[%s1 + $0x148] sm:$0xf]
  %v132 = vld [vmem:[%s1 + $0x14c] sm:$0xf]
  %v133 = vld [vmem:[%s1 + $0x150] sm:$0xf]
  %v134 = vld [vmem:[%s1 + $0x154] sm:$0xf]
  %v135 = vld [vmem:[%s1 + $0x158] sm:$0xf]
  %v136 = vld [vmem:[%s1 + $0x15c] sm:$0xf]
  %v137 = vld [vmem:[%s1 + $0x160] sm:$0xf]
  %v138 = vld [vmem:[%s1 + $0x164] sm:$0xf]
  %v139 = vld [vmem:[%s1 + $0x168] sm:$0xf]
  %v140 = vld [vmem:[%s1 + $0x16c] sm:$0xf]
  %v141 = vld [vmem:[%s1 + $0x170] sm:$0xf]
  %v142 = vld [vmem:[%s1 + $0x174] sm:$0xf]
  %v143 = vld [vmem:[%s1 + $0x178] sm:$0xf]
  %v144 = vld [vmem:[%s1 + $0x17c] sm:$0xf]
  %v145 = vld [vmem:[%s1 + $0x180] sm:$0xf]
  %v146 = vld [vmem:[%s1 + $0x184] sm:$0xf]
  %v147 = vld [vmem:[%s1 + $0x188] sm:$0xf]
  %v148 = vld [vmem:[%s1 + $0x18c] sm:$0xf]
  %v149 = vld [vmem:[%s1 + $0x190] sm:$0xf]
  %v150 = vld [vmem:[%s1 + $0x194] sm:$0xf]
  %v151 = vld [vmem:[%s1 + $0x198] sm:$0xf]
  %v152 = vld [vmem:[%s1 + $0x19c] sm:$0xf]
  %v153 = vld [vmem:[%s1 + $0x1a0] sm:$0xf]
  %v154 = vld [vmem:[%s1 + $0x1a4] sm:$0xf]
  %v155 = vld [vmem:[%s1 + $0x1a8] sm:$0xf]
  %v156 = vld [vmem:[%s1 + $0x1ac] sm:$0xf]
  %v157 = vld [vmem:[%s1 + $0x1b0] sm:$0xf]
  %v158 = vld [vmem:[%s1 + $0x1b4] sm:$0xf]
  %v159 = vld [vmem:[%s1 + $0x1b8] sm:$0xf]
  %v160 = vld [vmem:[%s1 + $0x1bc] sm:$0xf]
  %v161 = vld [vmem:[%s1 + $0x1c0] sm:$0xf]
  %v162 = vld [vmem:[%s1 + $0x1c4] sm:$0xf]
  %v163 = vld [vmem:[%s1 + $0x1c8] sm:$0xf]
  %v164 = vld [vmem:[%s1 + $0x1cc] sm:$0xf]
  %v165 = vld [vmem:[%s1 + $0x1d0] sm:$0xf]
  %v166 = vld [vmem:[%s1 + $0x1d4] sm:$0xf]
  %v167 = vld [vmem:[%s1 + $0x1d8] sm:$0xf]
  %v168 = vld [vmem:[%s1 + $0x1dc] sm:$0xf]
  %v169 = vld [vmem:[%s1 + $0x1e0] sm:$0xf]
  %v170 = vld [vmem:[%s1 + $0x1e4] sm:$0xf]
  %v171 = vld [vmem:[%s1 + $0x1e8] sm:$0xf]
  %v172 = vld [vmem:[%s1 + $0x1ec] sm:$0xf]
  %v173 = vld [vmem:[%s1 + $0x1f0] sm:$0xf]
  %v174 = vld [vmem:[%s1 + $0x1f4] sm:$0xf]
  %v175 = vld [vmem:[%s1 + $0x1f8] sm:$0xf]
  %v176 = vld [vmem:[%s1 + $0x1fc] sm:$0xf]
  %v177 = vld [vmem:[%s1 + $0x200] sm:$0xf]
  %v178 = vld [vmem:[%s1 + $0x204] sm:$0xf]
  %v179 = vld [vmem:[%s1 + $0x208] sm:$0xf]
  %v180 = vld [vmem:[%s1 + $0x20c] sm:$0xf]
  %v181 = vld [vmem:[%s1 + $0x210] sm:$0xf]
  %v182 = vld [vmem:[%s1 + $0x214] sm:$0xf]
  %v183 = vld [vmem:[%s1 + $0x218] sm:$0xf]
  %v184 = vld [vmem:[%s1 + $0x21c] sm:$0xf]
  %v185 = vld [vmem:[%s1 + $0x220] sm:$0xf]
  %v186 = vld [vmem:[%s1 + $0x224] sm:$0xf]
  %v187 = vld [vmem:[%s1 + $0x228] sm:$0xf]
  %v188 = vld [vmem:[%s1 + $0x22c] sm:$0xf]
  %v189 = vld [vmem:[%s1 + $0x230] sm:$0xf]
  %v190 = vld [vmem:[%s1 + $0x234] sm:$0xf]
  %v191 = vld [vmem:[%s1 + $0x238] sm:$0xf]
  %v192 = vld [vmem:[%s1 + $0x23c] sm:$0xf]
  %v193 = vld [vmem:[%s1 + $0x240] sm:$0xf]
  %v194 = vld [vmem:[%s1 + $0x244] sm:$0xf]
  %v195 = vld [vmem:[%s1 + $0x248] sm:$0xf]
  %v196 = vld [vmem:[%s1 + $0x24c] sm:$0xf]
  %v197 = vld [vmem:[%s1 + $0x250] sm:$0xf]
  %v198 = vld [vmem:[%s1 + $0x254] sm:$0xf]
  %v199 = vld [vmem:[%s1 + $0x258] sm:$0xf]
  %v200 = vld [vmem:[%s1 + $0x25c] sm:$0xf]
  %v201 = vld [vmem:[%s1 + $0x260] sm:$0xf]
  %v202 = vld [vmem:[%s1 + $0x264] sm:$0xf]
  %v203 = vld [vmem:[%s1 + $0x268] sm:$0xf]
  %v204 = vld [vmem:[%s1 + $0x26c] sm:$0xf]
  %v205 = vld [vmem:[%s1 + $0x270] sm:$0xf]
  %v206 = vld [vmem:[%s1 + $0x274] sm:$0xf]
  %v207 = vld [vmem:[%s1 + $0x278] sm:$0xf]
  %v208 = vld [vmem:[%s1 + $0x27c] sm:$0xf]
  %v209 = vld [vmem:[%s1 + $0x280] sm:$0xf]
  %v210 = vld [vmem:[%s1 + $0x284] sm:$0xf]
  %v211 = vld [vmem:[%s1 + $0x288] sm:$0xf]
  %v212 = vld [vmem:[%s1 + $0x28c] sm:$0xf]
  %v213 = vld [vmem:[%s1 + $0x290] sm:$0xf]
  %v214 = vld [vmem:[%s1 + $0x294] sm:$0xf]
  %v215 = vld [vmem:[%s1 + $0x298] sm:$0xf]
  %v216 = vld [vmem:[%s1 + $0x29c] sm:$0xf]
  %v217 = vld [vmem:[%s1 + $0x2a0] sm:$0xf]
  %v218 = vld [vmem:[%s1 + $0x2a4] sm:$0xf]
  %v219 = vld [vmem:[%s1 + $0x2a8] sm:$0xf]
  %v220 = vld [vmem:[%s1 + $0x2ac] sm:$0xf]
  %v221 = vld [vmem:[%s1 + $0x2b0] sm:$0xf]
  %v222 = vld [vmem:[%s1 + $0x2b4] sm:$0xf]
  %v223 = vld [vmem:[%s1 + $0x2b8] sm:$0xf]
  %v224 = vld [vmem:[%s1 + $0x2bc] sm:$0xf]
  %v225 = vld [vmem:[%s1 + $0x2c0] sm:$0xf]
  %v226 = vld [vmem:[%s1 + $0x2c4] sm:$0xf]
  %v227 = vld [vmem:[%s1 + $0x2c8] sm:$0xf]
  %v228 = vld [vmem:[%s1 + $0x2cc] sm:$0xf]
  %v229 = vld [vmem:[%s1 + $0x2d0] sm:$0xf]
  %v230 = vld [vmem:[%s1 + $0x2d4] sm:$0xf]
  %v231 = vld [vmem:[%s1 + $0x2d8] sm:$0xf]
  %v232 = vld [vmem:[%s1 + $0x2dc] sm:$0xf]
  %v233 = vld [vmem:[%s1 + $0x2e0] sm:$0xf]
  %v234 = vld [vmem:[%s1 + $0x2e4] sm:$0xf]
  %v235 = vld [vmem:[%s1 + $0x2e8] sm:$0xf]
  %v236 = vld [vmem:[%s1 + $0x2ec] sm:$0xf]
  %v237 = vld [vmem:[%s1 + $0x2f0] sm:$0xf]
  %v238 = vld [vmem:[%s1 + $0x2f4] sm:$0xf]
  %v239 = vld [vmem:[%s1 + $0x2f8] sm:$0xf]
  %v240 = vld [vmem:[%s1 + $0x2fc] sm:$0xf]
  %v241 = vld [vmem:[%s1 + $0x300] sm:$0xf]
  %v242 = vld [vmem:[%s1 + $0x304] sm:$0xf]
  %v243 = vld [vmem:[%s1 + $0x308] sm:$0xf]
  %v244 = vld [vmem:[%s1 + $0x30c] sm:$0xf]
  %v245 = vld [vmem:[%s1 + $0x310] sm:$0xf]
  %v246 = vld [vmem:[%s1 + $0x314] sm:$0xf]
  %v247 = vld [vmem:[%s1 + $0x318] sm:$0xf]
  %v248 = vld [vmem:[%s1 + $0x31c] sm:$0xf]
  %v249 = vld [vmem:[%s1 + $0x320] sm:$0xf]
  %v250 = vld [vmem:[%s1 + $0x324] sm:$0xf]
  %v251 = vld [vmem:[%s1 + $0x328] sm:$0xf]
  %v252 = vld [vmem:[%s1 + $0x32c] sm:$0xf]
  %v253 = vld [vmem:[%s1 + $0x330] sm:$0xf]
  %v254 = vld [vmem:[%s1 + $0x334] sm:$0xf]
  %v255 = vld [vmem:[%s1 + $0x338] sm:$0xf]
  %v256 = vld [vmem:[%s1 + $0x33c] sm:$0xf]
  %v257 = vld [vmem:[%s1 + $0x340] sm:$0xf]
  %v258 = vld [vmem:[%s1 + $0x344] sm:$0xf]
  %v259 = vld [vmem:[%s1 + $0x348] sm:$0xf]
  %v260 = vld [vmem:[%s1 + $0x34c] sm:$0xf]
  %v261 = vld [vmem:[%s1 + $0x350] sm:$0xf]
  %v262 = vld [vmem:[%s1 + $0x354] sm:$0xf]
  %v263 = vld [vmem:[%s1 + $0x358] sm:$0xf]
  %v264 = vld [vmem:[%s1 + $0x35c] sm:$0xf]
  %v265 = vld [vmem:[%s1 + $0x360] sm:$0xf]
  %v266 = vld [vmem:[%s1 + $0x364] sm:$0xf]
  %v267 = vld [vmem:[%s1 + $0x368] sm:$0xf]
  %v268 = vld [vmem:[%s1 + $0x36c] sm:$0xf]
  %v269 = vld [vmem:[%s1 + $0x370] sm:$0xf]
  %v270 = vld [vmem:[%s1 + $0x374] sm:$0xf]
  %v271 = vld [vmem:[%s1 + $0x378] sm:$0xf]
  %v272 = vld [vmem:[%s1 + $0x37c] sm:$0xf]
  %v273 = vld [vmem:[%s1 + $0x380] sm:$0xf]
  %v274 = vld [vmem:[%s1 + $0x384] sm:$0xf]
  %v275 = vld [vmem:[%s1 + $0x388] sm:$0xf]
  %v276 = vld [vmem:[%s1 + $0x38c] sm:$0xf]
  %v277 = vld [vmem:[%s1 + $0x390] sm:$0xf]
  %v278 = vld [vmem:[%s1 + $0x394] sm:$0xf]
  %v279 = vld [vmem:[%s1 + $0x398] sm:$0xf]
  %v280 = vld [vmem:[%s1 + $0x39c] sm:$0xf]
  %v281 = vld [vmem:[%s1 + $0x3a0] sm:$0xf]
  %v282 = vld [vmem:[%s1 + $0x3a4] sm:$0xf]
  %v283 = vld [vmem:[%s1 + $0x3a8] sm:$0xf]
  %v284 = vld [vmem:[%s1 + $0x3ac] sm:$0xf]
  %v285 = vld [vmem:[%s1 + $0x3b0] sm:$0xf]
  %v286 = vld [vmem:[%s1 + $0x3b4] sm:$0xf]
  %v287 = vld [vmem:[%s1 + $0x3b8] sm:$0xf]
  %v288 = vld [vmem:[%s1 + $0x3bc] sm:$0xf]
  %v289 = vld [vmem:[%s1 + $0x3c0] sm:$0xf]
  %v290 = vld [vmem:[%s1 + $0x3c4] sm:$0xf]
  %v291 = vld [vmem:[%s1 + $0x3c8] sm:$0xf]
  %v292 = vld [vmem:[%s1 + $0x3cc] sm:$0xf]
  %v293 = vld [vmem:[%s1 + $0x3d0] sm:$0xf]
  %v294 = vld [vmem:[%s1 + $0x3d4] sm:$0xf]
  %v295 = vld [vmem:[%s1 + $0x3d8] sm:$0xf]
  %v296 = vld [vmem:[%s1 + $0x3dc] sm:$0xf]
  %v297 = vld [vmem:[%s1 + $0x3e0] sm:$0xf]
  %v298 = vld [vmem:[%s1 + $0x3e4] sm:$0xf]
  %v299 = vld [vmem:[%s1 + $0x3e8] sm:$0xf]
  %v300 = vld [vmem:[%s1 + $0x3ec] sm:$0xf]
  %v301 = vld [vmem:[%s1 + $0x3f0] sm:$0xf]
  %v302 = vld [vmem:[%s1 + $0x3f4] sm:$0xf]
  %v303 = vld [vmem:[%s1 + $0x3f8] sm:$0xf]
  %v304 = vld [vmem:[%s1 + $0x3fc] sm:$0xf]
  %v305 = vld [vmem:[%s2] sm:$0x1]
  %v307 = vlaneseq
  %v308 = vshrl.u32 %v307, 7
  %v309 = vsub.s32 0, %v308
  %v310 = vrot.slane %v305, %v309
  %v344 = vunpack.c.l.b16 %v17
  %v345 = vunpack.c.h.b16 %v17
  %v346 = vunpack.c.l.b16 %v18
  %v347 = vunpack.c.h.b16 %v18
  %v348 = vunpack.c.l.b16 %v19
  %v349 = vunpack.c.h.b16 %v19
  %v350 = vunpack.c.l.b16 %v20
  %v351 = vunpack.c.h.b16 %v20
  %v352 = vunpack.c.l.b16 %v21
  %v353 = vunpack.c.h.b16 %v21
  %v354 = vunpack.c.l.b16 %v22
  %v355 = vunpack.c.h.b16 %v22
  %v356 = vunpack.c.l.b16 %v23
  %v357 = vunpack.c.h.b16 %v23
  %v358 = vunpack.c.l.b16 %v24
  %v359 = vunpack.c.h.b16 %v24
  %v360 = vunpack.c.l.b16 %v25
  %v361 = vunpack.c.h.b16 %v25
  %v362 = vunpack.c.l.b16 %v26
  %v363 = vunpack.c.h.b16 %v26
  %v364 = vunpack.c.l.b16 %v27
  %v365 = vunpack.c.h.b16 %v27
  %v366 = vunpack.c.l.b16 %v28
  %v367 = vunpack.c.h.b16 %v28
  %v368 = vunpack.c.l.b16 %v29
  %v369 = vunpack.c.h.b16 %v29
  %v370 = vunpack.c.l.b16 %v30
  %v371 = vunpack.c.h.b16 %v30
  %v372 = vunpack.c.l.b16 %v31
  %v373 = vunpack.c.h.b16 %v31
  %v374 = vunpack.c.l.b16 %v32
  %v375 = vunpack.c.h.b16 %v32
  %v376 = vunpack.c.l.b16 %v33
  %v377 = vunpack.c.h.b16 %v33
  %v378 = vunpack.c.l.b16 %v34
  %v379 = vunpack.c.h.b16 %v34
  %v380 = vunpack.c.l.b16 %v35
  %v381 = vunpack.c.h.b16 %v35
  %v382 = vunpack.c.l.b16 %v36
  %v383 = vunpack.c.h.b16 %v36
  %v384 = vunpack.c.l.b16 %v37
  %v385 = vunpack.c.h.b16 %v37
  %v386 = vunpack.c.l.b16 %v38
  %v387 = vunpack.c.h.b16 %v38
  %v388 = vunpack.c.l.b16 %v39
  %v389 = vunpack.c.h.b16 %v39
  %v390 = vunpack.c.l.b16 %v40
  %v391 = vunpack.c.h.b16 %v40
  %v392 = vunpack.c.l.b16 %v41
  %v393 = vunpack.c.h.b16 %v41
  %v394 = vunpack.c.l.b16 %v42
  %v395 = vunpack.c.h.b16 %v42
  %v396 = vunpack.c.l.b16 %v43
  %v397 = vunpack.c.h.b16 %v43
  %v398 = vunpack.c.l.b16 %v44
  %v399 = vunpack.c.h.b16 %v44
  %v400 = vunpack.c.l.b16 %v45
  %v401 = vunpack.c.h.b16 %v45
  %v402 = vunpack.c.l.b16 %v46
  %v403 = vunpack.c.h.b16 %v46
  %v404 = vunpack.c.l.b16 %v47
  %v405 = vunpack.c.h.b16 %v47
  %v406 = vunpack.c.l.b16 %v48
  %v407 = vunpack.c.h.b16 %v48
  %v408 = vpack.c.b16 %v360, %v344
  %v409 = vpack.c.b16 %v361, %v345
  %v410 = vpack.c.b16 %v362, %v346
  %v411 = vpack.c.b16 %v363, %v347
  %v412 = vpack.c.b16 %v364, %v348
  %v413 = vpack.c.b16 %v365, %v349
  %v414 = vpack.c.b16 %v366, %v350
  %v415 = vpack.c.b16 %v367, %v351
  %v416 = vpack.c.b16 %v368, %v352
  %v417 = vpack.c.b16 %v369, %v353
  %v418 = vpack.c.b16 %v370, %v354
  %v419 = vpack.c.b16 %v371, %v355
  %v420 = vpack.c.b16 %v372, %v356
  %v421 = vpack.c.b16 %v373, %v357
  %v422 = vpack.c.b16 %v374, %v358
  %v423 = vpack.c.b16 %v375, %v359
  %v424 = vpack.c.b16 %v392, %v376
  %v425 = vpack.c.b16 %v393, %v377
  %v426 = vpack.c.b16 %v394, %v378
  %v427 = vpack.c.b16 %v395, %v379
  %v428 = vpack.c.b16 %v396, %v380
  %v429 = vpack.c.b16 %v397, %v381
  %v430 = vpack.c.b16 %v398, %v382
  %v431 = vpack.c.b16 %v399, %v383
  %v432 = vpack.c.b16 %v400, %v384
  %v433 = vpack.c.b16 %v401, %v385
  %v434 = vpack.c.b16 %v402, %v386
  %v435 = vpack.c.b16 %v403, %v387
  %v436 = vpack.c.b16 %v404, %v388
  %v437 = vpack.c.b16 %v405, %v389
  %v438 = vpack.c.b16 %v406, %v390
  %v439 = vpack.c.b16 %v407, %v391
  %v728 = vunpack.c.l.b16 %v49
  %v729 = vunpack.c.l.b16 %v50
  %v730 = vunpack.c.l.b16 %v51
  %v731 = vunpack.c.l.b16 %v52
  %v732 = vunpack.c.l.b16 %v53
  %v733 = vunpack.c.l.b16 %v54
  %v734 = vunpack.c.l.b16 %v55
  %v735 = vunpack.c.l.b16 %v56
  %v736 = vunpack.c.l.b16 %v57
  %v737 = vunpack.c.l.b16 %v58
  %v738 = vunpack.c.l.b16 %v59
  %v739 = vunpack.c.l.b16 %v60
  %v740 = vunpack.c.l.b16 %v61
  %v741 = vunpack.c.l.b16 %v62
  %v742 = vunpack.c.l.b16 %v63
  %v743 = vunpack.c.l.b16 %v64
  %v744 = vunpack.c.l.b16 %v65
  %v745 = vunpack.c.l.b16 %v66
  %v746 = vunpack.c.l.b16 %v67
  %v747 = vunpack.c.l.b16 %v68
  %v748 = vunpack.c.l.b16 %v69
  %v749 = vunpack.c.l.b16 %v70
  %v750 = vunpack.c.l.b16 %v71
  %v751 = vunpack.c.l.b16 %v72
  %v752 = vunpack.c.l.b16 %v73
  %v753 = vunpack.c.l.b16 %v74
  %v754 = vunpack.c.l.b16 %v75
  %v755 = vunpack.c.l.b16 %v76
  %v756 = vunpack.c.l.b16 %v77
  %v757 = vunpack.c.l.b16 %v78
  %v758 = vunpack.c.l.b16 %v79
  %v759 = vunpack.c.l.b16 %v80
  %v760 = vunpack.c.l.b16 %v81
  %v761 = vunpack.c.l.b16 %v82
  %v762 = vunpack.c.l.b16 %v83
  %v763 = vunpack.c.l.b16 %v84
  %v764 = vunpack.c.l.b16 %v85
  %v765 = vunpack.c.l.b16 %v86
  %v766 = vunpack.c.l.b16 %v87
  %v767 = vunpack.c.l.b16 %v88
  %v768 = vunpack.c.l.b16 %v89
  %v769 = vunpack.c.l.b16 %v90
  %v770 = vunpack.c.l.b16 %v91
  %v771 = vunpack.c.l.b16 %v92
  %v772 = vunpack.c.l.b16 %v93
  %v773 = vunpack.c.l.b16 %v94
  %v774 = vunpack.c.l.b16 %v95
  %v775 = vunpack.c.l.b16 %v96
  %v776 = vunpack.c.l.b16 %v97
  %v777 = vunpack.c.l.b16 %v98
  %v778 = vunpack.c.l.b16 %v99
  %v779 = vunpack.c.l.b16 %v100
  %v780 = vunpack.c.l.b16 %v101
  %v781 = vunpack.c.l.b16 %v102
  %v782 = vunpack.c.l.b16 %v103
  %v783 = vunpack.c.l.b16 %v104
  %v784 = vunpack.c.l.b16 %v105
  %v785 = vunpack.c.l.b16 %v106
  %v786 = vunpack.c.l.b16 %v107
  %v787 = vunpack.c.l.b16 %v108
  %v788 = vunpack.c.l.b16 %v109
  %v789 = vunpack.c.l.b16 %v110
  %v790 = vunpack.c.l.b16 %v111
  %v791 = vunpack.c.l.b16 %v112
  %v792 = vunpack.c.l.b16 %v113
  %v793 = vunpack.c.l.b16 %v114
  %v794 = vunpack.c.l.b16 %v115
  %v795 = vunpack.c.l.b16 %v116
  %v796 = vunpack.c.l.b16 %v117
  %v797 = vunpack.c.l.b16 %v118
  %v798 = vunpack.c.l.b16 %v119
  %v799 = vunpack.c.l.b16 %v120
  %v800 = vunpack.c.l.b16 %v121
  %v801 = vunpack.c.l.b16 %v122
  %v802 = vunpack.c.l.b16 %v123
  %v803 = vunpack.c.l.b16 %v124
  %v804 = vunpack.c.l.b16 %v125
  %v805 = vunpack.c.l.b16 %v126
  %v806 = vunpack.c.l.b16 %v127
  %v807 = vunpack.c.l.b16 %v128
  %v808 = vunpack.c.l.b16 %v129
  %v809 = vunpack.c.l.b16 %v130
  %v810 = vunpack.c.l.b16 %v131
  %v811 = vunpack.c.l.b16 %v132
  %v812 = vunpack.c.l.b16 %v133
  %v813 = vunpack.c.l.b16 %v134
  %v814 = vunpack.c.l.b16 %v135
  %v815 = vunpack.c.l.b16 %v136
  %v816 = vunpack.c.l.b16 %v137
  %v817 = vunpack.c.l.b16 %v138
  %v818 = vunpack.c.l.b16 %v139
  %v819 = vunpack.c.l.b16 %v140
  %v820 = vunpack.c.l.b16 %v141
  %v821 = vunpack.c.l.b16 %v142
  %v822 = vunpack.c.l.b16 %v143
  %v823 = vunpack.c.l.b16 %v144
  %v824 = vunpack.c.l.b16 %v145
  %v825 = vunpack.c.l.b16 %v146
  %v826 = vunpack.c.l.b16 %v147
  %v827 = vunpack.c.l.b16 %v148
  %v828 = vunpack.c.l.b16 %v149
  %v829 = vunpack.c.l.b16 %v150
  %v830 = vunpack.c.l.b16 %v151
  %v831 = vunpack.c.l.b16 %v152
  %v832 = vunpack.c.l.b16 %v153
  %v833 = vunpack.c.l.b16 %v154
  %v834 = vunpack.c.l.b16 %v155
  %v835 = vunpack.c.l.b16 %v156
  %v836 = vunpack.c.l.b16 %v157
  %v837 = vunpack.c.l.b16 %v158
  %v838 = vunpack.c.l.b16 %v159
  %v839 = vunpack.c.l.b16 %v160
  %v840 = vunpack.c.l.b16 %v161
  %v841 = vunpack.c.l.b16 %v162
  %v842 = vunpack.c.l.b16 %v163
  %v843 = vunpack.c.l.b16 %v164
  %v844 = vunpack.c.l.b16 %v165
  %v845 = vunpack.c.l.b16 %v166
  %v846 = vunpack.c.l.b16 %v167
  %v847 = vunpack.c.l.b16 %v168
  %v848 = vunpack.c.l.b16 %v169
  %v849 = vunpack.c.l.b16 %v170
  %v850 = vunpack.c.l.b16 %v171
  %v851 = vunpack.c.l.b16 %v172
  %v852 = vunpack.c.l.b16 %v173
  %v853 = vunpack.c.l.b16 %v174
  %v854 = vunpack.c.l.b16 %v175
  %v855 = vunpack.c.l.b16 %v176
  %v856 = vunpack.c.l.b16 %v177
  %v857 = vunpack.c.l.b16 %v178
  %v858 = vunpack.c.l.b16 %v179
  %v859 = vunpack.c.l.b16 %v180
  %v860 = vunpack.c.l.b16 %v181
  %v861 = vunpack.c.l.b16 %v182
  %v862 = vunpack.c.l.b16 %v183
  %v863 = vunpack.c.l.b16 %v184
  %v864 = vunpack.c.l.b16 %v185
  %v865 = vunpack.c.l.b16 %v186
  %v866 = vunpack.c.l.b16 %v187
  %v867 = vunpack.c.l.b16 %v188
  %v868 = vunpack.c.l.b16 %v189
  %v869 = vunpack.c.l.b16 %v190
  %v870 = vunpack.c.l.b16 %v191
  %v871 = vunpack.c.l.b16 %v192
  %v872 = vunpack.c.l.b16 %v193
  %v873 = vunpack.c.l.b16 %v194
  %v874 = vunpack.c.l.b16 %v195
  %v875 = vunpack.c.l.b16 %v196
  %v876 = vunpack.c.l.b16 %v197
  %v877 = vunpack.c.l.b16 %v198
  %v878 = vunpack.c.l.b16 %v199
  %v879 = vunpack.c.l.b16 %v200
  %v880 = vunpack.c.l.b16 %v201
  %v881 = vunpack.c.l.b16 %v202
  %v882 = vunpack.c.l.b16 %v203
  %v883 = vunpack.c.l.b16 %v204
  %v884 = vunpack.c.l.b16 %v205
  %v885 = vunpack.c.l.b16 %v206
  %v886 = vunpack.c.l.b16 %v207
  %v887 = vunpack.c.l.b16 %v208
  %v888 = vunpack.c.l.b16 %v209
  %v889 = vunpack.c.l.b16 %v210
  %v890 = vunpack.c.l.b16 %v211
  %v891 = vunpack.c.l.b16 %v212
  %v892 = vunpack.c.l.b16 %v213
  %v893 = vunpack.c.l.b16 %v214
  %v894 = vunpack.c.l.b16 %v215
  %v895 = vunpack.c.l.b16 %v216
  %v896 = vunpack.c.l.b16 %v217
  %v897 = vunpack.c.l.b16 %v218
  %v898 = vunpack.c.l.b16 %v219
  %v899 = vunpack.c.l.b16 %v220
  %v900 = vunpack.c.l.b16 %v221
  %v901 = vunpack.c.l.b16 %v222
  %v902 = vunpack.c.l.b16 %v223
  %v903 = vunpack.c.l.b16 %v224
  %v904 = vunpack.c.l.b16 %v225
  %v905 = vunpack.c.l.b16 %v226
  %v906 = vunpack.c.l.b16 %v227
  %v907 = vunpack.c.l.b16 %v228
  %v908 = vunpack.c.l.b16 %v229
  %v909 = vunpack.c.l.b16 %v230
  %v910 = vunpack.c.l.b16 %v231
  %v911 = vunpack.c.l.b16 %v232
  %v912 = vunpack.c.l.b16 %v233
  %v913 = vunpack.c.l.b16 %v234
  %v914 = vunpack.c.l.b16 %v235
  %v915 = vunpack.c.l.b16 %v236
  %v916 = vunpack.c.l.b16 %v237
  %v917 = vunpack.c.l.b16 %v238
  %v918 = vunpack.c.l.b16 %v239
  %v919 = vunpack.c.l.b16 %v240
  %v920 = vunpack.c.l.b16 %v241
  %v921 = vunpack.c.l.b16 %v242
  %v922 = vunpack.c.l.b16 %v243
  %v923 = vunpack.c.l.b16 %v244
  %v924 = vunpack.c.l.b16 %v245
  %v925 = vunpack.c.l.b16 %v246
  %v926 = vunpack.c.l.b16 %v247
  %v927 = vunpack.c.l.b16 %v248
  %v928 = vunpack.c.l.b16 %v249
  %v929 = vunpack.c.l.b16 %v250
  %v930 = vunpack.c.l.b16 %v251
  %v931 = vunpack.c.l.b16 %v252
  %v932 = vunpack.c.l.b16 %v253
  %v933 = vunpack.c.l.b16 %v254
  %v934 = vunpack.c.l.b16 %v255
  %v935 = vunpack.c.l.b16 %v256
  %v936 = vunpack.c.l.b16 %v257
  %v937 = vunpack.c.l.b16 %v258
  %v938 = vunpack.c.l.b16 %v259
  %v939 = vunpack.c.l.b16 %v260
  %v940 = vunpack.c.l.b16 %v261
  %v941 = vunpack.c.l.b16 %v262
  %v942 = vunpack.c.l.b16 %v263
  %v943 = vunpack.c.l.b16 %v264
  %v944 = vunpack.c.l.b16 %v265
  %v945 = vunpack.c.l.b16 %v266
  %v946 = vunpack.c.l.b16 %v267
  %v947 = vunpack.c.l.b16 %v268
  %v948 = vunpack.c.l.b16 %v269
  %v949 = vunpack.c.l.b16 %v270
  %v950 = vunpack.c.l.b16 %v271
  %v951 = vunpack.c.l.b16 %v272
  %v952 = vunpack.c.l.b16 %v273
  %v953 = vunpack.c.l.b16 %v274
  %v954 = vunpack.c.l.b16 %v275
  %v955 = vunpack.c.l.b16 %v276
  %v956 = vunpack.c.l.b16 %v277
  %v957 = vunpack.c.l.b16 %v278
  %v958 = vunpack.c.l.b16 %v279
  %v959 = vunpack.c.l.b16 %v280
  %v960 = vunpack.c.l.b16 %v281
  %v961 = vunpack.c.l.b16 %v282
  %v962 = vunpack.c.l.b16 %v283
  %v963 = vunpack.c.l.b16 %v284
  %v964 = vunpack.c.l.b16 %v285
  %v965 = vunpack.c.l.b16 %v286
  %v966 = vunpack.c.l.b16 %v287
  %v967 = vunpack.c.l.b16 %v288
  %v968 = vunpack.c.l.b16 %v289
  %v969 = vunpack.c.l.b16 %v290
  %v970 = vunpack.c.l.b16 %v291
  %v971 = vunpack.c.l.b16 %v292
  %v972 = vunpack.c.l.b16 %v293
  %v973 = vunpack.c.l.b16 %v294
  %v974 = vunpack.c.l.b16 %v295
  %v975 = vunpack.c.l.b16 %v296
  %v976 = vunpack.c.l.b16 %v297
  %v977 = vunpack.c.l.b16 %v298
  %v978 = vunpack.c.l.b16 %v299
  %v979 = vunpack.c.l.b16 %v300
  %v980 = vunpack.c.l.b16 %v301
  %v981 = vunpack.c.l.b16 %v302
  %v982 = vunpack.c.l.b16 %v303
  %v983 = vunpack.c.l.b16 %v304
  %v984 = vpack.c.b16 %v729, %v728
  %v985 = vpack.c.b16 %v731, %v730
  %v986 = vpack.c.b16 %v733, %v732
  %v987 = vpack.c.b16 %v735, %v734
  %v988 = vpack.c.b16 %v737, %v736
  %v989 = vpack.c.b16 %v739, %v738
  %v990 = vpack.c.b16 %v741, %v740
  %v991 = vpack.c.b16 %v743, %v742
  %v992 = vpack.c.b16 %v745, %v744
  %v993 = vpack.c.b16 %v747, %v746
  %v994 = vpack.c.b16 %v749, %v748
  %v995 = vpack.c.b16 %v751, %v750
  %v996 = vpack.c.b16 %v753, %v752
  %v997 = vpack.c.b16 %v755, %v754
  %v998 = vpack.c.b16 %v757, %v756
  %v999 = vpack.c.b16 %v759, %v758
  %v1000 = vpack.c.b16 %v761, %v760
  %v1001 = vpack.c.b16 %v763, %v762
  %v1002 = vpack.c.b16 %v765, %v764
  %v1003 = vpack.c.b16 %v767, %v766
  %v1004 = vpack.c.b16 %v769, %v768
  %v1005 = vpack.c.b16 %v771, %v770
  %v1006 = vpack.c.b16 %v773, %v772
  %v1007 = vpack.c.b16 %v775, %v774
  %v1008 = vpack.c.b16 %v777, %v776
  %v1009 = vpack.c.b16 %v779, %v778
  %v1010 = vpack.c.b16 %v781, %v780
  %v1011 = vpack.c.b16 %v783, %v782
  %v1012 = vpack.c.b16 %v785, %v784
  %v1013 = vpack.c.b16 %v787, %v786
  %v1014 = vpack.c.b16 %v789, %v788
  %v1015 = vpack.c.b16 %v791, %v790
  %v1016 = vpack.c.b16 %v793, %v792
  %v1017 = vpack.c.b16 %v795, %v794
  %v1018 = vpack.c.b16 %v797, %v796
  %v1019 = vpack.c.b16 %v799, %v798
  %v1020 = vpack.c.b16 %v801, %v800
  %v1021 = vpack.c.b16 %v803, %v802
  %v1022 = vpack.c.b16 %v805, %v804
  %v1023 = vpack.c.b16 %v807, %v806
  %v1024 = vpack.c.b16 %v809, %v808
  %v1025 = vpack.c.b16 %v811, %v810
  %v1026 = vpack.c.b16 %v813, %v812
  %v1027 = vpack.c.b16 %v815, %v814
  %v1028 = vpack.c.b16 %v817, %v816
  %v1029 = vpack.c.b16 %v819, %v818
  %v1030 = vpack.c.b16 %v821, %v820
  %v1031 = vpack.c.b16 %v823, %v822
  %v1032 = vpack.c.b16 %v825, %v824
  %v1033 = vpack.c.b16 %v827, %v826
  %v1034 = vpack.c.b16 %v829, %v828
  %v1035 = vpack.c.b16 %v831, %v830
  %v1036 = vpack.c.b16 %v833, %v832
  %v1037 = vpack.c.b16 %v835, %v834
  %v1038 = vpack.c.b16 %v837, %v836
  %v1039 = vpack.c.b16 %v839, %v838
  %v1040 = vpack.c.b16 %v841, %v840
  %v1041 = vpack.c.b16 %v843, %v842
  %v1042 = vpack.c.b16 %v845, %v844
  %v1043 = vpack.c.b16 %v847, %v846
  %v1044 = vpack.c.b16 %v849, %v848
  %v1045 = vpack.c.b16 %v851, %v850
  %v1046 = vpack.c.b16 %v853, %v852
  %v1047 = vpack.c.b16 %v855, %v854
  %v1048 = vpack.c.b16 %v857, %v856
  %v1049 = vpack.c.b16 %v859, %v858
  %v1050 = vpack.c.b16 %v861, %v860
  %v1051 = vpack.c.b16 %v863, %v862
  %v1052 = vpack.c.b16 %v865, %v864
  %v1053 = vpack.c.b16 %v867, %v866
  %v1054 = vpack.c.b16 %v869, %v868
  %v1055 = vpack.c.b16 %v871, %v870
  %v1056 = vpack.c.b16 %v873, %v872
  %v1057 = vpack.c.b16 %v875, %v874
  %v1058 = vpack.c.b16 %v877, %v876
  %v1059 = vpack.c.b16 %v879, %v878
  %v1060 = vpack.c.b16 %v881, %v880
  %v1061 = vpack.c.b16 %v883, %v882
  %v1062 = vpack.c.b16 %v885, %v884
  %v1063 = vpack.c.b16 %v887, %v886
  %v1064 = vpack.c.b16 %v889, %v888
  %v1065 = vpack.c.b16 %v891, %v890
  %v1066 = vpack.c.b16 %v893, %v892
  %v1067 = vpack.c.b16 %v895, %v894
  %v1068 = vpack.c.b16 %v897, %v896
  %v1069 = vpack.c.b16 %v899, %v898
  %v1070 = vpack.c.b16 %v901, %v900
  %v1071 = vpack.c.b16 %v903, %v902
  %v1072 = vpack.c.b16 %v905, %v904
  %v1073 = vpack.c.b16 %v907, %v906
  %v1074 = vpack.c.b16 %v909, %v908
  %v1075 = vpack.c.b16 %v911, %v910
  %v1076 = vpack.c.b16 %v913, %v912
  %v1077 = vpack.c.b16 %v915, %v914
  %v1078 = vpack.c.b16 %v917, %v916
  %v1079 = vpack.c.b16 %v919, %v918
  %v1080 = vpack.c.b16 %v921, %v920
  %v1081 = vpack.c.b16 %v923, %v922
  %v1082 = vpack.c.b16 %v925, %v924
  %v1083 = vpack.c.b16 %v927, %v926
  %v1084 = vpack.c.b16 %v929, %v928
  %v1085 = vpack.c.b16 %v931, %v930
  %v1086 = vpack.c.b16 %v933, %v932
  %v1087 = vpack.c.b16 %v935, %v934
  %v1088 = vpack.c.b16 %v937, %v936
  %v1089 = vpack.c.b16 %v939, %v938
  %v1090 = vpack.c.b16 %v941, %v940
  %v1091 = vpack.c.b16 %v943, %v942
  %v1092 = vpack.c.b16 %v945, %v944
  %v1093 = vpack.c.b16 %v947, %v946
  %v1094 = vpack.c.b16 %v949, %v948
  %v1095 = vpack.c.b16 %v951, %v950
  %v1096 = vpack.c.b16 %v953, %v952
  %v1097 = vpack.c.b16 %v955, %v954
  %v1098 = vpack.c.b16 %v957, %v956
  %v1099 = vpack.c.b16 %v959, %v958
  %v1100 = vpack.c.b16 %v961, %v960
  %v1101 = vpack.c.b16 %v963, %v962
  %v1102 = vpack.c.b16 %v965, %v964
  %v1103 = vpack.c.b16 %v967, %v966
  %v1104 = vpack.c.b16 %v969, %v968
  %v1105 = vpack.c.b16 %v971, %v970
  %v1106 = vpack.c.b16 %v973, %v972
  %v1107 = vpack.c.b16 %v975, %v974
  %v1108 = vpack.c.b16 %v977, %v976
  %v1109 = vpack.c.b16 %v979, %v978
  %v1110 = vpack.c.b16 %v981, %v980
  %v1111 = vpack.c.b16 %v983, %v982
  %1240 = vmatprep.subr.bf16.mxu0 0
  %1241 = vmatpush1.bf16.msra.mxu0 %v984
  %1242 = vmatprep.subr.bf16.mxu0 0
  %1243 = vmatpush1.bf16.msra.mxu0 %v985
  %1244 = vmatprep.subr.bf16.mxu0 0
  %1245 = vmatpush1.bf16.msra.mxu0 %v986
  %1246 = vmatprep.subr.bf16.mxu0 0
  %1247 = vmatpush1.bf16.msra.mxu0 %v987
  %1248 = vmatprep.subr.bf16.mxu0 0
  %1249 = vmatpush1.bf16.msra.mxu0 %v988
  %1250 = vmatprep.subr.bf16.mxu0 0
  %1251 = vmatpush1.bf16.msra.mxu0 %v989
  %1252 = vmatprep.subr.bf16.mxu0 0
  %1253 = vmatpush1.bf16.msra.mxu0 %v990
  %1254 = vmatprep.subr.bf16.mxu0 0
  %1255 = vmatpush1.bf16.msra.mxu0 %v991
  %1256 = vmatprep.subr.bf16.mxu0 0
  %1257 = vmatpush1.bf16.msra.mxu0 %v992
  %1258 = vmatprep.subr.bf16.mxu0 0
  %1259 = vmatpush1.bf16.msra.mxu0 %v993
  %1260 = vmatprep.subr.bf16.mxu0 0
  %1261 = vmatpush1.bf16.msra.mxu0 %v994
  %1262 = vmatprep.subr.bf16.mxu0 0
  %1263 = vmatpush1.bf16.msra.mxu0 %v995
  %1264 = vmatprep.subr.bf16.mxu0 0
  %1265 = vmatpush1.bf16.msra.mxu0 %v996
  %1266 = vmatprep.subr.bf16.mxu0 0
  %1267 = vmatpush1.bf16.msra.mxu0 %v997
  %1268 = vmatprep.subr.bf16.mxu0 0
  %1269 = vmatpush1.bf16.msra.mxu0 %v998
  %1270 = vmatprep.subr.bf16.mxu0 0
  %1271 = vmatpush1.bf16.msra.mxu0 %v999
  %1272 = vmatprep.mubr.bf16.mxu0 %v409
  %1273 = vmatmul.mubr.bf16.gmra.mrb[0].mxu0 %v408
  %v1274 = vpop.f32.mrb[0].mxu0
  %v1275 = vadd.f32 %v310, %v1274
  %v1276 = vpop.f32.mrb[0].mxu0
  %v1277 = vpop.f32.mrb[0].mxu0
  %v1278 = vadd.f32 %v310, %v1277
  %v1279 = vpop.f32.mrb[0].mxu0
  %1280 = vmatprep.mubr.bf16.mxu0 %v425
  %1281 = vmatmul.mubr.bf16.gmra.mrb[0].mxu0 %v424
  %v1282 = vpop.f32.mrb[0].mxu0
  %v1283 = vadd.f32 %v310, %v1282
  %v1284 = vpop.f32.mrb[0].mxu0
  %v1285 = vpop.f32.mrb[0].mxu0
  %v1286 = vadd.f32 %v310, %v1285
  %v1287 = vpop.f32.mrb[0].mxu0
  %1288 = vdwg.mxu0
  %1289 = vmatprep.subr.bf16.mxu0 0
  %1290 = vmatpush1.bf16.msra.mxu0 %v1000
  %1291 = vmatprep.subr.bf16.mxu0 0
  %1292 = vmatpush1.bf16.msra.mxu0 %v1001
  %1293 = vmatprep.subr.bf16.mxu0 0
  %1294 = vmatpush1.bf16.msra.mxu0 %v1002
  %1295 = vmatprep.subr.bf16.mxu0 0
  %1296 = vmatpush1.bf16.msra.mxu0 %v1003
  %1297 = vmatprep.subr.bf16.mxu0 0
  %1298 = vmatpush1.bf16.msra.mxu0 %v1004
  %1299 = vmatprep.subr.bf16.mxu0 0
  %1300 = vmatpush1.bf16.msra.mxu0 %v1005
  %1301 = vmatprep.subr.bf16.mxu0 0
  %1302 = vmatpush1.bf16.msra.mxu0 %v1006
  %1303 = vmatprep.subr.bf16.mxu0 0
  %1304 = vmatpush1.bf16.msra.mxu0 %v1007
  %1305 = vmatprep.subr.bf16.mxu0 0
  %1306 = vmatpush1.bf16.msra.mxu0 %v1008
  %1307 = vmatprep.subr.bf16.mxu0 0
  %1308 = vmatpush1.bf16.msra.mxu0 %v1009
  %1309 = vmatprep.subr.bf16.mxu0 0
  %1310 = vmatpush1.bf16.msra.mxu0 %v1010
  %1311 = vmatprep.subr.bf16.mxu0 0
  %1312 = vmatpush1.bf16.msra.mxu0 %v1011
  %1313 = vmatprep.subr.bf16.mxu0 0
  %1314 = vmatpush1.bf16.msra.mxu0 %v1012
  %1315 = vmatprep.subr.bf16.mxu0 0
  %1316 = vmatpush1.bf16.msra.mxu0 %v1013
  %1317 = vmatprep.subr.bf16.mxu0 0
  %1318 = vmatpush1.bf16.msra.mxu0 %v1014
  %1319 = vmatprep.subr.bf16.mxu0 0
  %1320 = vmatpush1.bf16.msra.mxu0 %v1015
  %1321 = vmatprep.mubr.bf16.mxu0 %v411
  %1322 = vmatmul.mubr.bf16.gmra.mrb[0].mxu0 %v410
  %v1323 = vpop.f32.mrb[0].mxu0
  %v1324 = vadd.f32 %v1275, %v1323
  %v1325 = vpop.f32.mrb[0].mxu0
  %v1326 = vpop.f32.mrb[0].mxu0
  %v1327 = vadd.f32 %v1278, %v1326
  %v1328 = vpop.f32.mrb[0].mxu0
  %1329 = vmatprep.mubr.bf16.mxu0 %v427
  %1330 = vmatmul.mubr.bf16.gmra.mrb[0].mxu0 %v426
  %v1331 = vpop.f32.mrb[0].mxu0
  %v1332 = vadd.f32 %v1283, %v1331
  %v1333 = vpop.f32.mrb[0].mxu0
  %v1334 = vpop.f32.mrb[0].mxu0
  %v1335 = vadd.f32 %v1286, %v1334
  %v1336 = vpop.f32.mrb[0].mxu0
  %1337 = vdwg.mxu0
  %1338 = vmatprep.subr.bf16.mxu0 0
  %1339 = vmatpush1.bf16.msra.mxu0 %v1016
  %1340 = vmatprep.subr.bf16.mxu0 0
  %1341 = vmatpush1.bf16.msra.mxu0 %v1017
  %1342 = vmatprep.subr.bf16.mxu0 0
  %1343 = vmatpush1.bf16.msra.mxu0 %v1018
  %1344 = vmatprep.subr.bf16.mxu0 0
  %1345 = vmatpush1.bf16.msra.mxu0 %v1019
  %1346 = vmatprep.subr.bf16.mxu0 0
  %1347 = vmatpush1.bf16.msra.mxu0 %v1020
  %1348 = vmatprep.subr.bf16.mxu0 0
  %1349 = vmatpush1.bf16.msra.mxu0 %v1021
  %1350 = vmatprep.subr.bf16.mxu0 0
  %1351 = vmatpush1.bf16.msra.mxu0 %v1022
  %1352 = vmatprep.subr.bf16.mxu0 0
  %1353 = vmatpush1.bf16.msra.mxu0 %v1023
  %1354 = vmatprep.subr.bf16.mxu0 0
  %1355 = vmatpush1.bf16.msra.mxu0 %v1024
  %1356 = vmatprep.subr.bf16.mxu0 0
  %1357 = vmatpush1.bf16.msra.mxu0 %v1025
  %1358 = vmatprep.subr.bf16.mxu0 0
  %1359 = vmatpush1.bf16.msra.mxu0 %v1026
  %1360 = vmatprep.subr.bf16.mxu0 0
  %1361 = vmatpush1.bf16.msra.mxu0 %v1027
  %1362 = vmatprep.subr.bf16.mxu0 0
  %1363 = vmatpush1.bf16.msra.mxu0 %v1028
  %1364 = vmatprep.subr.bf16.mxu0 0
  %1365 = vmatpush1.bf16.msra.mxu0 %v1029
  %1366 = vmatprep.subr.bf16.mxu0 0
  %1367 = vmatpush1.bf16.msra.mxu0 %v1030
  %1368 = vmatprep.subr.bf16.mxu0 0
  %1369 = vmatpush1.bf16.msra.mxu0 %v1031
  %1370 = vmatprep.mubr.bf16.mxu0 %v413
  %1371 = vmatmul.mubr.bf16.gmra.mrb[0].mxu0 %v412
  %v1372 = vpop.f32.mrb[0].mxu0
  %v1373 = vadd.f32 %v1324, %v1372
  %v1374 = vpop.f32.mrb[0].mxu0
  %v1375 = vpop.f32.mrb[0].mxu0
  %v1376 = vadd.f32 %v1327, %v1375
  %v1377 = vpop.f32.mrb[0].mxu0
  %1378 = vmatprep.mubr.bf16.mxu0 %v429
  %1379 = vmatmul.mubr.bf16.gmra.mrb[0].mxu0 %v428
  %v1380 = vpop.f32.mrb[0].mxu0
  %v1381 = vadd.f32 %v1332, %v1380
  %v1382 = vpop.f32.mrb[0].mxu0
  %v1383 = vpop.f32.mrb[0].mxu0
  %v1384 = vadd.f32 %v1335, %v1383
  %v1385 = vpop.f32.mrb[0].mxu0
  %1386 = vdwg.mxu0
  %1387 = vmatprep.subr.bf16.mxu0 0
  %1388 = vmatpush1.bf16.msra.mxu0 %v1032
  %1389 = vmatprep.subr.bf16.mxu0 0
  %1390 = vmatpush1.bf16.msra.mxu0 %v1033
  %1391 = vmatprep.subr.bf16.mxu0 0
  %1392 = vmatpush1.bf16.msra.mxu0 %v1034
  %1393 = vmatprep.subr.bf16.mxu0 0
  %1394 = vmatpush1.bf16.msra.mxu0 %v1035
  %1395 = vmatprep.subr.bf16.mxu0 0
  %1396 = vmatpush1.bf16.msra.mxu0 %v1036
  %1397 = vmatprep.subr.bf16.mxu0 0
  %1398 = vmatpush1.bf16.msra.mxu0 %v1037
  %1399 = vmatprep.subr.bf16.mxu0 0
  %1400 = vmatpush1.bf16.msra.mxu0 %v1038
  %1401 = vmatprep.subr.bf16.mxu0 0
  %1402 = vmatpush1.bf16.msra.mxu0 %v1039
  %1403 = vmatprep.subr.bf16.mxu0 0
  %1404 = vmatpush1.bf16.msra.mxu0 %v1040
  %1405 = vmatprep.subr.bf16.mxu0 0
  %1406 = vmatpush1.bf16.msra.mxu0 %v1041
  %1407 = vmatprep.subr.bf16.mxu0 0
  %1408 = vmatpush1.bf16.msra.mxu0 %v1042
  %1409 = vmatprep.subr.bf16.mxu0 0
  %1410 = vmatpush1.bf16.msra.mxu0 %v1043
  %1411 = vmatprep.subr.bf16.mxu0 0
  %1412 = vmatpush1.bf16.msra.mxu0 %v1044
  %1413 = vmatprep.subr.bf16.mxu0 0
  %1414 = vmatpush1.bf16.msra.mxu0 %v1045
  %1415 = vmatprep.subr.bf16.mxu0 0
  %1416 = vmatpush1.bf16.msra.mxu0 %v1046
  %1417 = vmatprep.subr.bf16.mxu0 0
  %1418 = vmatpush1.bf16.msra.mxu0 %v1047
  %1419 = vmatprep.mubr.bf16.mxu0 %v415
  %1420 = vmatmul.mubr.bf16.gmra.mrb[0].mxu0 %v414
  %v1421 = vpop.f32.mrb[0].mxu0
  %v1422 = vadd.f32 %v1373, %v1421
  %v1423 = vpop.f32.mrb[0].mxu0
  %v1424 = vpop.f32.mrb[0].mxu0
  %v1425 = vadd.f32 %v1376, %v1424
  %v1426 = vpop.f32.mrb[0].mxu0
  %1427 = vmatprep.mubr.bf16.mxu0 %v431
  %1428 = vmatmul.mubr.bf16.gmra.mrb[0].mxu0 %v430
  %v1429 = vpop.f32.mrb[0].mxu0
  %v1430 = vadd.f32 %v1381, %v1429
  %v1431 = vpop.f32.mrb[0].mxu0
  %v1432 = vpop.f32.mrb[0].mxu0
  %v1433 = vadd.f32 %v1384, %v1432
  %v1434 = vpop.f32.mrb[0].mxu0
  %1435 = vdwg.mxu0
  %1436 = vmatprep.subr.bf16.mxu0 0
  %1437 = vmatpush1.bf16.msra.mxu0 %v1048
  %1438 = vmatprep.subr.bf16.mxu0 0
  %1439 = vmatpush1.bf16.msra.mxu0 %v1049
  %1440 = vmatprep.subr.bf16.mxu0 0
  %1441 = vmatpush1.bf16.msra.mxu0 %v1050
  %1442 = vmatprep.subr.bf16.mxu0 0
  %1443 = vmatpush1.bf16.msra.mxu0 %v1051
  %1444 = vmatprep.subr.bf16.mxu0 0
  %1445 = vmatpush1.bf16.msra.mxu0 %v1052
  %1446 = vmatprep.subr.bf16.mxu0 0
  %1447 = vmatpush1.bf16.msra.mxu0 %v1053
  %1448 = vmatprep.subr.bf16.mxu0 0
  %1449 = vmatpush1.bf16.msra.mxu0 %v1054
  %1450 = vmatprep.subr.bf16.mxu0 0
  %1451 = vmatpush1.bf16.msra.mxu0 %v1055
  %1452 = vmatprep.subr.bf16.mxu0 0
  %1453 = vmatpush1.bf16.msra.mxu0 %v1056
  %1454 = vmatprep.subr.bf16.mxu0 0
  %1455 = vmatpush1.bf16.msra.mxu0 %v1057
  %1456 = vmatprep.subr.bf16.mxu0 0
  %1457 = vmatpush1.bf16.msra.mxu0 %v1058
  %1458 = vmatprep.subr.bf16.mxu0 0
  %1459 = vmatpush1.bf16.msra.mxu0 %v1059
  %1460 = vmatprep.subr.bf16.mxu0 0
  %1461 = vmatpush1.bf16.msra.mxu0 %v1060
  %1462 = vmatprep.subr.bf16.mxu0 0
  %1463 = vmatpush1.bf16.msra.mxu0 %v1061
  %1464 = vmatprep.subr.bf16.mxu0 0
  %1465 = vmatpush1.bf16.msra.mxu0 %v1062
  %1466 = vmatprep.subr.bf16.mxu0 0
  %1467 = vmatpush1.bf16.msra.mxu0 %v1063
  %1468 = vmatprep.mubr.bf16.mxu0 %v417
  %1469 = vmatmul.mubr.bf16.gmra.mrb[0].mxu0 %v416
  %v1470 = vpop.f32.mrb[0].mxu0
  %v1471 = vadd.f32 %v1422, %v1470
  %v1472 = vpop.f32.mrb[0].mxu0
  %v1473 = vpop.f32.mrb[0].mxu0
  %v1474 = vadd.f32 %v1425, %v1473
  %v1475 = vpop.f32.mrb[0].mxu0
  %1476 = vmatprep.mubr.bf16.mxu0 %v433
  %1477 = vmatmul.mubr.bf16.gmra.mrb[0].mxu0 %v432
  %v1478 = vpop.f32.mrb[0].mxu0
  %v1479 = vadd.f32 %v1430, %v1478
  %v1480 = vpop.f32.mrb[0].mxu0
  %v1481 = vpop.f32.mrb[0].mxu0
  %v1482 = vadd.f32 %v1433, %v1481
  %v1483 = vpop.f32.mrb[0].mxu0
  %1484 = vdwg.mxu0
  %1485 = vmatprep.subr.bf16.mxu0 0
  %1486 = vmatpush1.bf16.msra.mxu0 %v1064
  %1487 = vmatprep.subr.bf16.mxu0 0
  %1488 = vmatpush1.bf16.msra.mxu0 %v1065
  %1489 = vmatprep.subr.bf16.mxu0 0
  %1490 = vmatpush1.bf16.msra.mxu0 %v1066
  %1491 = vmatprep.subr.bf16.mxu0 0
  %1492 = vmatpush1.bf16.msra.mxu0 %v1067
  %1493 = vmatprep.subr.bf16.mxu0 0
  %1494 = vmatpush1.bf16.msra.mxu0 %v1068
  %1495 = vmatprep.subr.bf16.mxu0 0
  %1496 = vmatpush1.bf16.msra.mxu0 %v1069
  %1497 = vmatprep.subr.bf16.mxu0 0
  %1498 = vmatpush1.bf16.msra.mxu0 %v1070
  %1499 = vmatprep.subr.bf16.mxu0 0
  %1500 = vmatpush1.bf16.msra.mxu0 %v1071
  %1501 = vmatprep.subr.bf16.mxu0 0
  %1502 = vmatpush1.bf16.msra.mxu0 %v1072
  %1503 = vmatprep.subr.bf16.mxu0 0
  %1504 = vmatpush1.bf16.msra.mxu0 %v1073
  %1505 = vmatprep.subr.bf16.mxu0 0
  %1506 = vmatpush1.bf16.msra.mxu0 %v1074
  %1507 = vmatprep.subr.bf16.mxu0 0
  %1508 = vmatpush1.bf16.msra.mxu0 %v1075
  %1509 = vmatprep.subr.bf16.mxu0 0
  %1510 = vmatpush1.bf16.msra.mxu0 %v1076
  %1511 = vmatprep.subr.bf16.mxu0 0
  %1512 = vmatpush1.bf16.msra.mxu0 %v1077
  %1513 = vmatprep.subr.bf16.mxu0 0
  %1514 = vmatpush1.bf16.msra.mxu0 %v1078
  %1515 = vmatprep.subr.bf16.mxu0 0
  %1516 = vmatpush1.bf16.msra.mxu0 %v1079
  %1517 = vmatprep.mubr.bf16.mxu0 %v419
  %1518 = vmatmul.mubr.bf16.gmra.mrb[0].mxu0 %v418
  %v1519 = vpop.f32.mrb[0].mxu0
  %v1520 = vadd.f32 %v1471, %v1519
  %v1521 = vpop.f32.mrb[0].mxu0
  %v1522 = vpop.f32.mrb[0].mxu0
  %v1523 = vadd.f32 %v1474, %v1522
  %v1524 = vpop.f32.mrb[0].mxu0
  %1525 = vmatprep.mubr.bf16.mxu0 %v435
  %1526 = vmatmul.mubr.bf16.gmra.mrb[0].mxu0 %v434
  %v1527 = vpop.f32.mrb[0].mxu0
  %v1528 = vadd.f32 %v1479, %v1527
  %v1529 = vpop.f32.mrb[0].mxu0
  %v1530 = vpop.f32.mrb[0].mxu0
  %v1531 = vadd.f32 %v1482, %v1530
  %v1532 = vpop.f32.mrb[0].mxu0
  %1533 = vdwg.mxu0
  %1534 = vmatprep.subr.bf16.mxu0 0
  %1535 = vmatpush1.bf16.msra.mxu0 %v1080
  %1536 = vmatprep.subr.bf16.mxu0 0
  %1537 = vmatpush1.bf16.msra.mxu0 %v1081
  %1538 = vmatprep.subr.bf16.mxu0 0
  %1539 = vmatpush1.bf16.msra.mxu0 %v1082
  %1540 = vmatprep.subr.bf16.mxu0 0
  %1541 = vmatpush1.bf16.msra.mxu0 %v1083
  %1542 = vmatprep.subr.bf16.mxu0 0
  %1543 = vmatpush1.bf16.msra.mxu0 %v1084
  %1544 = vmatprep.subr.bf16.mxu0 0
  %1545 = vmatpush1.bf16.msra.mxu0 %v1085
  %1546 = vmatprep.subr.bf16.mxu0 0
  %1547 = vmatpush1.bf16.msra.mxu0 %v1086
  %1548 = vmatprep.subr.bf16.mxu0 0
  %1549 = vmatpush1.bf16.msra.mxu0 %v1087
  %1550 = vmatprep.subr.bf16.mxu0 0
  %1551 = vmatpush1.bf16.msra.mxu0 %v1088
  %1552 = vmatprep.subr.bf16.mxu0 0
  %1553 = vmatpush1.bf16.msra.mxu0 %v1089
  %1554 = vmatprep.subr.bf16.mxu0 0
  %1555 = vmatpush1.bf16.msra.mxu0 %v1090
  %1556 = vmatprep.subr.bf16.mxu0 0
  %1557 = vmatpush1.bf16.msra.mxu0 %v1091
  %1558 = vmatprep.subr.bf16.mxu0 0
  %1559 = vmatpush1.bf16.msra.mxu0 %v1092
  %1560 = vmatprep.subr.bf16.mxu0 0
  %1561 = vmatpush1.bf16.msra.mxu0 %v1093
  %1562 = vmatprep.subr.bf16.mxu0 0
  %1563 = vmatpush1.bf16.msra.mxu0 %v1094
  %1564 = vmatprep.subr.bf16.mxu0 0
  %1565 = vmatpush1.bf16.msra.mxu0 %v1095
  %1566 = vmatprep.mubr.bf16.mxu0 %v421
  %1567 = vmatmul.mubr.bf16.gmra.mrb[0].mxu0 %v420
  %v1568 = vpop.f32.mrb[0].mxu0
  %v1569 = vadd.f32 %v1520, %v1568
  %v1570 = vpop.f32.mrb[0].mxu0
  %v1571 = vpop.f32.mrb[0].mxu0
  %v1572 = vadd.f32 %v1523, %v1571
  %v1573 = vpop.f32.mrb[0].mxu0
  %1574 = vmatprep.mubr.bf16.mxu0 %v437
  %1575 = vmatmul.mubr.bf16.gmra.mrb[0].mxu0 %v436
  %v1576 = vpop.f32.mrb[0].mxu0
  %v1577 = vadd.f32 %v1528, %v1576
  %v1578 = vpop.f32.mrb[0].mxu0
  %v1579 = vpop.f32.mrb[0].mxu0
  %v1580 = vadd.f32 %v1531, %v1579
  %v1581 = vpop.f32.mrb[0].mxu0
  %1582 = vdwg.mxu0
  %1583 = vmatprep.subr.bf16.mxu0 0
  %1584 = vmatpush1.bf16.msra.mxu0 %v1096
  %1585 = vmatprep.subr.bf16.mxu0 0
  %1586 = vmatpush1.bf16.msra.mxu0 %v1097
  %1587 = vmatprep.subr.bf16.mxu0 0
  %1588 = vmatpush1.bf16.msra.mxu0 %v1098
  %1589 = vmatprep.subr.bf16.mxu0 0
  %1590 = vmatpush1.bf16.msra.mxu0 %v1099
  %1591 = vmatprep.subr.bf16.mxu0 0
  %1592 = vmatpush1.bf16.msra.mxu0 %v1100
  %1593 = vmatprep.subr.bf16.mxu0 0
  %1594 = vmatpush1.bf16.msra.mxu0 %v1101
  %1595 = vmatprep.subr.bf16.mxu0 0
  %1596 = vmatpush1.bf16.msra.mxu0 %v1102
  %1597 = vmatprep.subr.bf16.mxu0 0
  %1598 = vmatpush1.bf16.msra.mxu0 %v1103
  %1599 = vmatprep.subr.bf16.mxu0 0
  %1600 = vmatpush1.bf16.msra.mxu0 %v1104
  %1601 = vmatprep.subr.bf16.mxu0 0
  %1602 = vmatpush1.bf16.msra.mxu0 %v1105
  %1603 = vmatprep.subr.bf16.mxu0 0
  %1604 = vmatpush1.bf16.msra.mxu0 %v1106
  %1605 = vmatprep.subr.bf16.mxu0 0
  %1606 = vmatpush1.bf16.msra.mxu0 %v1107
  %1607 = vmatprep.subr.bf16.mxu0 0
  %1608 = vmatpush1.bf16.msra.mxu0 %v1108
  %1609 = vmatprep.subr.bf16.mxu0 0
  %1610 = vmatpush1.bf16.msra.mxu0 %v1109
  %1611 = vmatprep.subr.bf16.mxu0 0
  %1612 = vmatpush1.bf16.msra.mxu0 %v1110
  %1613 = vmatprep.subr.bf16.mxu0 0
  %1614 = vmatpush1.bf16.msra.mxu0 %v1111
  %1615 = vmatprep.mubr.bf16.mxu0 %v423
  %1616 = vmatmul.mubr.bf16.gmra.mrb[0].mxu0 %v422
  %v1617 = vpop.f32.mrb[0].mxu0
  %v1618 = vadd.f32 %v1569, %v1617
  %v1619 = vpop.f32.mrb[0].mxu0
  %v1620 = vpop.f32.mrb[0].mxu0
  %v1621 = vadd.f32 %v1572, %v1620
  %v1622 = vpop.f32.mrb[0].mxu0
  %1623 = vmatprep.mubr.bf16.mxu0 %v439
  %1624 = vmatmul.mubr.bf16.gmra.mrb[0].mxu0 %v438
  %v1625 = vpop.f32.mrb[0].mxu0
  %v1626 = vadd.f32 %v1577, %v1625
  %v1627 = vpop.f32.mrb[0].mxu0
  %v1628 = vpop.f32.mrb[0].mxu0
  %v1629 = vadd.f32 %v1580, %v1628
  %v1630 = vpop.f32.mrb[0].mxu0
  %1631 = vdwg.mxu0
  %1632 = vst [vmem:[%s3] sm:$0xff] %v1618
  %1633 = vst [vmem:[%s3 + $0x8] sm:$0xff] %v1621
  %1634 = vst [vmem:[%s3 + $0x10] sm:$0xff] %v1626
  %1635 = vst [vmem:[%s3 + $0x18] sm:$0xff] %v1629
  %v1636 = vlaneseq
  %v1637 = vshrl.u32 %v1636, 7
  %v1638 = vadd.s32 %v1637, 8
  %v1639 = vadd.s32 %v1637, 16
  %v1640 = vadd.s32 %v1637, 24
  %s1641 = smul.u32 0, 32
  %v1642 = vstv %s1641
  %v1643 = vadd.s32 %v1637, %v1642
  %v1644 = vadd.s32 %v1638, %v1642
  %v1645 = vadd.s32 %v1639, %v1642
  %v1646 = vadd.s32 %v1640, %v1642
  %vm1647 = vcmp.lt.s32.totalorder %v1643, 32
  %vm1648 = vcmp.lt.s32.totalorder %v1644, 32
  %vm1649 = vcmp.lt.s32.totalorder %v1645, 32
  %vm1650 = vcmp.lt.s32.totalorder %v1646, 32
  %v1651 = vsel %vm1647, %v1618, 0.0
  %v1652 = vsel %vm1648, %v1621, 0.0
  %v1653 = vsel %vm1649, %v1626, 0.0
  %v1654 = vsel %vm1650, %v1629, 0.0
  %v1655 = vadd.f32 %v1651, %v1652
  %v1656 = vadd.f32 %v1655, %v1653
  %v1657 = vadd.f32 %v1656, %v1654
  %v1658 = vrot.slane %v1657, 4
  %v1659 = vadd.f32 %v1657, %v1658
  %v1660 = vrot.slane %v1659, 2
  %v1661 = vadd.f32 %v1659, %v1660
  %v1662 = vrot.slane %v1661, 1
  %v1663 = vadd.f32 %v1661, %v1662
  %v1664 = vmul.f32 %v1651, %v1651
  %v1665 = vmul.f32 %v1652, %v1652
  %v1666 = vmul.f32 %v1653, %v1653
  %v1667 = vmul.f32 %v1654, %v1654
  %v1668 = vadd.f32 %v1664, %v1665
  %v1669 = vadd.f32 %v1668, %v1666
  %v1670 = vadd.f32 %v1669, %v1667
  %v1671 = vrot.slane %v1670, 4
  %v1672 = vadd.f32 %v1670, %v1671
  %v1673 = vrot.slane %v1672, 2
  %v1674 = vadd.f32 %v1672, %v1673
  %v1675 = vrot.slane %v1674, 1
  %v1676 = vadd.f32 %v1674, %v1675
  %vm1677 = vcmp.eq.s32.totalorder %v1637, 0
  %v1678 = vsel %vm1677, %v1663, 0.0
  %vm1679 = vcmp.eq.s32.totalorder %v1637, 1
  %v1680 = vsel %vm1679, %v1676, 0.0
  %v1681 = vadd.f32 %v1678, %v1680
  %p1682 = scmp.eq.s32.totalorder 0, 0
  // Predicated region
  $region14: #{n_layer_discriminator.9} parent=0 // pred_check
    %p1683 = pneg %p1682
  $region15: #{n_layer_discriminator.9} parent=0 // pred_check_branch
    %1685 = sbr.rel (%p1683) target = $region17
  $region16: #{n_layer_discriminator.9} parent=0 // pred_region
    %1686 = vst [vmem:[%s4] sm:$0xff] 0.0
  $region17: #{n_layer_discriminator.9} parent=0 // pred_fallthru
    _
  %v1687 = vld [vmem:[%s4] sm:$0xff]
  %v1688 = vadd.f32 %v1687, %v1681
  %1689 = vst [vmem:[%s4] sm:$0xff] %v1688
  // Predicated region
  $region18: #{n_layer_discriminator.9} parent=0 // pred_check
    _
  $region19: #{n_layer_discriminator.9} parent=0 // pred_check_branch
    %1691 = sbr.rel (0) target = $region21
  $region20: #{n_layer_discriminator.9} parent=0 // pred_region
    _
  $region21: #{n_layer_discriminator.9} parent=0 // pred_fallthru
    _
  // Predicated region
  $region22: #{n_layer_discriminator.9} parent=0 // pred_check
    _
  $region23: #{n_layer_discriminator.9} parent=0 // pred_check_branch
    %1693 = sbr.rel (0) target = $region25
  $region24: #{n_layer_discriminator.9} parent=0 // pred_region
    _
  $region25: #{n_layer_discriminator.9} parent=0 // pred_fallthru
    _
  // Predicated region
  $region26: #{n_layer_discriminator.9} parent=0 // pred_check
    _
  $region27: #{n_layer_discriminator.9} parent=0 // pred_check_branch
    %1695 = sbr.rel (0) target = $region29
  $region28: #{n_layer_discriminator.9} parent=0 // pred_region
    _
  $region29: #{n_layer_discriminator.9} parent=0 // pred_fallthru
    _
  // Predicated region
  $region30: #{n_layer_discriminator.9} parent=0 // pred_check
    _
  $region31: #{n_layer_discriminator.9} parent=0 // pred_check_branch
    %1697 = sbr.rel (0) target = $region33
  $region32: #{n_layer_discriminator.9} parent=0 // pred_region
    _
  $region33: #{n_layer_discriminator.9} parent=0 // pred_fallthru
    _

// kernel: n_layer_discriminator.12
$region0: #{n_layer_discriminator.12}
  #allocation0 [shape = 'u32[]', space=smem, size = 0x4, offset = 0x4, fixed_abs, tag = 'smem constant byte address 0x4 - core index']
  #allocation1 [shape = 'u32[144,128]{1,0:T(1,128)}', space=vmem, size = 0x12000, scoped, tag = 'internal scratch']
  %s0 = inlined_call_operand.vmem [shape: f32[8,128], index: 0, kind: input, shape index: {}]
  %s1 = inlined_call_operand.vmem [shape: f32[1,128], index: 1, kind: input, shape index: {}]
  %s2 = inlined_call_operand.vmem [shape: f32[1,128], index: 2, kind: input, shape index: {}]
  %s3 = inlined_call_operand.vmem [shape: bf16[8,128], index: 3, kind: output, shape index: {}]
  %s4 = sld [smem:[#allocation0]]
  $region22: #{n_layer_discriminator.12} parent=0
    _
  %s6 = ssub.s32 1, %s4
  %s7 = scalar_select 0, %s6, %s4
  // Predicated region
  $region2: #{n_layer_discriminator.12} parent=0 // pred_check
    _
  $region3: #{n_layer_discriminator.12} parent=0 // pred_check_branch
    %9 = sbr.rel (0) target = $region5
  $region4: #{n_layer_discriminator.12} parent=0 // pred_region
    _
  $region5: #{n_layer_discriminator.12} parent=0 // pred_fallthru
    _
  // Predicated region
  $region6: #{n_layer_discriminator.12} parent=0 // pred_check
    _
  $region7: #{n_layer_discriminator.12} parent=0 // pred_check_branch
    %11 = sbr.rel (0) target = $region9
  $region8: #{n_layer_discriminator.12} parent=0 // pred_region
    _
  $region9: #{n_layer_discriminator.12} parent=0 // pred_fallthru
    _
  // Predicated region
  $region10: #{n_layer_discriminator.12} parent=0 // pred_check
    _
  $region11: #{n_layer_discriminator.12} parent=0 // pred_check_branch
    %13 = sbr.rel (0) target = $region13
  $region12: #{n_layer_discriminator.12} parent=0 // pred_region
    _
  $region13: #{n_layer_discriminator.12} parent=0 // pred_fallthru
    _
  %v14 = vld [vmem:[%s0] sm:$0xff]
  %v15 = vld [vmem:[%s1] sm:$0x1]
  %v17 = vlaneseq
  %v18 = vshrl.u32 %v17, 7
  %v19 = vsub.s32 0, %v18
  %v20 = vrot.slane %v15, %v19
  %v22 = vmul.f32 %v14, %v20
  %v23 = vld [vmem:[%s2] sm:$0x1]
  %v25 = vlaneseq
  %v26 = vshrl.u32 %v25, 7
  %v27 = vsub.s32 0, %v26
  %v28 = vrot.slane %v23, %v27
  %v30 = vadd.f32 %v22, %v28
  %vm31 = vcmp.ge.f32.partialorder %v30, 0.0
  %v32 = vmul.f32 %v30, 0.2
  %v33 = vsel %vm31, %v30, %v32
  %v34 = vpack.c.bf16 %v33, %v33
  %35 = vst [vmem:[%s3] sm:$0xf] %v34
  // Predicated region
  $region14: #{n_layer_discriminator.12} parent=0 // pred_check
    _
  $region15: #{n_layer_discriminator.12} parent=0 // pred_check_branch
    %37 = sbr.rel (0) target = $region17
  $region16: #{n_layer_discriminator.12} parent=0 // pred_region
    _
  $region17: #{n_layer_discriminator.12} parent=0 // pred_fallthru
    _
  // Predicated region
  $region18: #{n_layer_discriminator.12} parent=0 // pred_check
    _
  $region19: #{n_layer_discriminator.12} parent=0 // pred_check_branch
    %39 = sbr.rel (0) target = $region21
  $region20: #{n_layer_discriminator.12} parent=0 // pred_region
    _
  $region21: #{n_layer_discriminator.12} parent=0 // pred_fallthru
    _

// kernel: n_layer_discriminator.11
$region0: #{n_layer_discriminator.11}
  #allocation0 [shape = 'u32[]', space=smem, size = 0x4, offset = 0x4, fixed_abs, tag = 'smem constant byte address 0x4 - core index']
  #allocation1 [shape = 'u32[144,128]{1,0:T(1,128)}', space=vmem, size = 0x12000, scoped, tag = 'internal scratch']
  %s0 = inlined_call_operand.vmem [shape: bf16[8,2048], index: 0, kind: input, shape index: {}]
  %s1 = inlined_call_operand.vmem [shape: bf16[2048,128], index: 1, kind: input, shape index: {}]
  %s2 = inlined_call_operand.vmem [shape: f32[1,128], index: 2, kind: input, shape index: {}]
  %s3 = inlined_call_operand.vmem [shape: f32[8,128], index: 3, kind: output, shape index: {0}]
  %s4 = inlined_call_operand.vmem [shape: f32[8,128], index: 4, kind: output, shape index: {1}]
  %5 = xla_tuple %s3, %s4
  %s6 = sld [smem:[#allocation0]]
  $region34: #{n_layer_discriminator.11} parent=0
    _
  %s8 = ssub.s32 1, %s6
  %s9 = scalar_select 0, %s8, %s6
  // Predicated region
  $region2: #{n_layer_discriminator.11} parent=0 // pred_check
    _
  $region3: #{n_layer_discriminator.11} parent=0 // pred_check_branch
    %11 = sbr.rel (0) target = $region5
  $region4: #{n_layer_discriminator.11} parent=0 // pred_region
    _
  $region5: #{n_layer_discriminator.11} parent=0 // pred_fallthru
    _
  // Predicated region
  $region6: #{n_layer_discriminator.11} parent=0 // pred_check
    _
  $region7: #{n_layer_discriminator.11} parent=0 // pred_check_branch
    %13 = sbr.rel (0) target = $region9
  $region8: #{n_layer_discriminator.11} parent=0 // pred_region
    _
  $region9: #{n_layer_discriminator.11} parent=0 // pred_fallthru
    _
  // Predicated region
  $region10: #{n_layer_discriminator.11} parent=0 // pred_check
    _
  $region11: #{n_layer_discriminator.11} parent=0 // pred_check_branch
    %15 = sbr.rel (0) target = $region13
  $region12: #{n_layer_discriminator.11} parent=0 // pred_region
    _
  $region13: #{n_layer_discriminator.11} parent=0 // pred_fallthru
    _
  %v17 = vld [vmem:[%s0] sm:$0xff]
  %v18 = vld [vmem:[%s0 + $0x8] sm:$0xff]
  %v19 = vld [vmem:[%s0 + $0x10] sm:$0xff]
  %v20 = vld [vmem:[%s0 + $0x18] sm:$0xff]
  %v21 = vld [vmem:[%s0 + $0x20] sm:$0xff]
  %v22 = vld [vmem:[%s0 + $0x28] sm:$0xff]
  %v23 = vld [vmem:[%s0 + $0x30] sm:$0xff]
  %v24 = vld [vmem:[%s0 + $0x38] sm:$0xff]
  %v25 = vld [vmem:[%s1] sm:$0xf]
  %v26 = vld [vmem:[%s1 + $0x4] sm:$0xf]
  %v27 = vld [vmem:[%s1 + $0x8] sm:$0xf]
  %v28 = vld [vmem:[%s1 + $0xc] sm:$0xf]
  %v29 = vld [vmem:[%s1 + $0x10] sm:$0xf]
  %v30 = vld [vmem:[%s1 + $0x14] sm:$0xf]
  %v31 = vld [vmem:[%s1 + $0x18] sm:$0xf]
  %v32 = vld [vmem:[%s1 + $0x1c] sm:$0xf]
  %v33 = vld [vmem:[%s1 + $0x20] sm:$0xf]
  %v34 = vld [vmem:[%s1 + $0x24] sm:$0xf]
  %v35 = vld [vmem:[%s1 + $0x28] sm:$0xf]
  %v36 = vld [vmem:[%s1 + $0x2c] sm:$0xf]
  %v37 = vld [vmem:[%s1 + $0x30] sm:$0xf]
  %v38 = vld [vmem:[%s1 + $0x34] sm:$0xf]
  %v39 = vld [vmem:[%s1 + $0x38] sm:$0xf]
  %v40 = vld [vmem:[%s1 + $0x3c] sm:$0xf]
  %v41 = vld [vmem:[%s1 + $0x40] sm:$0xf]
  %v42 = vld [vmem:[%s1 + $0x44] sm:$0xf]
  %v43 = vld [vmem:[%s1 + $0x48] sm:$0xf]
  %v44 = vld [vmem:[%s1 + $0x4c] sm:$0xf]
  %v45 = vld [vmem:[%s1 + $0x50] sm:$0xf]
  %v46 = vld [vmem:[%s1 + $0x54] sm:$0xf]
  %v47 = vld [vmem:[%s1 + $0x58] sm:$0xf]
  %v48 = vld [vmem:[%s1 + $0x5c] sm:$0xf]
  %v49 = vld [vmem:[%s1 + $0x60] sm:$0xf]
  %v50 = vld [vmem:[%s1 + $0x64] sm:$0xf]
  %v51 = vld [vmem:[%s1 + $0x68] sm:$0xf]
  %v52 = vld [vmem:[%s1 + $0x6c] sm:$0xf]
  %v53 = vld [vmem:[%s1 + $0x70] sm:$0xf]
  %v54 = vld [vmem:[%s1 + $0x74] sm:$0xf]
  %v55 = vld [vmem:[%s1 + $0x78] sm:$0xf]
  %v56 = vld [vmem:[%s1 + $0x7c] sm:$0xf]
  %v57 = vld [vmem:[%s1 + $0x80] sm:$0xf]
  %v58 = vld [vmem:[%s1 + $0x84] sm:$0xf]
  %v59 = vld [vmem:[%s1 + $0x88] sm:$0xf]
  %v60 = vld [vmem:[%s1 + $0x8c] sm:$0xf]
  %v61 = vld [vmem:[%s1 + $0x90] sm:$0xf]
  %v62 = vld [vmem:[%s1 + $0x94] sm:$0xf]
  %v63 = vld [vmem:[%s1 + $0x98] sm:$0xf]
  %v64 = vld [vmem:[%s1 + $0x9c] sm:$0xf]
  %v65 = vld [vmem:[%s1 + $0xa0] sm:$0xf]
  %v66 = vld [vmem:[%s1 + $0xa4] sm:$0xf]
  %v67 = vld [vmem:[%s1 + $0xa8] sm:$0xf]
  %v68 = vld [vmem:[%s1 + $0xac] sm:$0xf]
  %v69 = vld [vmem:[%s1 + $0xb0] sm:$0xf]
  %v70 = vld [vmem:[%s1 + $0xb4] sm:$0xf]
  %v71 = vld [vmem:[%s1 + $0xb8] sm:$0xf]
  %v72 = vld [vmem:[%s1 + $0xbc] sm:$0xf]
  %v73 = vld [vmem:[%s1 + $0xc0] sm:$0xf]
  %v74 = vld [vmem:[%s1 + $0xc4] sm:$0xf]
  %v75 = vld [vmem:[%s1 + $0xc8] sm:$0xf]
  %v76 = vld [vmem:[%s1 + $0xcc] sm:$0xf]
  %v77 = vld [vmem:[%s1 + $0xd0] sm:$0xf]
  %v78 = vld [vmem:[%s1 + $0xd4] sm:$0xf]
  %v79 = vld [vmem:[%s1 + $0xd8] sm:$0xf]
  %v80 = vld [vmem:[%s1 + $0xdc] sm:$0xf]
  %v81 = vld [vmem:[%s1 + $0xe0] sm:$0xf]
  %v82 = vld [vmem:[%s1 + $0xe4] sm:$0xf]
  %v83 = vld [vmem:[%s1 + $0xe8] sm:$0xf]
  %v84 = vld [vmem:[%s1 + $0xec] sm:$0xf]
  %v85 = vld [vmem:[%s1 + $0xf0] sm:$0xf]
  %v86 = vld [vmem:[%s1 + $0xf4] sm:$0xf]
  %v87 = vld [vmem:[%s1 + $0xf8] sm:$0xf]
  %v88 = vld [vmem:[%s1 + $0xfc] sm:$0xf]
  %v89 = vld [vmem:[%s1 + $0x100] sm:$0xf]
  %v90 = vld [vmem:[%s1 + $0x104] sm:$0xf]
  %v91 = vld [vmem:[%s1 + $0x108] sm:$0xf]
  %v92 = vld [vmem:[%s1 + $0x10c] sm:$0xf]
  %v93 = vld [vmem:[%s1 + $0x110] sm:$0xf]
  %v94 = vld [vmem:[%s1 + $0x114] sm:$0xf]
  %v95 = vld [vmem:[%s1 + $0x118] sm:$0xf]
  %v96 = vld [vmem:[%s1 + $0x11c] sm:$0xf]
  %v97 = vld [vmem:[%s1 + $0x120] sm:$0xf]
  %v98 = vld [vmem:[%s1 + $0x124] sm:$0xf]
  %v99 = vld [vmem:[%s1 + $0x128] sm:$0xf]
  %v100 = vld [vmem:[%s1 + $0x12c] sm:$0xf]
  %v101 = vld [vmem:[%s1 + $0x130] sm:$0xf]
  %v102 = vld [vmem:[%s1 + $0x134] sm:$0xf]
  %v103 = vld [vmem:[%s1 + $0x138] sm:$0xf]
  %v104 = vld [vmem:[%s1 + $0x13c] sm:$0xf]
  %v105 = vld [vmem:[%s1 + $0x140] sm:$0xf]
  %v106 = vld [vmem:[%s1 + $0x144] sm:$0xf]
  %v107 = vld [vmem:[%s1 + $0x148] sm:$0xf]
  %v108 = vld [vmem:[%s1 + $0x14c] sm:$0xf]
  %v109 = vld [vmem:[%s1 + $0x150] sm:$0xf]
  %v110 = vld [vmem:[%s1 + $0x154] sm:$0xf]
  %v111 = vld [vmem:[%s1 + $0x158] sm:$0xf]
  %v112 = vld [vmem:[%s1 + $0x15c] sm:$0xf]
  %v113 = vld [vmem:[%s1 + $0x160] sm:$0xf]
  %v114 = vld [vmem:[%s1 + $0x164] sm:$0xf]
  %v115 = vld [vmem:[%s1 + $0x168] sm:$0xf]
  %v116 = vld [vmem:[%s1 + $0x16c] sm:$0xf]
  %v117 = vld [vmem:[%s1 + $0x170] sm:$0xf]
  %v118 = vld [vmem:[%s1 + $0x174] sm:$0xf]
  %v119 = vld [vmem:[%s1 + $0x178] sm:$0xf]
  %v120 = vld [vmem:[%s1 + $0x17c] sm:$0xf]
  %v121 = vld [vmem:[%s1 + $0x180] sm:$0xf]
  %v122 = vld [vmem:[%s1 + $0x184] sm:$0xf]
  %v123 = vld [vmem:[%s1 + $0x188] sm:$0xf]
  %v124 = vld [vmem:[%s1 + $0x18c] sm:$0xf]
  %v125 = vld [vmem:[%s1 + $0x190] sm:$0xf]
  %v126 = vld [vmem:[%s1 + $0x194] sm:$0xf]
  %v127 = vld [vmem:[%s1 + $0x198] sm:$0xf]
  %v128 = vld [vmem:[%s1 + $0x19c] sm:$0xf]
  %v129 = vld [vmem:[%s1 + $0x1a0] sm:$0xf]
  %v130 = vld [vmem:[%s1 + $0x1a4] sm:$0xf]
  %v131 = vld [vmem:[%s1 + $0x1a8] sm:$0xf]
  %v132 = vld [vmem:[%s1 + $0x1ac] sm:$0xf]
  %v133 = vld [vmem:[%s1 + $0x1b0] sm:$0xf]
  %v134 = vld [vmem:[%s1 + $0x1b4] sm:$0xf]
  %v135 = vld [vmem:[%s1 + $0x1b8] sm:$0xf]
  %v136 = vld [vmem:[%s1 + $0x1bc] sm:$0xf]
  %v137 = vld [vmem:[%s1 + $0x1c0] sm:$0xf]
  %v138 = vld [vmem:[%s1 + $0x1c4] sm:$0xf]
  %v139 = vld [vmem:[%s1 + $0x1c8] sm:$0xf]
  %v140 = vld [vmem:[%s1 + $0x1cc] sm:$0xf]
  %v141 = vld [vmem:[%s1 + $0x1d0] sm:$0xf]
  %v142 = vld [vmem:[%s1 + $0x1d4] sm:$0xf]
  %v143 = vld [vmem:[%s1 + $0x1d8] sm:$0xf]
  %v144 = vld [vmem:[%s1 + $0x1dc] sm:$0xf]
  %v145 = vld [vmem:[%s1 + $0x1e0] sm:$0xf]
  %v146 = vld [vmem:[%s1 + $0x1e4] sm:$0xf]
  %v147 = vld [vmem:[%s1 + $0x1e8] sm:$0xf]
  %v148 = vld [vmem:[%s1 + $0x1ec] sm:$0xf]
  %v149 = vld [vmem:[%s1 + $0x1f0] sm:$0xf]
  %v150 = vld [vmem:[%s1 + $0x1f4] sm:$0xf]
  %v151 = vld [vmem:[%s1 + $0x1f8] sm:$0xf]
  %v152 = vld [vmem:[%s1 + $0x1fc] sm:$0xf]
  %v153 = vld [vmem:[%s1 + $0x200] sm:$0xf]
  %v154 = vld [vmem:[%s1 + $0x204] sm:$0xf]
  %v155 = vld [vmem:[%s1 + $0x208] sm:$0xf]
  %v156 = vld [vmem:[%s1 + $0x20c] sm:$0xf]
  %v157 = vld [vmem:[%s1 + $0x210] sm:$0xf]
  %v158 = vld [vmem:[%s1 + $0x214] sm:$0xf]
  %v159 = vld [vmem:[%s1 + $0x218] sm:$0xf]
  %v160 = vld [vmem:[%s1 + $0x21c] sm:$0xf]
  %v161 = vld [vmem:[%s1 + $0x220] sm:$0xf]
  %v162 = vld [vmem:[%s1 + $0x224] sm:$0xf]
  %v163 = vld [vmem:[%s1 + $0x228] sm:$0xf]
  %v164 = vld [vmem:[%s1 + $0x22c] sm:$0xf]
  %v165 = vld [vmem:[%s1 + $0x230] sm:$0xf]
  %v166 = vld [vmem:[%s1 + $0x234] sm:$0xf]
  %v167 = vld [vmem:[%s1 + $0x238] sm:$0xf]
  %v168 = vld [vmem:[%s1 + $0x23c] sm:$0xf]
  %v169 = vld [vmem:[%s1 + $0x240] sm:$0xf]
  %v170 = vld [vmem:[%s1 + $0x244] sm:$0xf]
  %v171 = vld [vmem:[%s1 + $0x248] sm:$0xf]
  %v172 = vld [vmem:[%s1 + $0x24c] sm:$0xf]
  %v173 = vld [vmem:[%s1 + $0x250] sm:$0xf]
  %v174 = vld [vmem:[%s1 + $0x254] sm:$0xf]
  %v175 = vld [vmem:[%s1 + $0x258] sm:$0xf]
  %v176 = vld [vmem:[%s1 + $0x25c] sm:$0xf]
  %v177 = vld [vmem:[%s1 + $0x260] sm:$0xf]
  %v178 = vld [vmem:[%s1 + $0x264] sm:$0xf]
  %v179 = vld [vmem:[%s1 + $0x268] sm:$0xf]
  %v180 = vld [vmem:[%s1 + $0x26c] sm:$0xf]
  %v181 = vld [vmem:[%s1 + $0x270] sm:$0xf]
  %v182 = vld [vmem:[%s1 + $0x274] sm:$0xf]
  %v183 = vld [vmem:[%s1 + $0x278] sm:$0xf]
  %v184 = vld [vmem:[%s1 + $0x27c] sm:$0xf]
  %v185 = vld [vmem:[%s1 + $0x280] sm:$0xf]
  %v186 = vld [vmem:[%s1 + $0x284] sm:$0xf]
  %v187 = vld [vmem:[%s1 + $0x288] sm:$0xf]
  %v188 = vld [vmem:[%s1 + $0x28c] sm:$0xf]
  %v189 = vld [vmem:[%s1 + $0x290] sm:$0xf]
  %v190 = vld [vmem:[%s1 + $0x294] sm:$0xf]
  %v191 = vld [vmem:[%s1 + $0x298] sm:$0xf]
  %v192 = vld [vmem:[%s1 + $0x29c] sm:$0xf]
  %v193 = vld [vmem:[%s1 + $0x2a0] sm:$0xf]
  %v194 = vld [vmem:[%s1 + $0x2a4] sm:$0xf]
  %v195 = vld [vmem:[%s1 + $0x2a8] sm:$0xf]
  %v196 = vld [vmem:[%s1 + $0x2ac] sm:$0xf]
  %v197 = vld [vmem:[%s1 + $0x2b0] sm:$0xf]
  %v198 = vld [vmem:[%s1 + $0x2b4] sm:$0xf]
  %v199 = vld [vmem:[%s1 + $0x2b8] sm:$0xf]
  %v200 = vld [vmem:[%s1 + $0x2bc] sm:$0xf]
  %v201 = vld [vmem:[%s1 + $0x2c0] sm:$0xf]
  %v202 = vld [vmem:[%s1 + $0x2c4] sm:$0xf]
  %v203 = vld [vmem:[%s1 + $0x2c8] sm:$0xf]
  %v204 = vld [vmem:[%s1 + $0x2cc] sm:$0xf]
  %v205 = vld [vmem:[%s1 + $0x2d0] sm:$0xf]
  %v206 = vld [vmem:[%s1 + $0x2d4] sm:$0xf]
  %v207 = vld [vmem:[%s1 + $0x2d8] sm:$0xf]
  %v208 = vld [vmem:[%s1 + $0x2dc] sm:$0xf]
  %v209 = vld [vmem:[%s1 + $0x2e0] sm:$0xf]
  %v210 = vld [vmem:[%s1 + $0x2e4] sm:$0xf]
  %v211 = vld [vmem:[%s1 + $0x2e8] sm:$0xf]
  %v212 = vld [vmem:[%s1 + $0x2ec] sm:$0xf]
  %v213 = vld [vmem:[%s1 + $0x2f0] sm:$0xf]
  %v214 = vld [vmem:[%s1 + $0x2f4] sm:$0xf]
  %v215 = vld [vmem:[%s1 + $0x2f8] sm:$0xf]
  %v216 = vld [vmem:[%s1 + $0x2fc] sm:$0xf]
  %v217 = vld [vmem:[%s1 + $0x300] sm:$0xf]
  %v218 = vld [vmem:[%s1 + $0x304] sm:$0xf]
  %v219 = vld [vmem:[%s1 + $0x308] sm:$0xf]
  %v220 = vld [vmem:[%s1 + $0x30c] sm:$0xf]
  %v221 = vld [vmem:[%s1 + $0x310] sm:$0xf]
  %v222 = vld [vmem:[%s1 + $0x314] sm:$0xf]
  %v223 = vld [vmem:[%s1 + $0x318] sm:$0xf]
  %v224 = vld [vmem:[%s1 + $0x31c] sm:$0xf]
  %v225 = vld [vmem:[%s1 + $0x320] sm:$0xf]
  %v226 = vld [vmem:[%s1 + $0x324] sm:$0xf]
  %v227 = vld [vmem:[%s1 + $0x328] sm:$0xf]
  %v228 = vld [vmem:[%s1 + $0x32c] sm:$0xf]
  %v229 = vld [vmem:[%s1 + $0x330] sm:$0xf]
  %v230 = vld [vmem:[%s1 + $0x334] sm:$0xf]
  %v231 = vld [vmem:[%s1 + $0x338] sm:$0xf]
  %v232 = vld [vmem:[%s1 + $0x33c] sm:$0xf]
  %v233 = vld [vmem:[%s1 + $0x340] sm:$0xf]
  %v234 = vld [vmem:[%s1 + $0x344] sm:$0xf]
  %v235 = vld [vmem:[%s1 + $0x348] sm:$0xf]
  %v236 = vld [vmem:[%s1 + $0x34c] sm:$0xf]
  %v237 = vld [vmem:[%s1 + $0x350] sm:$0xf]
  %v238 = vld [vmem:[%s1 + $0x354] sm:$0xf]
  %v239 = vld [vmem:[%s1 + $0x358] sm:$0xf]
  %v240 = vld [vmem:[%s1 + $0x35c] sm:$0xf]
  %v241 = vld [vmem:[%s1 + $0x360] sm:$0xf]
  %v242 = vld [vmem:[%s1 + $0x364] sm:$0xf]
  %v243 = vld [vmem:[%s1 + $0x368] sm:$0xf]
  %v244 = vld [vmem:[%s1 + $0x36c] sm:$0xf]
  %v245 = vld [vmem:[%s1 + $0x370] sm:$0xf]
  %v246 = vld [vmem:[%s1 + $0x374] sm:$0xf]
  %v247 = vld [vmem:[%s1 + $0x378] sm:$0xf]
  %v248 = vld [vmem:[%s1 + $0x37c] sm:$0xf]
  %v249 = vld [vmem:[%s1 + $0x380] sm:$0xf]
  %v250 = vld [vmem:[%s1 + $0x384] sm:$0xf]
  %v251 = vld [vmem:[%s1 + $0x388] sm:$0xf]
  %v252 = vld [vmem:[%s1 + $0x38c] sm:$0xf]
  %v253 = vld [vmem:[%s1 + $0x390] sm:$0xf]
  %v254 = vld [vmem:[%s1 + $0x394] sm:$0xf]
  %v255 = vld [vmem:[%s1 + $0x398] sm:$0xf]
  %v256 = vld [vmem:[%s1 + $0x39c] sm:$0xf]
  %v257 = vld [vmem:[%s1 + $0x3a0] sm:$0xf]
  %v258 = vld [vmem:[%s1 + $0x3a4] sm:$0xf]
  %v259 = vld [vmem:[%s1 + $0x3a8] sm:$0xf]
  %v260 = vld [vmem:[%s1 + $0x3ac] sm:$0xf]
  %v261 = vld [vmem:[%s1 + $0x3b0] sm:$0xf]
  %v262 = vld [vmem:[%s1 + $0x3b4] sm:$0xf]
  %v263 = vld [vmem:[%s1 + $0x3b8] sm:$0xf]
  %v264 = vld [vmem:[%s1 + $0x3bc] sm:$0xf]
  %v265 = vld [vmem:[%s1 + $0x3c0] sm:$0xf]
  %v266 = vld [vmem:[%s1 + $0x3c4] sm:$0xf]
  %v267 = vld [vmem:[%s1 + $0x3c8] sm:$0xf]
  %v268 = vld [vmem:[%s1 + $0x3cc] sm:$0xf]
  %v269 = vld [vmem:[%s1 + $0x3d0] sm:$0xf]
  %v270 = vld [vmem:[%s1 + $0x3d4] sm:$0xf]
  %v271 = vld [vmem:[%s1 + $0x3d8] sm:$0xf]
  %v272 = vld [vmem:[%s1 + $0x3dc] sm:$0xf]
  %v273 = vld [vmem:[%s1 + $0x3e0] sm:$0xf]
  %v274 = vld [vmem:[%s1 + $0x3e4] sm:$0xf]
  %v275 = vld [vmem:[%s1 + $0x3e8] sm:$0xf]
  %v276 = vld [vmem:[%s1 + $0x3ec] sm:$0xf]
  %v277 = vld [vmem:[%s1 + $0x3f0] sm:$0xf]
  %v278 = vld [vmem:[%s1 + $0x3f4] sm:$0xf]
  %v279 = vld [vmem:[%s1 + $0x3f8] sm:$0xf]
  %v280 = vld [vmem:[%s1 + $0x3fc] sm:$0xf]
  %v281 = vld [vmem:[%s2] sm:$0x1]
  %v283 = vlaneseq
  %v284 = vshrl.u32 %v283, 7
  %v285 = vsub.s32 0, %v284
  %v286 = vrot.slane %v281, %v285
  %v296 = vunpack.c.l.b16 %v17
  %v297 = vunpack.c.h.b16 %v17
  %v298 = vunpack.c.l.b16 %v18
  %v299 = vunpack.c.h.b16 %v18
  %v300 = vunpack.c.l.b16 %v19
  %v301 = vunpack.c.h.b16 %v19
  %v302 = vunpack.c.l.b16 %v20
  %v303 = vunpack.c.h.b16 %v20
  %v304 = vunpack.c.l.b16 %v21
  %v305 = vunpack.c.h.b16 %v21
  %v306 = vunpack.c.l.b16 %v22
  %v307 = vunpack.c.h.b16 %v22
  %v308 = vunpack.c.l.b16 %v23
  %v309 = vunpack.c.h.b16 %v23
  %v310 = vunpack.c.l.b16 %v24
  %v311 = vunpack.c.h.b16 %v24
  %v312 = vpack.c.b16 %v296, %v296
  %v313 = vpack.c.b16 %v297, %v297
  %v314 = vpack.c.b16 %v298, %v298
  %v315 = vpack.c.b16 %v299, %v299
  %v316 = vpack.c.b16 %v300, %v300
  %v317 = vpack.c.b16 %v301, %v301
  %v318 = vpack.c.b16 %v302, %v302
  %v319 = vpack.c.b16 %v303, %v303
  %v320 = vpack.c.b16 %v304, %v304
  %v321 = vpack.c.b16 %v305, %v305
  %v322 = vpack.c.b16 %v306, %v306
  %v323 = vpack.c.b16 %v307, %v307
  %v324 = vpack.c.b16 %v308, %v308
  %v325 = vpack.c.b16 %v309, %v309
  %v326 = vpack.c.b16 %v310, %v310
  %v327 = vpack.c.b16 %v311, %v311
  %v600 = vunpack.c.l.b16 %v25
  %v601 = vunpack.c.l.b16 %v26
  %v602 = vunpack.c.l.b16 %v27
  %v603 = vunpack.c.l.b16 %v28
  %v604 = vunpack.c.l.b16 %v29
  %v605 = vunpack.c.l.b16 %v30
  %v606 = vunpack.c.l.b16 %v31
  %v607 = vunpack.c.l.b16 %v32
  %v608 = vunpack.c.l.b16 %v33
  %v609 = vunpack.c.l.b16 %v34
  %v610 = vunpack.c.l.b16 %v35
  %v611 = vunpack.c.l.b16 %v36
  %v612 = vunpack.c.l.b16 %v37
  %v613 = vunpack.c.l.b16 %v38
  %v614 = vunpack.c.l.b16 %v39
  %v615 = vunpack.c.l.b16 %v40
  %v616 = vunpack.c.l.b16 %v41
  %v617 = vunpack.c.l.b16 %v42
  %v618 = vunpack.c.l.b16 %v43
  %v619 = vunpack.c.l.b16 %v44
  %v620 = vunpack.c.l.b16 %v45
  %v621 = vunpack.c.l.b16 %v46
  %v622 = vunpack.c.l.b16 %v47
  %v623 = vunpack.c.l.b16 %v48
  %v624 = vunpack.c.l.b16 %v49
  %v625 = vunpack.c.l.b16 %v50
  %v626 = vunpack.c.l.b16 %v51
  %v627 = vunpack.c.l.b16 %v52
  %v628 = vunpack.c.l.b16 %v53
  %v629 = vunpack.c.l.b16 %v54
  %v630 = vunpack.c.l.b16 %v55
  %v631 = vunpack.c.l.b16 %v56
  %v632 = vunpack.c.l.b16 %v57
  %v633 = vunpack.c.l.b16 %v58
  %v634 = vunpack.c.l.b16 %v59
  %v635 = vunpack.c.l.b16 %v60
  %v636 = vunpack.c.l.b16 %v61
  %v637 = vunpack.c.l.b16 %v62
  %v638 = vunpack.c.l.b16 %v63
  %v639 = vunpack.c.l.b16 %v64
  %v640 = vunpack.c.l.b16 %v65
  %v641 = vunpack.c.l.b16 %v66
  %v642 = vunpack.c.l.b16 %v67
  %v643 = vunpack.c.l.b16 %v68
  %v644 = vunpack.c.l.b16 %v69
  %v645 = vunpack.c.l.b16 %v70
  %v646 = vunpack.c.l.b16 %v71
  %v647 = vunpack.c.l.b16 %v72
  %v648 = vunpack.c.l.b16 %v73
  %v649 = vunpack.c.l.b16 %v74
  %v650 = vunpack.c.l.b16 %v75
  %v651 = vunpack.c.l.b16 %v76
  %v652 = vunpack.c.l.b16 %v77
  %v653 = vunpack.c.l.b16 %v78
  %v654 = vunpack.c.l.b16 %v79
  %v655 = vunpack.c.l.b16 %v80
  %v656 = vunpack.c.l.b16 %v81
  %v657 = vunpack.c.l.b16 %v82
  %v658 = vunpack.c.l.b16 %v83
  %v659 = vunpack.c.l.b16 %v84
  %v660 = vunpack.c.l.b16 %v85
  %v661 = vunpack.c.l.b16 %v86
  %v662 = vunpack.c.l.b16 %v87
  %v663 = vunpack.c.l.b16 %v88
  %v664 = vunpack.c.l.b16 %v89
  %v665 = vunpack.c.l.b16 %v90
  %v666 = vunpack.c.l.b16 %v91
  %v667 = vunpack.c.l.b16 %v92
  %v668 = vunpack.c.l.b16 %v93
  %v669 = vunpack.c.l.b16 %v94
  %v670 = vunpack.c.l.b16 %v95
  %v671 = vunpack.c.l.b16 %v96
  %v672 = vunpack.c.l.b16 %v97
  %v673 = vunpack.c.l.b16 %v98
  %v674 = vunpack.c.l.b16 %v99
  %v675 = vunpack.c.l.b16 %v100
  %v676 = vunpack.c.l.b16 %v101
  %v677 = vunpack.c.l.b16 %v102
  %v678 = vunpack.c.l.b16 %v103
  %v679 = vunpack.c.l.b16 %v104
  %v680 = vunpack.c.l.b16 %v105
  %v681 = vunpack.c.l.b16 %v106
  %v682 = vunpack.c.l.b16 %v107
  %v683 = vunpack.c.l.b16 %v108
  %v684 = vunpack.c.l.b16 %v109
  %v685 = vunpack.c.l.b16 %v110
  %v686 = vunpack.c.l.b16 %v111
  %v687 = vunpack.c.l.b16 %v112
  %v688 = vunpack.c.l.b16 %v113
  %v689 = vunpack.c.l.b16 %v114
  %v690 = vunpack.c.l.b16 %v115
  %v691 = vunpack.c.l.b16 %v116
  %v692 = vunpack.c.l.b16 %v117
  %v693 = vunpack.c.l.b16 %v118
  %v694 = vunpack.c.l.b16 %v119
  %v695 = vunpack.c.l.b16 %v120
  %v696 = vunpack.c.l.b16 %v121
  %v697 = vunpack.c.l.b16 %v122
  %v698 = vunpack.c.l.b16 %v123
  %v699 = vunpack.c.l.b16 %v124
  %v700 = vunpack.c.l.b16 %v125
  %v701 = vunpack.c.l.b16 %v126
  %v702 = vunpack.c.l.b16 %v127
  %v703 = vunpack.c.l.b16 %v128
  %v704 = vunpack.c.l.b16 %v129
  %v705 = vunpack.c.l.b16 %v130
  %v706 = vunpack.c.l.b16 %v131
  %v707 = vunpack.c.l.b16 %v132
  %v708 = vunpack.c.l.b16 %v133
  %v709 = vunpack.c.l.b16 %v134
  %v710 = vunpack.c.l.b16 %v135
  %v711 = vunpack.c.l.b16 %v136
  %v712 = vunpack.c.l.b16 %v137
  %v713 = vunpack.c.l.b16 %v138
  %v714 = vunpack.c.l.b16 %v139
  %v715 = vunpack.c.l.b16 %v140
  %v716 = vunpack.c.l.b16 %v141
  %v717 = vunpack.c.l.b16 %v142
  %v718 = vunpack.c.l.b16 %v143
  %v719 = vunpack.c.l.b16 %v144
  %v720 = vunpack.c.l.b16 %v145
  %v721 = vunpack.c.l.b16 %v146
  %v722 = vunpack.c.l.b16 %v147
  %v723 = vunpack.c.l.b16 %v148
  %v724 = vunpack.c.l.b16 %v149
  %v725 = vunpack.c.l.b16 %v150
  %v726 = vunpack.c.l.b16 %v151
  %v727 = vunpack.c.l.b16 %v152
  %v728 = vunpack.c.l.b16 %v153
  %v729 = vunpack.c.l.b16 %v154
  %v730 = vunpack.c.l.b16 %v155
  %v731 = vunpack.c.l.b16 %v156
  %v732 = vunpack.c.l.b16 %v157
  %v733 = vunpack.c.l.b16 %v158
  %v734 = vunpack.c.l.b16 %v159
  %v735 = vunpack.c.l.b16 %v160
  %v736 = vunpack.c.l.b16 %v161
  %v737 = vunpack.c.l.b16 %v162
  %v738 = vunpack.c.l.b16 %v163
  %v739 = vunpack.c.l.b16 %v164
  %v740 = vunpack.c.l.b16 %v165
  %v741 = vunpack.c.l.b16 %v166
  %v742 = vunpack.c.l.b16 %v167
  %v743 = vunpack.c.l.b16 %v168
  %v744 = vunpack.c.l.b16 %v169
  %v745 = vunpack.c.l.b16 %v170
  %v746 = vunpack.c.l.b16 %v171
  %v747 = vunpack.c.l.b16 %v172
  %v748 = vunpack.c.l.b16 %v173
  %v749 = vunpack.c.l.b16 %v174
  %v750 = vunpack.c.l.b16 %v175
  %v751 = vunpack.c.l.b16 %v176
  %v752 = vunpack.c.l.b16 %v177
  %v753 = vunpack.c.l.b16 %v178
  %v754 = vunpack.c.l.b16 %v179
  %v755 = vunpack.c.l.b16 %v180
  %v756 = vunpack.c.l.b16 %v181
  %v757 = vunpack.c.l.b16 %v182
  %v758 = vunpack.c.l.b16 %v183
  %v759 = vunpack.c.l.b16 %v184
  %v760 = vunpack.c.l.b16 %v185
  %v761 = vunpack.c.l.b16 %v186
  %v762 = vunpack.c.l.b16 %v187
  %v763 = vunpack.c.l.b16 %v188
  %v764 = vunpack.c.l.b16 %v189
  %v765 = vunpack.c.l.b16 %v190
  %v766 = vunpack.c.l.b16 %v191
  %v767 = vunpack.c.l.b16 %v192
  %v768 = vunpack.c.l.b16 %v193
  %v769 = vunpack.c.l.b16 %v194
  %v770 = vunpack.c.l.b16 %v195
  %v771 = vunpack.c.l.b16 %v196
  %v772 = vunpack.c.l.b16 %v197
  %v773 = vunpack.c.l.b16 %v198
  %v774 = vunpack.c.l.b16 %v199
  %v775 = vunpack.c.l.b16 %v200
  %v776 = vunpack.c.l.b16 %v201
  %v777 = vunpack.c.l.b16 %v202
  %v778 = vunpack.c.l.b16 %v203
  %v779 = vunpack.c.l.b16 %v204
  %v780 = vunpack.c.l.b16 %v205
  %v781 = vunpack.c.l.b16 %v206
  %v782 = vunpack.c.l.b16 %v207
  %v783 = vunpack.c.l.b16 %v208
  %v784 = vunpack.c.l.b16 %v209
  %v785 = vunpack.c.l.b16 %v210
  %v786 = vunpack.c.l.b16 %v211
  %v787 = vunpack.c.l.b16 %v212
  %v788 = vunpack.c.l.b16 %v213
  %v789 = vunpack.c.l.b16 %v214
  %v790 = vunpack.c.l.b16 %v215
  %v791 = vunpack.c.l.b16 %v216
  %v792 = vunpack.c.l.b16 %v217
  %v793 = vunpack.c.l.b16 %v218
  %v794 = vunpack.c.l.b16 %v219
  %v795 = vunpack.c.l.b16 %v220
  %v796 = vunpack.c.l.b16 %v221
  %v797 = vunpack.c.l.b16 %v222
  %v798 = vunpack.c.l.b16 %v223
  %v799 = vunpack.c.l.b16 %v224
  %v800 = vunpack.c.l.b16 %v225
  %v801 = vunpack.c.l.b16 %v226
  %v802 = vunpack.c.l.b16 %v227
  %v803 = vunpack.c.l.b16 %v228
  %v804 = vunpack.c.l.b16 %v229
  %v805 = vunpack.c.l.b16 %v230
  %v806 = vunpack.c.l.b16 %v231
  %v807 = vunpack.c.l.b16 %v232
  %v808 = vunpack.c.l.b16 %v233
  %v809 = vunpack.c.l.b16 %v234
  %v810 = vunpack.c.l.b16 %v235
  %v811 = vunpack.c.l.b16 %v236
  %v812 = vunpack.c.l.b16 %v237
  %v813 = vunpack.c.l.b16 %v238
  %v814 = vunpack.c.l.b16 %v239
  %v815 = vunpack.c.l.b16 %v240
  %v816 = vunpack.c.l.b16 %v241
  %v817 = vunpack.c.l.b16 %v242
  %v818 = vunpack.c.l.b16 %v243
  %v819 = vunpack.c.l.b16 %v244
  %v820 = vunpack.c.l.b16 %v245
  %v821 = vunpack.c.l.b16 %v246
  %v822 = vunpack.c.l.b16 %v247
  %v823 = vunpack.c.l.b16 %v248
  %v824 = vunpack.c.l.b16 %v249
  %v825 = vunpack.c.l.b16 %v250
  %v826 = vunpack.c.l.b16 %v251
  %v827 = vunpack.c.l.b16 %v252
  %v828 = vunpack.c.l.b16 %v253
  %v829 = vunpack.c.l.b16 %v254
  %v830 = vunpack.c.l.b16 %v255
  %v831 = vunpack.c.l.b16 %v256
  %v832 = vunpack.c.l.b16 %v257
  %v833 = vunpack.c.l.b16 %v258
  %v834 = vunpack.c.l.b16 %v259
  %v835 = vunpack.c.l.b16 %v260
  %v836 = vunpack.c.l.b16 %v261
  %v837 = vunpack.c.l.b16 %v262
  %v838 = vunpack.c.l.b16 %v263
  %v839 = vunpack.c.l.b16 %v264
  %v840 = vunpack.c.l.b16 %v265
  %v841 = vunpack.c.l.b16 %v266
  %v842 = vunpack.c.l.b16 %v267
  %v843 = vunpack.c.l.b16 %v268
  %v844 = vunpack.c.l.b16 %v269
  %v845 = vunpack.c.l.b16 %v270
  %v846 = vunpack.c.l.b16 %v271
  %v847 = vunpack.c.l.b16 %v272
  %v848 = vunpack.c.l.b16 %v273
  %v849 = vunpack.c.l.b16 %v274
  %v850 = vunpack.c.l.b16 %v275
  %v851 = vunpack.c.l.b16 %v276
  %v852 = vunpack.c.l.b16 %v277
  %v853 = vunpack.c.l.b16 %v278
  %v854 = vunpack.c.l.b16 %v279
  %v855 = vunpack.c.l.b16 %v280
  %v856 = vpack.c.b16 %v601, %v600
  %v857 = vpack.c.b16 %v603, %v602
  %v858 = vpack.c.b16 %v605, %v604
  %v859 = vpack.c.b16 %v607, %v606
  %v860 = vpack.c.b16 %v609, %v608
  %v861 = vpack.c.b16 %v611, %v610
  %v862 = vpack.c.b16 %v613, %v612
  %v863 = vpack.c.b16 %v615, %v614
  %v864 = vpack.c.b16 %v617, %v616
  %v865 = vpack.c.b16 %v619, %v618
  %v866 = vpack.c.b16 %v621, %v620
  %v867 = vpack.c.b16 %v623, %v622
  %v868 = vpack.c.b16 %v625, %v624
  %v869 = vpack.c.b16 %v627, %v626
  %v870 = vpack.c.b16 %v629, %v628
  %v871 = vpack.c.b16 %v631, %v630
  %v872 = vpack.c.b16 %v633, %v632
  %v873 = vpack.c.b16 %v635, %v634
  %v874 = vpack.c.b16 %v637, %v636
  %v875 = vpack.c.b16 %v639, %v638
  %v876 = vpack.c.b16 %v641, %v640
  %v877 = vpack.c.b16 %v643, %v642
  %v878 = vpack.c.b16 %v645, %v644
  %v879 = vpack.c.b16 %v647, %v646
  %v880 = vpack.c.b16 %v649, %v648
  %v881 = vpack.c.b16 %v651, %v650
  %v882 = vpack.c.b16 %v653, %v652
  %v883 = vpack.c.b16 %v655, %v654
  %v884 = vpack.c.b16 %v657, %v656
  %v885 = vpack.c.b16 %v659, %v658
  %v886 = vpack.c.b16 %v661, %v660
  %v887 = vpack.c.b16 %v663, %v662
  %v888 = vpack.c.b16 %v665, %v664
  %v889 = vpack.c.b16 %v667, %v666
  %v890 = vpack.c.b16 %v669, %v668
  %v891 = vpack.c.b16 %v671, %v670
  %v892 = vpack.c.b16 %v673, %v672
  %v893 = vpack.c.b16 %v675, %v674
  %v894 = vpack.c.b16 %v677, %v676
  %v895 = vpack.c.b16 %v679, %v678
  %v896 = vpack.c.b16 %v681, %v680
  %v897 = vpack.c.b16 %v683, %v682
  %v898 = vpack.c.b16 %v685, %v684
  %v899 = vpack.c.b16 %v687, %v686
  %v900 = vpack.c.b16 %v689, %v688
  %v901 = vpack.c.b16 %v691, %v690
  %v902 = vpack.c.b16 %v693, %v692
  %v903 = vpack.c.b16 %v695, %v694
  %v904 = vpack.c.b16 %v697, %v696
  %v905 = vpack.c.b16 %v699, %v698
  %v906 = vpack.c.b16 %v701, %v700
  %v907 = vpack.c.b16 %v703, %v702
  %v908 = vpack.c.b16 %v705, %v704
  %v909 = vpack.c.b16 %v707, %v706
  %v910 = vpack.c.b16 %v709, %v708
  %v911 = vpack.c.b16 %v711, %v710
  %v912 = vpack.c.b16 %v713, %v712
  %v913 = vpack.c.b16 %v715, %v714
  %v914 = vpack.c.b16 %v717, %v716
  %v915 = vpack.c.b16 %v719, %v718
  %v916 = vpack.c.b16 %v721, %v720
  %v917 = vpack.c.b16 %v723, %v722
  %v918 = vpack.c.b16 %v725, %v724
  %v919 = vpack.c.b16 %v727, %v726
  %v920 = vpack.c.b16 %v729, %v728
  %v921 = vpack.c.b16 %v731, %v730
  %v922 = vpack.c.b16 %v733, %v732
  %v923 = vpack.c.b16 %v735, %v734
  %v924 = vpack.c.b16 %v737, %v736
  %v925 = vpack.c.b16 %v739, %v738
  %v926 = vpack.c.b16 %v741, %v740
  %v927 = vpack.c.b16 %v743, %v742
  %v928 = vpack.c.b16 %v745, %v744
  %v929 = vpack.c.b16 %v747, %v746
  %v930 = vpack.c.b16 %v749, %v748
  %v931 = vpack.c.b16 %v751, %v750
  %v932 = vpack.c.b16 %v753, %v752
  %v933 = vpack.c.b16 %v755, %v754
  %v934 = vpack.c.b16 %v757, %v756
  %v935 = vpack.c.b16 %v759, %v758
  %v936 = vpack.c.b16 %v761, %v760
  %v937 = vpack.c.b16 %v763, %v762
  %v938 = vpack.c.b16 %v765, %v764
  %v939 = vpack.c.b16 %v767, %v766
  %v940 = vpack.c.b16 %v769, %v768
  %v941 = vpack.c.b16 %v771, %v770
  %v942 = vpack.c.b16 %v773, %v772
  %v943 = vpack.c.b16 %v775, %v774
  %v944 = vpack.c.b16 %v777, %v776
  %v945 = vpack.c.b16 %v779, %v778
  %v946 = vpack.c.b16 %v781, %v780
  %v947 = vpack.c.b16 %v783, %v782
  %v948 = vpack.c.b16 %v785, %v784
  %v949 = vpack.c.b16 %v787, %v786
  %v950 = vpack.c.b16 %v789, %v788
  %v951 = vpack.c.b16 %v791, %v790
  %v952 = vpack.c.b16 %v793, %v792
  %v953 = vpack.c.b16 %v795, %v794
  %v954 = vpack.c.b16 %v797, %v796
  %v955 = vpack.c.b16 %v799, %v798
  %v956 = vpack.c.b16 %v801, %v800
  %v957 = vpack.c.b16 %v803, %v802
  %v958 = vpack.c.b16 %v805, %v804
  %v959 = vpack.c.b16 %v807, %v806
  %v960 = vpack.c.b16 %v809, %v808
  %v961 = vpack.c.b16 %v811, %v810
  %v962 = vpack.c.b16 %v813, %v812
  %v963 = vpack.c.b16 %v815, %v814
  %v964 = vpack.c.b16 %v817, %v816
  %v965 = vpack.c.b16 %v819, %v818
  %v966 = vpack.c.b16 %v821, %v820
  %v967 = vpack.c.b16 %v823, %v822
  %v968 = vpack.c.b16 %v825, %v824
  %v969 = vpack.c.b16 %v827, %v826
  %v970 = vpack.c.b16 %v829, %v828
  %v971 = vpack.c.b16 %v831, %v830
  %v972 = vpack.c.b16 %v833, %v832
  %v973 = vpack.c.b16 %v835, %v834
  %v974 = vpack.c.b16 %v837, %v836
  %v975 = vpack.c.b16 %v839, %v838
  %v976 = vpack.c.b16 %v841, %v840
  %v977 = vpack.c.b16 %v843, %v842
  %v978 = vpack.c.b16 %v845, %v844
  %v979 = vpack.c.b16 %v847, %v846
  %v980 = vpack.c.b16 %v849, %v848
  %v981 = vpack.c.b16 %v851, %v850
  %v982 = vpack.c.b16 %v853, %v852
  %v983 = vpack.c.b16 %v855, %v854
  %1112 = vmatprep.subr.bf16.mxu0 0
  %1113 = vmatpush1.bf16.msra.mxu0 %v856
  %1114 = vmatprep.subr.bf16.mxu0 0
  %1115 = vmatpush1.bf16.msra.mxu0 %v857
  %1116 = vmatprep.subr.bf16.mxu0 0
  %1117 = vmatpush1.bf16.msra.mxu0 %v858
  %1118 = vmatprep.subr.bf16.mxu0 0
  %1119 = vmatpush1.bf16.msra.mxu0 %v859
  %1120 = vmatprep.subr.bf16.mxu0 0
  %1121 = vmatpush1.bf16.msra.mxu0 %v860
  %1122 = vmatprep.subr.bf16.mxu0 0
  %1123 = vmatpush1.bf16.msra.mxu0 %v861
  %1124 = vmatprep.subr.bf16.mxu0 0
  %1125 = vmatpush1.bf16.msra.mxu0 %v862
  %1126 = vmatprep.subr.bf16.mxu0 0
  %1127 = vmatpush1.bf16.msra.mxu0 %v863
  %1128 = vmatprep.subr.bf16.mxu0 0
  %1129 = vmatpush1.bf16.msra.mxu0 %v864
  %1130 = vmatprep.subr.bf16.mxu0 0
  %1131 = vmatpush1.bf16.msra.mxu0 %v865
  %1132 = vmatprep.subr.bf16.mxu0 0
  %1133 = vmatpush1.bf16.msra.mxu0 %v866
  %1134 = vmatprep.subr.bf16.mxu0 0
  %1135 = vmatpush1.bf16.msra.mxu0 %v867
  %1136 = vmatprep.subr.bf16.mxu0 0
  %1137 = vmatpush1.bf16.msra.mxu0 %v868
  %1138 = vmatprep.subr.bf16.mxu0 0
  %1139 = vmatpush1.bf16.msra.mxu0 %v869
  %1140 = vmatprep.subr.bf16.mxu0 0
  %1141 = vmatpush1.bf16.msra.mxu0 %v870
  %1142 = vmatprep.subr.bf16.mxu0 0
  %1143 = vmatpush1.bf16.msra.mxu0 %v871
  %1144 = vmatprep.mubr.bf16.mxu0 %v313
  %1145 = vmatmul.mubr.bf16.gmra.mrb[0].mxu0 %v312
  %v1146 = vpop.f32.mrb[0].mxu0
  %v1147 = vadd.f32 %v286, %v1146
  %v1148 = vpop.f32.mrb[0].mxu0
  %v1149 = vpop.f32.mrb[0].mxu0
  %v1150 = vpop.f32.mrb[0].mxu0
  %1151 = vdwg.mxu0
  %1152 = vmatprep.subr.bf16.mxu0 0
  %1153 = vmatpush1.bf16.msra.mxu0 %v872
  %1154 = vmatprep.subr.bf16.mxu0 0
  %1155 = vmatpush1.bf16.msra.mxu0 %v873
  %1156 = vmatprep.subr.bf16.mxu0 0
  %1157 = vmatpush1.bf16.msra.mxu0 %v874
  %1158 = vmatprep.subr.bf16.mxu0 0
  %1159 = vmatpush1.bf16.msra.mxu0 %v875
  %1160 = vmatprep.subr.bf16.mxu0 0
  %1161 = vmatpush1.bf16.msra.mxu0 %v876
  %1162 = vmatprep.subr.bf16.mxu0 0
  %1163 = vmatpush1.bf16.msra.mxu0 %v877
  %1164 = vmatprep.subr.bf16.mxu0 0
  %1165 = vmatpush1.bf16.msra.mxu0 %v878
  %1166 = vmatprep.subr.bf16.mxu0 0
  %1167 = vmatpush1.bf16.msra.mxu0 %v879
  %1168 = vmatprep.subr.bf16.mxu0 0
  %1169 = vmatpush1.bf16.msra.mxu0 %v880
  %1170 = vmatprep.subr.bf16.mxu0 0
  %1171 = vmatpush1.bf16.msra.mxu0 %v881
  %1172 = vmatprep.subr.bf16.mxu0 0
  %1173 = vmatpush1.bf16.msra.mxu0 %v882
  %1174 = vmatprep.subr.bf16.mxu0 0
  %1175 = vmatpush1.bf16.msra.mxu0 %v883
  %1176 = vmatprep.subr.bf16.mxu0 0
  %1177 = vmatpush1.bf16.msra.mxu0 %v884
  %1178 = vmatprep.subr.bf16.mxu0 0
  %1179 = vmatpush1.bf16.msra.mxu0 %v885
  %1180 = vmatprep.subr.bf16.mxu0 0
  %1181 = vmatpush1.bf16.msra.mxu0 %v886
  %1182 = vmatprep.subr.bf16.mxu0 0
  %1183 = vmatpush1.bf16.msra.mxu0 %v887
  %1184 = vmatprep.mubr.bf16.mxu0 %v315
  %1185 = vmatmul.mubr.bf16.gmra.mrb[0].mxu0 %v314
  %v1186 = vpop.f32.mrb[0].mxu0
  %v1187 = vadd.f32 %v1147, %v1186
  %v1188 = vpop.f32.mrb[0].mxu0
  %v1189 = vpop.f32.mrb[0].mxu0
  %v1190 = vpop.f32.mrb[0].mxu0
  %1191 = vdwg.mxu0
  %1192 = vmatprep.subr.bf16.mxu0 0
  %1193 = vmatpush1.bf16.msra.mxu0 %v888
  %1194 = vmatprep.subr.bf16.mxu0 0
  %1195 = vmatpush1.bf16.msra.mxu0 %v889
  %1196 = vmatprep.subr.bf16.mxu0 0
  %1197 = vmatpush1.bf16.msra.mxu0 %v890
  %1198 = vmatprep.subr.bf16.mxu0 0
  %1199 = vmatpush1.bf16.msra.mxu0 %v891
  %1200 = vmatprep.subr.bf16.mxu0 0
  %1201 = vmatpush1.bf16.msra.mxu0 %v892
  %1202 = vmatprep.subr.bf16.mxu0 0
  %1203 = vmatpush1.bf16.msra.mxu0 %v893
  %1204 = vmatprep.subr.bf16.mxu0 0
  %1205 = vmatpush1.bf16.msra.mxu0 %v894
  %1206 = vmatprep.subr.bf16.mxu0 0
  %1207 = vmatpush1.bf16.msra.mxu0 %v895
  %1208 = vmatprep.subr.bf16.mxu0 0
  %1209 = vmatpush1.bf16.msra.mxu0 %v896
  %1210 = vmatprep.subr.bf16.mxu0 0
  %1211 = vmatpush1.bf16.msra.mxu0 %v897
  %1212 = vmatprep.subr.bf16.mxu0 0
  %1213 = vmatpush1.bf16.msra.mxu0 %v898
  %1214 = vmatprep.subr.bf16.mxu0 0
  %1215 = vmatpush1.bf16.msra.mxu0 %v899
  %1216 = vmatprep.subr.bf16.mxu0 0
  %1217 = vmatpush1.bf16.msra.mxu0 %v900
  %1218 = vmatprep.subr.bf16.mxu0 0
  %1219 = vmatpush1.bf16.msra.mxu0 %v901
  %1220 = vmatprep.subr.bf16.mxu0 0
  %1221 = vmatpush1.bf16.msra.mxu0 %v902
  %1222 = vmatprep.subr.bf16.mxu0 0
  %1223 = vmatpush1.bf16.msra.mxu0 %v903
  %1224 = vmatprep.mubr.bf16.mxu0 %v317
  %1225 = vmatmul.mubr.bf16.gmra.mrb[0].mxu0 %v316
  %v1226 = vpop.f32.mrb[0].mxu0
  %v1227 = vadd.f32 %v1187, %v1226
  %v1228 = vpop.f32.mrb[0].mxu0
  %v1229 = vpop.f32.mrb[0].mxu0
  %v1230 = vpop.f32.mrb[0].mxu0
  %1231 = vdwg.mxu0
  %1232 = vmatprep.subr.bf16.mxu0 0
  %1233 = vmatpush1.bf16.msra.mxu0 %v904
  %1234 = vmatprep.subr.bf16.mxu0 0
  %1235 = vmatpush1.bf16.msra.mxu0 %v905
  %1236 = vmatprep.subr.bf16.mxu0 0
  %1237 = vmatpush1.bf16.msra.mxu0 %v906
  %1238 = vmatprep.subr.bf16.mxu0 0
  %1239 = vmatpush1.bf16.msra.mxu0 %v907
  %1240 = vmatprep.subr.bf16.mxu0 0
  %1241 = vmatpush1.bf16.msra.mxu0 %v908
  %1242 = vmatprep.subr.bf16.mxu0 0
  %1243 = vmatpush1.bf16.msra.mxu0 %v909
  %1244 = vmatprep.subr.bf16.mxu0 0
  %1245 = vmatpush1.bf16.msra.mxu0 %v910
  %1246 = vmatprep.subr.bf16.mxu0 0
  %1247 = vmatpush1.bf16.msra.mxu0 %v911
  %1248 = vmatprep.subr.bf16.mxu0 0
  %1249 = vmatpush1.bf16.msra.mxu0 %v912
  %1250 = vmatprep.subr.bf16.mxu0 0
  %1251 = vmatpush1.bf16.msra.mxu0 %v913
  %1252 = vmatprep.subr.bf16.mxu0 0
  %1253 = vmatpush1.bf16.msra.mxu0 %v914
  %1254 = vmatprep.subr.bf16.mxu0 0
  %1255 = vmatpush1.bf16.msra.mxu0 %v915
  %1256 = vmatprep.subr.bf16.mxu0 0
  %1257 = vmatpush1.bf16.msra.mxu0 %v916
  %1258 = vmatprep.subr.bf16.mxu0 0
  %1259 = vmatpush1.bf16.msra.mxu0 %v917
  %1260 = vmatprep.subr.bf16.mxu0 0
  %1261 = vmatpush1.bf16.msra.mxu0 %v918
  %1262 = vmatprep.subr.bf16.mxu0 0
  %1263 = vmatpush1.bf16.msra.mxu0 %v919
  %1264 = vmatprep.mubr.bf16.mxu0 %v319
  %1265 = vmatmul.mubr.bf16.gmra.mrb[0].mxu0 %v318
  %v1266 = vpop.f32.mrb[0].mxu0
  %v1267 = vadd.f32 %v1227, %v1266
  %v1268 = vpop.f32.mrb[0].mxu0
  %v1269 = vpop.f32.mrb[0].mxu0
  %v1270 = vpop.f32.mrb[0].mxu0
  %1271 = vdwg.mxu0
  %1272 = vmatprep.subr.bf16.mxu0 0
  %1273 = vmatpush1.bf16.msra.mxu0 %v920
  %1274 = vmatprep.subr.bf16.mxu0 0
  %1275 = vmatpush1.bf16.msra.mxu0 %v921
  %1276 = vmatprep.subr.bf16.mxu0 0
  %1277 = vmatpush1.bf16.msra.mxu0 %v922
  %1278 = vmatprep.subr.bf16.mxu0 0
  %1279 = vmatpush1.bf16.msra.mxu0 %v923
  %1280 = vmatprep.subr.bf16.mxu0 0
  %1281 = vmatpush1.bf16.msra.mxu0 %v924
  %1282 = vmatprep.subr.bf16.mxu0 0
  %1283 = vmatpush1.bf16.msra.mxu0 %v925
  %1284 = vmatprep.subr.bf16.mxu0 0
  %1285 = vmatpush1.bf16.msra.mxu0 %v926
  %1286 = vmatprep.subr.bf16.mxu0 0
  %1287 = vmatpush1.bf16.msra.mxu0 %v927
  %1288 = vmatprep.subr.bf16.mxu0 0
  %1289 = vmatpush1.bf16.msra.mxu0 %v928
  %1290 = vmatprep.subr.bf16.mxu0 0
  %1291 = vmatpush1.bf16.msra.mxu0 %v929
  %1292 = vmatprep.subr.bf16.mxu0 0
  %1293 = vmatpush1.bf16.msra.mxu0 %v930
  %1294 = vmatprep.subr.bf16.mxu0 0
  %1295 = vmatpush1.bf16.msra.mxu0 %v931
  %1296 = vmatprep.subr.bf16.mxu0 0
  %1297 = vmatpush1.bf16.msra.mxu0 %v932
  %1298 = vmatprep.subr.bf16.mxu0 0
  %1299 = vmatpush1.bf16.msra.mxu0 %v933
  %1300 = vmatprep.subr.bf16.mxu0 0
  %1301 = vmatpush1.bf16.msra.mxu0 %v934
  %1302 = vmatprep.subr.bf16.mxu0 0
  %1303 = vmatpush1.bf16.msra.mxu0 %v935
  %1304 = vmatprep.mubr.bf16.mxu0 %v321
  %1305 = vmatmul.mubr.bf16.gmra.mrb[0].mxu0 %v320
  %v1306 = vpop.f32.mrb[0].mxu0
  %v1307 = vadd.f32 %v1267, %v1306
  %v1308 = vpop.f32.mrb[0].mxu0
  %v1309 = vpop.f32.mrb[0].mxu0
  %v1310 = vpop.f32.mrb[0].mxu0
  %1311 = vdwg.mxu0
  %1312 = vmatprep.subr.bf16.mxu0 0
  %1313 = vmatpush1.bf16.msra.mxu0 %v936
  %1314 = vmatprep.subr.bf16.mxu0 0
  %1315 = vmatpush1.bf16.msra.mxu0 %v937
  %1316 = vmatprep.subr.bf16.mxu0 0
  %1317 = vmatpush1.bf16.msra.mxu0 %v938
  %1318 = vmatprep.subr.bf16.mxu0 0
  %1319 = vmatpush1.bf16.msra.mxu0 %v939
  %1320 = vmatprep.subr.bf16.mxu0 0
  %1321 = vmatpush1.bf16.msra.mxu0 %v940
  %1322 = vmatprep.subr.bf16.mxu0 0
  %1323 = vmatpush1.bf16.msra.mxu0 %v941
  %1324 = vmatprep.subr.bf16.mxu0 0
  %1325 = vmatpush1.bf16.msra.mxu0 %v942
  %1326 = vmatprep.subr.bf16.mxu0 0
  %1327 = vmatpush1.bf16.msra.mxu0 %v943
  %1328 = vmatprep.subr.bf16.mxu0 0
  %1329 = vmatpush1.bf16.msra.mxu0 %v944
  %1330 = vmatprep.subr.bf16.mxu0 0
  %1331 = vmatpush1.bf16.msra.mxu0 %v945
  %1332 = vmatprep.subr.bf16.mxu0 0
  %1333 = vmatpush1.bf16.msra.mxu0 %v946
  %1334 = vmatprep.subr.bf16.mxu0 0
  %1335 = vmatpush1.bf16.msra.mxu0 %v947
  %1336 = vmatprep.subr.bf16.mxu0 0
  %1337 = vmatpush1.bf16.msra.mxu0 %v948
  %1338 = vmatprep.subr.bf16.mxu0 0
  %1339 = vmatpush1.bf16.msra.mxu0 %v949
  %1340 = vmatprep.subr.bf16.mxu0 0
  %1341 = vmatpush1.bf16.msra.mxu0 %v950
  %1342 = vmatprep.subr.bf16.mxu0 0
  %1343 = vmatpush1.bf16.msra.mxu0 %v951
  %1344 = vmatprep.mubr.bf16.mxu0 %v323
  %1345 = vmatmul.mubr.bf16.gmra.mrb[0].mxu0 %v322
  %v1346 = vpop.f32.mrb[0].mxu0
  %v1347 = vadd.f32 %v1307, %v1346
  %v1348 = vpop.f32.mrb[0].mxu0
  %v1349 = vpop.f32.mrb[0].mxu0
  %v1350 = vpop.f32.mrb[0].mxu0
  %1351 = vdwg.mxu0
  %1352 = vmatprep.subr.bf16.mxu0 0
  %1353 = vmatpush1.bf16.msra.mxu0 %v952
  %1354 = vmatprep.subr.bf16.mxu0 0
  %1355 = vmatpush1.bf16.msra.mxu0 %v953
  %1356 = vmatprep.subr.bf16.mxu0 0
  %1357 = vmatpush1.bf16.msra.mxu0 %v954
  %1358 = vmatprep.subr.bf16.mxu0 0
  %1359 = vmatpush1.bf16.msra.mxu0 %v955
  %1360 = vmatprep.subr.bf16.mxu0 0
  %1361 = vmatpush1.bf16.msra.mxu0 %v956
  %1362 = vmatprep.subr.bf16.mxu0 0
  %1363 = vmatpush1.bf16.msra.mxu0 %v957
  %1364 = vmatprep.subr.bf16.mxu0 0
  %1365 = vmatpush1.bf16.msra.mxu0 %v958
  %1366 = vmatprep.subr.bf16.mxu0 0
  %1367 = vmatpush1.bf16.msra.mxu0 %v959
  %1368 = vmatprep.subr.bf16.mxu0 0
  %1369 = vmatpush1.bf16.msra.mxu0 %v960
  %1370 = vmatprep.subr.bf16.mxu0 0
  %1371 = vmatpush1.bf16.msra.mxu0 %v961
  %1372 = vmatprep.subr.bf16.mxu0 0
  %1373 = vmatpush1.bf16.msra.mxu0 %v962
  %1374 = vmatprep.subr.bf16.mxu0 0
  %1375 = vmatpush1.bf16.msra.mxu0 %v963
  %1376 = vmatprep.subr.bf16.mxu0 0
  %1377 = vmatpush1.bf16.msra.mxu0 %v964
  %1378 = vmatprep.subr.bf16.mxu0 0
  %1379 = vmatpush1.bf16.msra.mxu0 %v965
  %1380 = vmatprep.subr.bf16.mxu0 0
  %1381 = vmatpush1.bf16.msra.mxu0 %v966
  %1382 = vmatprep.subr.bf16.mxu0 0
  %1383 = vmatpush1.bf16.msra.mxu0 %v967
  %1384 = vmatprep.mubr.bf16.mxu0 %v325
  %1385 = vmatmul.mubr.bf16.gmra.mrb[0].mxu0 %v324
  %v1386 = vpop.f32.mrb[0].mxu0
  %v1387 = vadd.f32 %v1347, %v1386
  %v1388 = vpop.f32.mrb[0].mxu0
  %v1389 = vpop.f32.mrb[0].mxu0
  %v1390 = vpop.f32.mrb[0].mxu0
  %1391 = vdwg.mxu0
  %1392 = vmatprep.subr.bf16.mxu0 0
  %1393 = vmatpush1.bf16.msra.mxu0 %v968
  %1394 = vmatprep.subr.bf16.mxu0 0
  %1395 = vmatpush1.bf16.msra.mxu0 %v969
  %1396 = vmatprep.subr.bf16.mxu0 0
  %1397 = vmatpush1.bf16.msra.mxu0 %v970
  %1398 = vmatprep.subr.bf16.mxu0 0
  %1399 = vmatpush1.bf16.msra.mxu0 %v971
  %1400 = vmatprep.subr.bf16.mxu0 0
  %1401 = vmatpush1.bf16.msra.mxu0 %v972
  %1402 = vmatprep.subr.bf16.mxu0 0
  %1403 = vmatpush1.bf16.msra.mxu0 %v973
  %1404 = vmatprep.subr.bf16.mxu0 0
  %1405 = vmatpush1.bf16.msra.mxu0 %v974
  %1406 = vmatprep.subr.bf16.mxu0 0
  %1407 = vmatpush1.bf16.msra.mxu0 %v975
  %1408 = vmatprep.subr.bf16.mxu0 0
  %1409 = vmatpush1.bf16.msra.mxu0 %v976
  %1410 = vmatprep.subr.bf16.mxu0 0
  %1411 = vmatpush1.bf16.msra.mxu0 %v977
  %1412 = vmatprep.subr.bf16.mxu0 0
  %1413 = vmatpush1.bf16.msra.mxu0 %v978
  %1414 = vmatprep.subr.bf16.mxu0 0
  %1415 = vmatpush1.bf16.msra.mxu0 %v979
  %1416 = vmatprep.subr.bf16.mxu0 0
  %1417 = vmatpush1.bf16.msra.mxu0 %v980
  %1418 = vmatprep.subr.bf16.mxu0 0
  %1419 = vmatpush1.bf16.msra.mxu0 %v981
  %1420 = vmatprep.subr.bf16.mxu0 0
  %1421 = vmatpush1.bf16.msra.mxu0 %v982
  %1422 = vmatprep.subr.bf16.mxu0 0
  %1423 = vmatpush1.bf16.msra.mxu0 %v983
  %1424 = vmatprep.mubr.bf16.mxu0 %v327
  %1425 = vmatmul.mubr.bf16.gmra.mrb[0].mxu0 %v326
  %v1426 = vpop.f32.mrb[0].mxu0
  %v1427 = vadd.f32 %v1387, %v1426
  %v1428 = vpop.f32.mrb[0].mxu0
  %v1429 = vpop.f32.mrb[0].mxu0
  %v1430 = vpop.f32.mrb[0].mxu0
  %1431 = vdwg.mxu0
  %1432 = vst [vmem:[%s3] sm:$0xff] %v1427
  %v1433 = vlaneseq
  %v1434 = vshrl.u32 %v1433, 7
  %s1435 = smul.u32 0, 8
  %v1436 = vstv %s1435
  %v1437 = vadd.s32 %v1434, %v1436
  %vm1438 = vcmp.lt.s32.totalorder %v1437, 8
  %v1439 = vsel %vm1438, %v1427, 0.0
  %v1440 = vrot.slane %v1439, 4
  %v1441 = vadd.f32 %v1439, %v1440
  %v1442 = vrot.slane %v1441, 2
  %v1443 = vadd.f32 %v1441, %v1442
  %v1444 = vrot.slane %v1443, 1
  %v1445 = vadd.f32 %v1443, %v1444
  %v1446 = vmul.f32 %v1439, %v1439
  %v1447 = vrot.slane %v1446, 4
  %v1448 = vadd.f32 %v1446, %v1447
  %v1449 = vrot.slane %v1448, 2
  %v1450 = vadd.f32 %v1448, %v1449
  %v1451 = vrot.slane %v1450, 1
  %v1452 = vadd.f32 %v1450, %v1451
  %vm1453 = vcmp.eq.s32.totalorder %v1434, 0
  %v1454 = vsel %vm1453, %v1445, 0.0
  %vm1455 = vcmp.eq.s32.totalorder %v1434, 1
  %v1456 = vsel %vm1455, %v1452, 0.0
  %v1457 = vadd.f32 %v1454, %v1456
  %p1458 = scmp.eq.s32.totalorder 0, 0
  // Predicated region
  $region14: #{n_layer_discriminator.11} parent=0 // pred_check
    %p1459 = pneg %p1458
  $region15: #{n_layer_discriminator.11} parent=0 // pred_check_branch
    %1461 = sbr.rel (%p1459) target = $region17
  $region16: #{n_layer_discriminator.11} parent=0 // pred_region
    %1462 = vst [vmem:[%s4] sm:$0xff] 0.0
  $region17: #{n_layer_discriminator.11} parent=0 // pred_fallthru
    _
  %v1463 = vld [vmem:[%s4] sm:$0xff]
  %v1464 = vadd.f32 %v1463, %v1457
  %1465 = vst [vmem:[%s4] sm:$0xff] %v1464
  // Predicated region
  $region18: #{n_layer_discriminator.11} parent=0 // pred_check
    _
  $region19: #{n_layer_discriminator.11} parent=0 // pred_check_branch
    %1467 = sbr.rel (0) target = $region21
  $region20: #{n_layer_discriminator.11} parent=0 // pred_region
    _
  $region21: #{n_layer_discriminator.11} parent=0 // pred_fallthru
    _
  // Predicated region
  $region22: #{n_layer_discriminator.11} parent=0 // pred_check
    _
  $region23: #{n_layer_discriminator.11} parent=0 // pred_check_branch
    %1469 = sbr.rel (0) target = $region25
  $region24: #{n_layer_discriminator.11} parent=0 // pred_region
    _
  $region25: #{n_layer_discriminator.11} parent=0 // pred_fallthru
    _
  // Predicated region
  $region26: #{n_layer_discriminator.11} parent=0 // pred_check
    _
  $region27: #{n_layer_discriminator.11} parent=0 // pred_check_branch
    %1471 = sbr.rel (0) target = $region29
  $region28: #{n_layer_discriminator.11} parent=0 // pred_region
    _
  $region29: #{n_layer_discriminator.11} parent=0 // pred_fallthru
    _
  // Predicated region
  $region30: #{n_layer_discriminator.11} parent=0 // pred_check
    _
  $region31: #{n_layer_discriminator.11} parent=0 // pred_check_branch
    %1473 = sbr.rel (0) target = $region33
  $region32: #{n_layer_discriminator.11} parent=0 // pred_region
    _
  $region33: #{n_layer_discriminator.11} parent=0 // pred_fallthru
    _

// kernel: n_layer_discriminator.13
$region0: #{n_layer_discriminator.13}
  #allocation0 [shape = 'u32[]', space=smem, size = 0x4, offset = 0x4, fixed_abs, tag = 'smem constant byte address 0x4 - core index']
  #allocation1 [shape = 'u32[144,128]{1,0:T(1,128)}', space=vmem, size = 0x12000, scoped, tag = 'internal scratch']
  %s0 = inlined_call_operand.vmem [shape: bf16[8,2048], index: 0, kind: input, shape index: {}]
  %s1 = inlined_call_operand.vmem [shape: bf16[2048,128], index: 1, kind: input, shape index: {}]
  %s2 = inlined_call_operand.vmem [shape: f32[1,128], index: 2, kind: input, shape index: {}]
  %s3 = inlined_call_operand.vmem [shape: f32[8,128], index: 3, kind: output, shape index: {0}]
  %s4 = inlined_call_operand.vmem [shape: f32[8,128], index: 4, kind: output, shape index: {1}]
  %5 = xla_tuple %s3, %s4
  %s6 = sld [smem:[#allocation0]]
  $region34: #{n_layer_discriminator.13} parent=0
    _
  %s8 = ssub.s32 1, %s6
  %s9 = scalar_select 0, %s8, %s6
  // Predicated region
  $region2: #{n_layer_discriminator.13} parent=0 // pred_check
    _
  $region3: #{n_layer_discriminator.13} parent=0 // pred_check_branch
    %11 = sbr.rel (0) target = $region5
  $region4: #{n_layer_discriminator.13} parent=0 // pred_region
    _
  $region5: #{n_layer_discriminator.13} parent=0 // pred_fallthru
    _
  // Predicated region
  $region6: #{n_layer_discriminator.13} parent=0 // pred_check
    _
  $region7: #{n_layer_discriminator.13} parent=0 // pred_check_branch
    %13 = sbr.rel (0) target = $region9
  $region8: #{n_layer_discriminator.13} parent=0 // pred_region
    _
  $region9: #{n_layer_discriminator.13} parent=0 // pred_fallthru
    _
  // Predicated region
  $region10: #{n_layer_discriminator.13} parent=0 // pred_check
    _
  $region11: #{n_layer_discriminator.13} parent=0 // pred_check_branch
    %15 = sbr.rel (0) target = $region13
  $region12: #{n_layer_discriminator.13} parent=0 // pred_region
    _
  $region13: #{n_layer_discriminator.13} parent=0 // pred_fallthru
    _
  %v17 = vld [vmem:[%s0] sm:$0xff]
  %v18 = vld [vmem:[%s0 + $0x8] sm:$0xff]
  %v19 = vld [vmem:[%s0 + $0x10] sm:$0xff]
  %v20 = vld [vmem:[%s0 + $0x18] sm:$0xff]
  %v21 = vld [vmem:[%s0 + $0x20] sm:$0xff]
  %v22 = vld [vmem:[%s0 + $0x28] sm:$0xff]
  %v23 = vld [vmem:[%s0 + $0x30] sm:$0xff]
  %v24 = vld [vmem:[%s0 + $0x38] sm:$0xff]
  %v25 = vld [vmem:[%s1] sm:$0xf]
  %v26 = vld [vmem:[%s1 + $0x4] sm:$0xf]
  %v27 = vld [vmem:[%s1 + $0x8] sm:$0xf]
  %v28 = vld [vmem:[%s1 + $0xc] sm:$0xf]
  %v29 = vld [vmem:[%s1 + $0x10] sm:$0xf]
  %v30 = vld [vmem:[%s1 + $0x14] sm:$0xf]
  %v31 = vld [vmem:[%s1 + $0x18] sm:$0xf]
  %v32 = vld [vmem:[%s1 + $0x1c] sm:$0xf]
  %v33 = vld [vmem:[%s1 + $0x20] sm:$0xf]
  %v34 = vld [vmem:[%s1 + $0x24] sm:$0xf]
  %v35 = vld [vmem:[%s1 + $0x28] sm:$0xf]
  %v36 = vld [vmem:[%s1 + $0x2c] sm:$0xf]
  %v37 = vld [vmem:[%s1 + $0x30] sm:$0xf]
  %v38 = vld [vmem:[%s1 + $0x34] sm:$0xf]
  %v39 = vld [vmem:[%s1 + $0x38] sm:$0xf]
  %v40 = vld [vmem:[%s1 + $0x3c] sm:$0xf]
  %v41 = vld [vmem:[%s1 + $0x40] sm:$0xf]
  %v42 = vld [vmem:[%s1 + $0x44] sm:$0xf]
  %v43 = vld [vmem:[%s1 + $0x48] sm:$0xf]
  %v44 = vld [vmem:[%s1 + $0x4c] sm:$0xf]
  %v45 = vld [vmem:[%s1 + $0x50] sm:$0xf]
  %v46 = vld [vmem:[%s1 + $0x54] sm:$0xf]
  %v47 = vld [vmem:[%s1 + $0x58] sm:$0xf]
  %v48 = vld [vmem:[%s1 + $0x5c] sm:$0xf]
  %v49 = vld [vmem:[%s1 + $0x60] sm:$0xf]
  %v50 = vld [vmem:[%s1 + $0x64] sm:$0xf]
  %v51 = vld [vmem:[%s1 + $0x68] sm:$0xf]
  %v52 = vld [vmem:[%s1 + $0x6c] sm:$0xf]
  %v53 = vld [vmem:[%s1 + $0x70] sm:$0xf]
  %v54 = vld [vmem:[%s1 + $0x74] sm:$0xf]
  %v55 = vld [vmem:[%s1 + $0x78] sm:$0xf]
  %v56 = vld [vmem:[%s1 + $0x7c] sm:$0xf]
  %v57 = vld [vmem:[%s1 + $0x80] sm:$0xf]
  %v58 = vld [vmem:[%s1 + $0x84] sm:$0xf]
  %v59 = vld [vmem:[%s1 + $0x88] sm:$0xf]
  %v60 = vld [vmem:[%s1 + $0x8c] sm:$0xf]
  %v61 = vld [vmem:[%s1 + $0x90] sm:$0xf]
  %v62 = vld [vmem:[%s1 + $0x94] sm:$0xf]
  %v63 = vld [vmem:[%s1 + $0x98] sm:$0xf]
  %v64 = vld [vmem:[%s1 + $0x9c] sm:$0xf]
  %v65 = vld [vmem:[%s1 + $0xa0] sm:$0xf]
  %v66 = vld [vmem:[%s1 + $0xa4] sm:$0xf]
  %v67 = vld [vmem:[%s1 + $0xa8] sm:$0xf]
  %v68 = vld [vmem:[%s1 + $0xac] sm:$0xf]
  %v69 = vld [vmem:[%s1 + $0xb0] sm:$0xf]
  %v70 = vld [vmem:[%s1 + $0xb4] sm:$0xf]
  %v71 = vld [vmem:[%s1 + $0xb8] sm:$0xf]
  %v72 = vld [vmem:[%s1 + $0xbc] sm:$0xf]
  %v73 = vld [vmem:[%s1 + $0xc0] sm:$0xf]
  %v74 = vld [vmem:[%s1 + $0xc4] sm:$0xf]
  %v75 = vld [vmem:[%s1 + $0xc8] sm:$0xf]
  %v76 = vld [vmem:[%s1 + $0xcc] sm:$0xf]
  %v77 = vld [vmem:[%s1 + $0xd0] sm:$0xf]
  %v78 = vld [vmem:[%s1 + $0xd4] sm:$0xf]
  %v79 = vld [vmem:[%s1 + $0xd8] sm:$0xf]
  %v80 = vld [vmem:[%s1 + $0xdc] sm:$0xf]
  %v81 = vld [vmem:[%s1 + $0xe0] sm:$0xf]
  %v82 = vld [vmem:[%s1 + $0xe4] sm:$0xf]
  %v83 = vld [vmem:[%s1 + $0xe8] sm:$0xf]
  %v84 = vld [vmem:[%s1 + $0xec] sm:$0xf]
  %v85 = vld [vmem:[%s1 + $0xf0] sm:$0xf]
  %v86 = vld [vmem:[%s1 + $0xf4] sm:$0xf]
  %v87 = vld [vmem:[%s1 + $0xf8] sm:$0xf]
  %v88 = vld [vmem:[%s1 + $0xfc] sm:$0xf]
  %v89 = vld [vmem:[%s1 + $0x100] sm:$0xf]
  %v90 = vld [vmem:[%s1 + $0x104] sm:$0xf]
  %v91 = vld [vmem:[%s1 + $0x108] sm:$0xf]
  %v92 = vld [vmem:[%s1 + $0x10c] sm:$0xf]
  %v93 = vld [vmem:[%s1 + $0x110] sm:$0xf]
  %v94 = vld [vmem:[%s1 + $0x114] sm:$0xf]
  %v95 = vld [vmem:[%s1 + $0x118] sm:$0xf]
  %v96 = vld [vmem:[%s1 + $0x11c] sm:$0xf]
  %v97 = vld [vmem:[%s1 + $0x120] sm:$0xf]
  %v98 = vld [vmem:[%s1 + $0x124] sm:$0xf]
  %v99 = vld [vmem:[%s1 + $0x128] sm:$0xf]
  %v100 = vld [vmem:[%s1 + $0x12c] sm:$0xf]
  %v101 = vld [vmem:[%s1 + $0x130] sm:$0xf]
  %v102 = vld [vmem:[%s1 + $0x134] sm:$0xf]
  %v103 = vld [vmem:[%s1 + $0x138] sm:$0xf]
  %v104 = vld [vmem:[%s1 + $0x13c] sm:$0xf]
  %v105 = vld [vmem:[%s1 + $0x140] sm:$0xf]
  %v106 = vld [vmem:[%s1 + $0x144] sm:$0xf]
  %v107 = vld [vmem:[%s1 + $0x148] sm:$0xf]
  %v108 = vld [vmem:[%s1 + $0x14c] sm:$0xf]
  %v109 = vld [vmem:[%s1 + $0x150] sm:$0xf]
  %v110 = vld [vmem:[%s1 + $0x154] sm:$0xf]
  %v111 = vld [vmem:[%s1 + $0x158] sm:$0xf]
  %v112 = vld [vmem:[%s1 + $0x15c] sm:$0xf]
  %v113 = vld [vmem:[%s1 + $0x160] sm:$0xf]
  %v114 = vld [vmem:[%s1 + $0x164] sm:$0xf]
  %v115 = vld [vmem:[%s1 + $0x168] sm:$0xf]
  %v116 = vld [vmem:[%s1 + $0x16c] sm:$0xf]
  %v117 = vld [vmem:[%s1 + $0x170] sm:$0xf]
  %v118 = vld [vmem:[%s1 + $0x174] sm:$0xf]
  %v119 = vld [vmem:[%s1 + $0x178] sm:$0xf]
  %v120 = vld [vmem:[%s1 + $0x17c] sm:$0xf]
  %v121 = vld [vmem:[%s1 + $0x180] sm:$0xf]
  %v122 = vld [vmem:[%s1 + $0x184] sm:$0xf]
  %v123 = vld [vmem:[%s1 + $0x188] sm:$0xf]
  %v124 = vld [vmem:[%s1 + $0x18c] sm:$0xf]
  %v125 = vld [vmem:[%s1 + $0x190] sm:$0xf]
  %v126 = vld [vmem:[%s1 + $0x194] sm:$0xf]
  %v127 = vld [vmem:[%s1 + $0x198] sm:$0xf]
  %v128 = vld [vmem:[%s1 + $0x19c] sm:$0xf]
  %v129 = vld [vmem:[%s1 + $0x1a0] sm:$0xf]
  %v130 = vld [vmem:[%s1 + $0x1a4] sm:$0xf]
  %v131 = vld [vmem:[%s1 + $0x1a8] sm:$0xf]
  %v132 = vld [vmem:[%s1 + $0x1ac] sm:$0xf]
  %v133 = vld [vmem:[%s1 + $0x1b0] sm:$0xf]
  %v134 = vld [vmem:[%s1 + $0x1b4] sm:$0xf]
  %v135 = vld [vmem:[%s1 + $0x1b8] sm:$0xf]
  %v136 = vld [vmem:[%s1 + $0x1bc] sm:$0xf]
  %v137 = vld [vmem:[%s1 + $0x1c0] sm:$0xf]
  %v138 = vld [vmem:[%s1 + $0x1c4] sm:$0xf]
  %v139 = vld [vmem:[%s1 + $0x1c8] sm:$0xf]
  %v140 = vld [vmem:[%s1 + $0x1cc] sm:$0xf]
  %v141 = vld [vmem:[%s1 + $0x1d0] sm:$0xf]
  %v142 = vld [vmem:[%s1 + $0x1d4] sm:$0xf]
  %v143 = vld [vmem:[%s1 + $0x1d8] sm:$0xf]
  %v144 = vld [vmem:[%s1 + $0x1dc] sm:$0xf]
  %v145 = vld [vmem:[%s1 + $0x1e0] sm:$0xf]
  %v146 = vld [vmem:[%s1 + $0x1e4] sm:$0xf]
  %v147 = vld [vmem:[%s1 + $0x1e8] sm:$0xf]
  %v148 = vld [vmem:[%s1 + $0x1ec] sm:$0xf]
  %v149 = vld [vmem:[%s1 + $0x1f0] sm:$0xf]
  %v150 = vld [vmem:[%s1 + $0x1f4] sm:$0xf]
  %v151 = vld [vmem:[%s1 + $0x1f8] sm:$0xf]
  %v152 = vld [vmem:[%s1 + $0x1fc] sm:$0xf]
  %v153 = vld [vmem:[%s1 + $0x200] sm:$0xf]
  %v154 = vld [vmem:[%s1 + $0x204] sm:$0xf]
  %v155 = vld [vmem:[%s1 + $0x208] sm:$0xf]
  %v156 = vld [vmem:[%s1 + $0x20c] sm:$0xf]
  %v157 = vld [vmem:[%s1 + $0x210] sm:$0xf]
  %v158 = vld [vmem:[%s1 + $0x214] sm:$0xf]
  %v159 = vld [vmem:[%s1 + $0x218] sm:$0xf]
  %v160 = vld [vmem:[%s1 + $0x21c] sm:$0xf]
  %v161 = vld [vmem:[%s1 + $0x220] sm:$0xf]
  %v162 = vld [vmem:[%s1 + $0x224] sm:$0xf]
  %v163 = vld [vmem:[%s1 + $0x228] sm:$0xf]
  %v164 = vld [vmem:[%s1 + $0x22c] sm:$0xf]
  %v165 = vld [vmem:[%s1 + $0x230] sm:$0xf]
  %v166 = vld [vmem:[%s1 + $0x234] sm:$0xf]
  %v167 = vld [vmem:[%s1 + $0x238] sm:$0xf]
  %v168 = vld [vmem:[%s1 + $0x23c] sm:$0xf]
  %v169 = vld [vmem:[%s1 + $0x240] sm:$0xf]
  %v170 = vld [vmem:[%s1 + $0x244] sm:$0xf]
  %v171 = vld [vmem:[%s1 + $0x248] sm:$0xf]
  %v172 = vld [vmem:[%s1 + $0x24c] sm:$0xf]
  %v173 = vld [vmem:[%s1 + $0x250] sm:$0xf]
  %v174 = vld [vmem:[%s1 + $0x254] sm:$0xf]
  %v175 = vld [vmem:[%s1 + $0x258] sm:$0xf]
  %v176 = vld [vmem:[%s1 + $0x25c] sm:$0xf]
  %v177 = vld [vmem:[%s1 + $0x260] sm:$0xf]
  %v178 = vld [vmem:[%s1 + $0x264] sm:$0xf]
  %v179 = vld [vmem:[%s1 + $0x268] sm:$0xf]
  %v180 = vld [vmem:[%s1 + $0x26c] sm:$0xf]
  %v181 = vld [vmem:[%s1 + $0x270] sm:$0xf]
  %v182 = vld [vmem:[%s1 + $0x274] sm:$0xf]
  %v183 = vld [vmem:[%s1 + $0x278] sm:$0xf]
  %v184 = vld [vmem:[%s1 + $0x27c] sm:$0xf]
  %v185 = vld [vmem:[%s1 + $0x280] sm:$0xf]
  %v186 = vld [vmem:[%s1 + $0x284] sm:$0xf]
  %v187 = vld [vmem:[%s1 + $0x288] sm:$0xf]
  %v188 = vld [vmem:[%s1 + $0x28c] sm:$0xf]
  %v189 = vld [vmem:[%s1 + $0x290] sm:$0xf]
  %v190 = vld [vmem:[%s1 + $0x294] sm:$0xf]
  %v191 = vld [vmem:[%s1 + $0x298] sm:$0xf]
  %v192 = vld [vmem:[%s1 + $0x29c] sm:$0xf]
  %v193 = vld [vmem:[%s1 + $0x2a0] sm:$0xf]
  %v194 = vld [vmem:[%s1 + $0x2a4] sm:$0xf]
  %v195 = vld [vmem:[%s1 + $0x2a8] sm:$0xf]
  %v196 = vld [vmem:[%s1 + $0x2ac] sm:$0xf]
  %v197 = vld [vmem:[%s1 + $0x2b0] sm:$0xf]
  %v198 = vld [vmem:[%s1 + $0x2b4] sm:$0xf]
  %v199 = vld [vmem:[%s1 + $0x2b8] sm:$0xf]
  %v200 = vld [vmem:[%s1 + $0x2bc] sm:$0xf]
  %v201 = vld [vmem:[%s1 + $0x2c0] sm:$0xf]
  %v202 = vld [vmem:[%s1 + $0x2c4] sm:$0xf]
  %v203 = vld [vmem:[%s1 + $0x2c8] sm:$0xf]
  %v204 = vld [vmem:[%s1 + $0x2cc] sm:$0xf]
  %v205 = vld [vmem:[%s1 + $0x2d0] sm:$0xf]
  %v206 = vld [vmem:[%s1 + $0x2d4] sm:$0xf]
  %v207 = vld [vmem:[%s1 + $0x2d8] sm:$0xf]
  %v208 = vld [vmem:[%s1 + $0x2dc] sm:$0xf]
  %v209 = vld [vmem:[%s1 + $0x2e0] sm:$0xf]
  %v210 = vld [vmem:[%s1 + $0x2e4] sm:$0xf]
  %v211 = vld [vmem:[%s1 + $0x2e8] sm:$0xf]
  %v212 = vld [vmem:[%s1 + $0x2ec] sm:$0xf]
  %v213 = vld [vmem:[%s1 + $0x2f0] sm:$0xf]
  %v214 = vld [vmem:[%s1 + $0x2f4] sm:$0xf]
  %v215 = vld [vmem:[%s1 + $0x2f8] sm:$0xf]
  %v216 = vld [vmem:[%s1 + $0x2fc] sm:$0xf]
  %v217 = vld [vmem:[%s1 + $0x300] sm:$0xf]
  %v218 = vld [vmem:[%s1 + $0x304] sm:$0xf]
  %v219 = vld [vmem:[%s1 + $0x308] sm:$0xf]
  %v220 = vld [vmem:[%s1 + $0x30c] sm:$0xf]
  %v221 = vld [vmem:[%s1 + $0x310] sm:$0xf]
  %v222 = vld [vmem:[%s1 + $0x314] sm:$0xf]
  %v223 = vld [vmem:[%s1 + $0x318] sm:$0xf]
  %v224 = vld [vmem:[%s1 + $0x31c] sm:$0xf]
  %v225 = vld [vmem:[%s1 + $0x320] sm:$0xf]
  %v226 = vld [vmem:[%s1 + $0x324] sm:$0xf]
  %v227 = vld [vmem:[%s1 + $0x328] sm:$0xf]
  %v228 = vld [vmem:[%s1 + $0x32c] sm:$0xf]
  %v229 = vld [vmem:[%s1 + $0x330] sm:$0xf]
  %v230 = vld [vmem:[%s1 + $0x334] sm:$0xf]
  %v231 = vld [vmem:[%s1 + $0x338] sm:$0xf]
  %v232 = vld [vmem:[%s1 + $0x33c] sm:$0xf]
  %v233 = vld [vmem:[%s1 + $0x340] sm:$0xf]
  %v234 = vld [vmem:[%s1 + $0x344] sm:$0xf]
  %v235 = vld [vmem:[%s1 + $0x348] sm:$0xf]
  %v236 = vld [vmem:[%s1 + $0x34c] sm:$0xf]
  %v237 = vld [vmem:[%s1 + $0x350] sm:$0xf]
  %v238 = vld [vmem:[%s1 + $0x354] sm:$0xf]
  %v239 = vld [vmem:[%s1 + $0x358] sm:$0xf]
  %v240 = vld [vmem:[%s1 + $0x35c] sm:$0xf]
  %v241 = vld [vmem:[%s1 + $0x360] sm:$0xf]
  %v242 = vld [vmem:[%s1 + $0x364] sm:$0xf]
  %v243 = vld [vmem:[%s1 + $0x368] sm:$0xf]
  %v244 = vld [vmem:[%s1 + $0x36c] sm:$0xf]
  %v245 = vld [vmem:[%s1 + $0x370] sm:$0xf]
  %v246 = vld [vmem:[%s1 + $0x374] sm:$0xf]
  %v247 = vld [vmem:[%s1 + $0x378] sm:$0xf]
  %v248 = vld [vmem:[%s1 + $0x37c] sm:$0xf]
  %v249 = vld [vmem:[%s1 + $0x380] sm:$0xf]
  %v250 = vld [vmem:[%s1 + $0x384] sm:$0xf]
  %v251 = vld [vmem:[%s1 + $0x388] sm:$0xf]
  %v252 = vld [vmem:[%s1 + $0x38c] sm:$0xf]
  %v253 = vld [vmem:[%s1 + $0x390] sm:$0xf]
  %v254 = vld [vmem:[%s1 + $0x394] sm:$0xf]
  %v255 = vld [vmem:[%s1 + $0x398] sm:$0xf]
  %v256 = vld [vmem:[%s1 + $0x39c] sm:$0xf]
  %v257 = vld [vmem:[%s1 + $0x3a0] sm:$0xf]
  %v258 = vld [vmem:[%s1 + $0x3a4] sm:$0xf]
  %v259 = vld [vmem:[%s1 + $0x3a8] sm:$0xf]
  %v260 = vld [vmem:[%s1 + $0x3ac] sm:$0xf]
  %v261 = vld [vmem:[%s1 + $0x3b0] sm:$0xf]
  %v262 = vld [vmem:[%s1 + $0x3b4] sm:$0xf]
  %v263 = vld [vmem:[%s1 + $0x3b8] sm:$0xf]
  %v264 = vld [vmem:[%s1 + $0x3bc] sm:$0xf]
  %v265 = vld [vmem:[%s1 + $0x3c0] sm:$0xf]
  %v266 = vld [vmem:[%s1 + $0x3c4] sm:$0xf]
  %v267 = vld [vmem:[%s1 + $0x3c8] sm:$0xf]
  %v268 = vld [vmem:[%s1 + $0x3cc] sm:$0xf]
  %v269 = vld [vmem:[%s1 + $0x3d0] sm:$0xf]
  %v270 = vld [vmem:[%s1 + $0x3d4] sm:$0xf]
  %v271 = vld [vmem:[%s1 + $0x3d8] sm:$0xf]
  %v272 = vld [vmem:[%s1 + $0x3dc] sm:$0xf]
  %v273 = vld [vmem:[%s1 + $0x3e0] sm:$0xf]
  %v274 = vld [vmem:[%s1 + $0x3e4] sm:$0xf]
  %v275 = vld [vmem:[%s1 + $0x3e8] sm:$0xf]
  %v276 = vld [vmem:[%s1 + $0x3ec] sm:$0xf]
  %v277 = vld [vmem:[%s1 + $0x3f0] sm:$0xf]
  %v278 = vld [vmem:[%s1 + $0x3f4] sm:$0xf]
  %v279 = vld [vmem:[%s1 + $0x3f8] sm:$0xf]
  %v280 = vld [vmem:[%s1 + $0x3fc] sm:$0xf]
  %v281 = vld [vmem:[%s2] sm:$0x1]
  %v283 = vlaneseq
  %v284 = vshrl.u32 %v283, 7
  %v285 = vsub.s32 0, %v284
  %v286 = vrot.slane %v281, %v285
  %v296 = vunpack.c.l.b16 %v17
  %v297 = vunpack.c.h.b16 %v17
  %v298 = vunpack.c.l.b16 %v18
  %v299 = vunpack.c.h.b16 %v18
  %v300 = vunpack.c.l.b16 %v19
  %v301 = vunpack.c.h.b16 %v19
  %v302 = vunpack.c.l.b16 %v20
  %v303 = vunpack.c.h.b16 %v20
  %v304 = vunpack.c.l.b16 %v21
  %v305 = vunpack.c.h.b16 %v21
  %v306 = vunpack.c.l.b16 %v22
  %v307 = vunpack.c.h.b16 %v22
  %v308 = vunpack.c.l.b16 %v23
  %v309 = vunpack.c.h.b16 %v23
  %v310 = vunpack.c.l.b16 %v24
  %v311 = vunpack.c.h.b16 %v24
  %v312 = vpack.c.b16 %v296, %v296
  %v313 = vpack.c.b16 %v297, %v297
  %v314 = vpack.c.b16 %v298, %v298
  %v315 = vpack.c.b16 %v299, %v299
  %v316 = vpack.c.b16 %v300, %v300
  %v317 = vpack.c.b16 %v301, %v301
  %v318 = vpack.c.b16 %v302, %v302
  %v319 = vpack.c.b16 %v303, %v303
  %v320 = vpack.c.b16 %v304, %v304
  %v321 = vpack.c.b16 %v305, %v305
  %v322 = vpack.c.b16 %v306, %v306
  %v323 = vpack.c.b16 %v307, %v307
  %v324 = vpack.c.b16 %v308, %v308
  %v325 = vpack.c.b16 %v309, %v309
  %v326 = vpack.c.b16 %v310, %v310
  %v327 = vpack.c.b16 %v311, %v311
  %v600 = vunpack.c.l.b16 %v25
  %v601 = vunpack.c.l.b16 %v26
  %v602 = vunpack.c.l.b16 %v27
  %v603 = vunpack.c.l.b16 %v28
  %v604 = vunpack.c.l.b16 %v29
  %v605 = vunpack.c.l.b16 %v30
  %v606 = vunpack.c.l.b16 %v31
  %v607 = vunpack.c.l.b16 %v32
  %v608 = vunpack.c.l.b16 %v33
  %v609 = vunpack.c.l.b16 %v34
  %v610 = vunpack.c.l.b16 %v35
  %v611 = vunpack.c.l.b16 %v36
  %v612 = vunpack.c.l.b16 %v37
  %v613 = vunpack.c.l.b16 %v38
  %v614 = vunpack.c.l.b16 %v39
  %v615 = vunpack.c.l.b16 %v40
  %v616 = vunpack.c.l.b16 %v41
  %v617 = vunpack.c.l.b16 %v42
  %v618 = vunpack.c.l.b16 %v43
  %v619 = vunpack.c.l.b16 %v44
  %v620 = vunpack.c.l.b16 %v45
  %v621 = vunpack.c.l.b16 %v46
  %v622 = vunpack.c.l.b16 %v47
  %v623 = vunpack.c.l.b16 %v48
  %v624 = vunpack.c.l.b16 %v49
  %v625 = vunpack.c.l.b16 %v50
  %v626 = vunpack.c.l.b16 %v51
  %v627 = vunpack.c.l.b16 %v52
  %v628 = vunpack.c.l.b16 %v53
  %v629 = vunpack.c.l.b16 %v54
  %v630 = vunpack.c.l.b16 %v55
  %v631 = vunpack.c.l.b16 %v56
  %v632 = vunpack.c.l.b16 %v57
  %v633 = vunpack.c.l.b16 %v58
  %v634 = vunpack.c.l.b16 %v59
  %v635 = vunpack.c.l.b16 %v60
  %v636 = vunpack.c.l.b16 %v61
  %v637 = vunpack.c.l.b16 %v62
  %v638 = vunpack.c.l.b16 %v63
  %v639 = vunpack.c.l.b16 %v64
  %v640 = vunpack.c.l.b16 %v65
  %v641 = vunpack.c.l.b16 %v66
  %v642 = vunpack.c.l.b16 %v67
  %v643 = vunpack.c.l.b16 %v68
  %v644 = vunpack.c.l.b16 %v69
  %v645 = vunpack.c.l.b16 %v70
  %v646 = vunpack.c.l.b16 %v71
  %v647 = vunpack.c.l.b16 %v72
  %v648 = vunpack.c.l.b16 %v73
  %v649 = vunpack.c.l.b16 %v74
  %v650 = vunpack.c.l.b16 %v75
  %v651 = vunpack.c.l.b16 %v76
  %v652 = vunpack.c.l.b16 %v77
  %v653 = vunpack.c.l.b16 %v78
  %v654 = vunpack.c.l.b16 %v79
  %v655 = vunpack.c.l.b16 %v80
  %v656 = vunpack.c.l.b16 %v81
  %v657 = vunpack.c.l.b16 %v82
  %v658 = vunpack.c.l.b16 %v83
  %v659 = vunpack.c.l.b16 %v84
  %v660 = vunpack.c.l.b16 %v85
  %v661 = vunpack.c.l.b16 %v86
  %v662 = vunpack.c.l.b16 %v87
  %v663 = vunpack.c.l.b16 %v88
  %v664 = vunpack.c.l.b16 %v89
  %v665 = vunpack.c.l.b16 %v90
  %v666 = vunpack.c.l.b16 %v91
  %v667 = vunpack.c.l.b16 %v92
  %v668 = vunpack.c.l.b16 %v93
  %v669 = vunpack.c.l.b16 %v94
  %v670 = vunpack.c.l.b16 %v95
  %v671 = vunpack.c.l.b16 %v96
  %v672 = vunpack.c.l.b16 %v97
  %v673 = vunpack.c.l.b16 %v98
  %v674 = vunpack.c.l.b16 %v99
  %v675 = vunpack.c.l.b16 %v100
  %v676 = vunpack.c.l.b16 %v101
  %v677 = vunpack.c.l.b16 %v102
  %v678 = vunpack.c.l.b16 %v103
  %v679 = vunpack.c.l.b16 %v104
  %v680 = vunpack.c.l.b16 %v105
  %v681 = vunpack.c.l.b16 %v106
  %v682 = vunpack.c.l.b16 %v107
  %v683 = vunpack.c.l.b16 %v108
  %v684 = vunpack.c.l.b16 %v109
  %v685 = vunpack.c.l.b16 %v110
  %v686 = vunpack.c.l.b16 %v111
  %v687 = vunpack.c.l.b16 %v112
  %v688 = vunpack.c.l.b16 %v113
  %v689 = vunpack.c.l.b16 %v114
  %v690 = vunpack.c.l.b16 %v115
  %v691 = vunpack.c.l.b16 %v116
  %v692 = vunpack.c.l.b16 %v117
  %v693 = vunpack.c.l.b16 %v118
  %v694 = vunpack.c.l.b16 %v119
  %v695 = vunpack.c.l.b16 %v120
  %v696 = vunpack.c.l.b16 %v121
  %v697 = vunpack.c.l.b16 %v122
  %v698 = vunpack.c.l.b16 %v123
  %v699 = vunpack.c.l.b16 %v124
  %v700 = vunpack.c.l.b16 %v125
  %v701 = vunpack.c.l.b16 %v126
  %v702 = vunpack.c.l.b16 %v127
  %v703 = vunpack.c.l.b16 %v128
  %v704 = vunpack.c.l.b16 %v129
  %v705 = vunpack.c.l.b16 %v130
  %v706 = vunpack.c.l.b16 %v131
  %v707 = vunpack.c.l.b16 %v132
  %v708 = vunpack.c.l.b16 %v133
  %v709 = vunpack.c.l.b16 %v134
  %v710 = vunpack.c.l.b16 %v135
  %v711 = vunpack.c.l.b16 %v136
  %v712 = vunpack.c.l.b16 %v137
  %v713 = vunpack.c.l.b16 %v138
  %v714 = vunpack.c.l.b16 %v139
  %v715 = vunpack.c.l.b16 %v140
  %v716 = vunpack.c.l.b16 %v141
  %v717 = vunpack.c.l.b16 %v142
  %v718 = vunpack.c.l.b16 %v143
  %v719 = vunpack.c.l.b16 %v144
  %v720 = vunpack.c.l.b16 %v145
  %v721 = vunpack.c.l.b16 %v146
  %v722 = vunpack.c.l.b16 %v147
  %v723 = vunpack.c.l.b16 %v148
  %v724 = vunpack.c.l.b16 %v149
  %v725 = vunpack.c.l.b16 %v150
  %v726 = vunpack.c.l.b16 %v151
  %v727 = vunpack.c.l.b16 %v152
  %v728 = vunpack.c.l.b16 %v153
  %v729 = vunpack.c.l.b16 %v154
  %v730 = vunpack.c.l.b16 %v155
  %v731 = vunpack.c.l.b16 %v156
  %v732 = vunpack.c.l.b16 %v157
  %v733 = vunpack.c.l.b16 %v158
  %v734 = vunpack.c.l.b16 %v159
  %v735 = vunpack.c.l.b16 %v160
  %v736 = vunpack.c.l.b16 %v161
  %v737 = vunpack.c.l.b16 %v162
  %v738 = vunpack.c.l.b16 %v163
  %v739 = vunpack.c.l.b16 %v164
  %v740 = vunpack.c.l.b16 %v165
  %v741 = vunpack.c.l.b16 %v166
  %v742 = vunpack.c.l.b16 %v167
  %v743 = vunpack.c.l.b16 %v168
  %v744 = vunpack.c.l.b16 %v169
  %v745 = vunpack.c.l.b16 %v170
  %v746 = vunpack.c.l.b16 %v171
  %v747 = vunpack.c.l.b16 %v172
  %v748 = vunpack.c.l.b16 %v173
  %v749 = vunpack.c.l.b16 %v174
  %v750 = vunpack.c.l.b16 %v175
  %v751 = vunpack.c.l.b16 %v176
  %v752 = vunpack.c.l.b16 %v177
  %v753 = vunpack.c.l.b16 %v178
  %v754 = vunpack.c.l.b16 %v179
  %v755 = vunpack.c.l.b16 %v180
  %v756 = vunpack.c.l.b16 %v181
  %v757 = vunpack.c.l.b16 %v182
  %v758 = vunpack.c.l.b16 %v183
  %v759 = vunpack.c.l.b16 %v184
  %v760 = vunpack.c.l.b16 %v185
  %v761 = vunpack.c.l.b16 %v186
  %v762 = vunpack.c.l.b16 %v187
  %v763 = vunpack.c.l.b16 %v188
  %v764 = vunpack.c.l.b16 %v189
  %v765 = vunpack.c.l.b16 %v190
  %v766 = vunpack.c.l.b16 %v191
  %v767 = vunpack.c.l.b16 %v192
  %v768 = vunpack.c.l.b16 %v193
  %v769 = vunpack.c.l.b16 %v194
  %v770 = vunpack.c.l.b16 %v195
  %v771 = vunpack.c.l.b16 %v196
  %v772 = vunpack.c.l.b16 %v197
  %v773 = vunpack.c.l.b16 %v198
  %v774 = vunpack.c.l.b16 %v199
  %v775 = vunpack.c.l.b16 %v200
  %v776 = vunpack.c.l.b16 %v201
  %v777 = vunpack.c.l.b16 %v202
  %v778 = vunpack.c.l.b16 %v203
  %v779 = vunpack.c.l.b16 %v204
  %v780 = vunpack.c.l.b16 %v205
  %v781 = vunpack.c.l.b16 %v206
  %v782 = vunpack.c.l.b16 %v207
  %v783 = vunpack.c.l.b16 %v208
  %v784 = vunpack.c.l.b16 %v209
  %v785 = vunpack.c.l.b16 %v210
  %v786 = vunpack.c.l.b16 %v211
  %v787 = vunpack.c.l.b16 %v212
  %v788 = vunpack.c.l.b16 %v213
  %v789 = vunpack.c.l.b16 %v214
  %v790 = vunpack.c.l.b16 %v215
  %v791 = vunpack.c.l.b16 %v216
  %v792 = vunpack.c.l.b16 %v217
  %v793 = vunpack.c.l.b16 %v218
  %v794 = vunpack.c.l.b16 %v219
  %v795 = vunpack.c.l.b16 %v220
  %v796 = vunpack.c.l.b16 %v221
  %v797 = vunpack.c.l.b16 %v222
  %v798 = vunpack.c.l.b16 %v223
  %v799 = vunpack.c.l.b16 %v224
  %v800 = vunpack.c.l.b16 %v225
  %v801 = vunpack.c.l.b16 %v226
  %v802 = vunpack.c.l.b16 %v227
  %v803 = vunpack.c.l.b16 %v228
  %v804 = vunpack.c.l.b16 %v229
  %v805 = vunpack.c.l.b16 %v230
  %v806 = vunpack.c.l.b16 %v231
  %v807 = vunpack.c.l.b16 %v232
  %v808 = vunpack.c.l.b16 %v233
  %v809 = vunpack.c.l.b16 %v234
  %v810 = vunpack.c.l.b16 %v235
  %v811 = vunpack.c.l.b16 %v236
  %v812 = vunpack.c.l.b16 %v237
  %v813 = vunpack.c.l.b16 %v238
  %v814 = vunpack.c.l.b16 %v239
  %v815 = vunpack.c.l.b16 %v240
  %v816 = vunpack.c.l.b16 %v241
  %v817 = vunpack.c.l.b16 %v242
  %v818 = vunpack.c.l.b16 %v243
  %v819 = vunpack.c.l.b16 %v244
  %v820 = vunpack.c.l.b16 %v245
  %v821 = vunpack.c.l.b16 %v246
  %v822 = vunpack.c.l.b16 %v247
  %v823 = vunpack.c.l.b16 %v248
  %v824 = vunpack.c.l.b16 %v249
  %v825 = vunpack.c.l.b16 %v250
  %v826 = vunpack.c.l.b16 %v251
  %v827 = vunpack.c.l.b16 %v252
  %v828 = vunpack.c.l.b16 %v253
  %v829 = vunpack.c.l.b16 %v254
  %v830 = vunpack.c.l.b16 %v255
  %v831 = vunpack.c.l.b16 %v256
  %v832 = vunpack.c.l.b16 %v257
  %v833 = vunpack.c.l.b16 %v258
  %v834 = vunpack.c.l.b16 %v259
  %v835 = vunpack.c.l.b16 %v260
  %v836 = vunpack.c.l.b16 %v261
  %v837 = vunpack.c.l.b16 %v262
  %v838 = vunpack.c.l.b16 %v263
  %v839 = vunpack.c.l.b16 %v264
  %v840 = vunpack.c.l.b16 %v265
  %v841 = vunpack.c.l.b16 %v266
  %v842 = vunpack.c.l.b16 %v267
  %v843 = vunpack.c.l.b16 %v268
  %v844 = vunpack.c.l.b16 %v269
  %v845 = vunpack.c.l.b16 %v270
  %v846 = vunpack.c.l.b16 %v271
  %v847 = vunpack.c.l.b16 %v272
  %v848 = vunpack.c.l.b16 %v273
  %v849 = vunpack.c.l.b16 %v274
  %v850 = vunpack.c.l.b16 %v275
  %v851 = vunpack.c.l.b16 %v276
  %v852 = vunpack.c.l.b16 %v277
  %v853 = vunpack.c.l.b16 %v278
  %v854 = vunpack.c.l.b16 %v279
  %v855 = vunpack.c.l.b16 %v280
  %v856 = vpack.c.b16 %v601, %v600
  %v857 = vpack.c.b16 %v603, %v602
  %v858 = vpack.c.b16 %v605, %v604
  %v859 = vpack.c.b16 %v607, %v606
  %v860 = vpack.c.b16 %v609, %v608
  %v861 = vpack.c.b16 %v611, %v610
  %v862 = vpack.c.b16 %v613, %v612
  %v863 = vpack.c.b16 %v615, %v614
  %v864 = vpack.c.b16 %v617, %v616
  %v865 = vpack.c.b16 %v619, %v618
  %v866 = vpack.c.b16 %v621, %v620
  %v867 = vpack.c.b16 %v623, %v622
  %v868 = vpack.c.b16 %v625, %v624
  %v869 = vpack.c.b16 %v627, %v626
  %v870 = vpack.c.b16 %v629, %v628
  %v871 = vpack.c.b16 %v631, %v630
  %v872 = vpack.c.b16 %v633, %v632
  %v873 = vpack.c.b16 %v635, %v634
  %v874 = vpack.c.b16 %v637, %v636
  %v875 = vpack.c.b16 %v639, %v638
  %v876 = vpack.c.b16 %v641, %v640
  %v877 = vpack.c.b16 %v643, %v642
  %v878 = vpack.c.b16 %v645, %v644
  %v879 = vpack.c.b16 %v647, %v646
  %v880 = vpack.c.b16 %v649, %v648
  %v881 = vpack.c.b16 %v651, %v650
  %v882 = vpack.c.b16 %v653, %v652
  %v883 = vpack.c.b16 %v655, %v654
  %v884 = vpack.c.b16 %v657, %v656
  %v885 = vpack.c.b16 %v659, %v658
  %v886 = vpack.c.b16 %v661, %v660
  %v887 = vpack.c.b16 %v663, %v662
  %v888 = vpack.c.b16 %v665, %v664
  %v889 = vpack.c.b16 %v667, %v666
  %v890 = vpack.c.b16 %v669, %v668
  %v891 = vpack.c.b16 %v671, %v670
  %v892 = vpack.c.b16 %v673, %v672
  %v893 = vpack.c.b16 %v675, %v674
  %v894 = vpack.c.b16 %v677, %v676
  %v895 = vpack.c.b16 %v679, %v678
  %v896 = vpack.c.b16 %v681, %v680
  %v897 = vpack.c.b16 %v683, %v682
  %v898 = vpack.c.b16 %v685, %v684
  %v899 = vpack.c.b16 %v687, %v686
  %v900 = vpack.c.b16 %v689, %v688
  %v901 = vpack.c.b16 %v691, %v690
  %v902 = vpack.c.b16 %v693, %v692
  %v903 = vpack.c.b16 %v695, %v694
  %v904 = vpack.c.b16 %v697, %v696
  %v905 = vpack.c.b16 %v699, %v698
  %v906 = vpack.c.b16 %v701, %v700
  %v907 = vpack.c.b16 %v703, %v702
  %v908 = vpack.c.b16 %v705, %v704
  %v909 = vpack.c.b16 %v707, %v706
  %v910 = vpack.c.b16 %v709, %v708
  %v911 = vpack.c.b16 %v711, %v710
  %v912 = vpack.c.b16 %v713, %v712
  %v913 = vpack.c.b16 %v715, %v714
  %v914 = vpack.c.b16 %v717, %v716
  %v915 = vpack.c.b16 %v719, %v718
  %v916 = vpack.c.b16 %v721, %v720
  %v917 = vpack.c.b16 %v723, %v722
  %v918 = vpack.c.b16 %v725, %v724
  %v919 = vpack.c.b16 %v727, %v726
  %v920 = vpack.c.b16 %v729, %v728
  %v921 = vpack.c.b16 %v731, %v730
  %v922 = vpack.c.b16 %v733, %v732
  %v923 = vpack.c.b16 %v735, %v734
  %v924 = vpack.c.b16 %v737, %v736
  %v925 = vpack.c.b16 %v739, %v738
  %v926 = vpack.c.b16 %v741, %v740
  %v927 = vpack.c.b16 %v743, %v742
  %v928 = vpack.c.b16 %v745, %v744
  %v929 = vpack.c.b16 %v747, %v746
  %v930 = vpack.c.b16 %v749, %v748
  %v931 = vpack.c.b16 %v751, %v750
  %v932 = vpack.c.b16 %v753, %v752
  %v933 = vpack.c.b16 %v755, %v754
  %v934 = vpack.c.b16 %v757, %v756
  %v935 = vpack.c.b16 %v759, %v758
  %v936 = vpack.c.b16 %v761, %v760
  %v937 = vpack.c.b16 %v763, %v762
  %v938 = vpack.c.b16 %v765, %v764
  %v939 = vpack.c.b16 %v767, %v766
  %v940 = vpack.c.b16 %v769, %v768
  %v941 = vpack.c.b16 %v771, %v770
  %v942 = vpack.c.b16 %v773, %v772
  %v943 = vpack.c.b16 %v775, %v774
  %v944 = vpack.c.b16 %v777, %v776
  %v945 = vpack.c.b16 %v779, %v778
  %v946 = vpack.c.b16 %v781, %v780
  %v947 = vpack.c.b16 %v783, %v782
  %v948 = vpack.c.b16 %v785, %v784
  %v949 = vpack.c.b16 %v787, %v786
  %v950 = vpack.c.b16 %v789, %v788
  %v951 = vpack.c.b16 %v791, %v790
  %v952 = vpack.c.b16 %v793, %v792
  %v953 = vpack.c.b16 %v795, %v794
  %v954 = vpack.c.b16 %v797, %v796
  %v955 = vpack.c.b16 %v799, %v798
  %v956 = vpack.c.b16 %v801, %v800
  %v957 = vpack.c.b16 %v803, %v802
  %v958 = vpack.c.b16 %v805, %v804
  %v959 = vpack.c.b16 %v807, %v806
  %v960 = vpack.c.b16 %v809, %v808
  %v961 = vpack.c.b16 %v811, %v810
  %v962 = vpack.c.b16 %v813, %v812
  %v963 = vpack.c.b16 %v815, %v814
  %v964 = vpack.c.b16 %v817, %v816
  %v965 = vpack.c.b16 %v819, %v818
  %v966 = vpack.c.b16 %v821, %v820
  %v967 = vpack.c.b16 %v823, %v822
  %v968 = vpack.c.b16 %v825, %v824
  %v969 = vpack.c.b16 %v827, %v826
  %v970 = vpack.c.b16 %v829, %v828
  %v971 = vpack.c.b16 %v831, %v830
  %v972 = vpack.c.b16 %v833, %v832
  %v973 = vpack.c.b16 %v835, %v834
  %v974 = vpack.c.b16 %v837, %v836
  %v975 = vpack.c.b16 %v839, %v838
  %v976 = vpack.c.b16 %v841, %v840
  %v977 = vpack.c.b16 %v843, %v842
  %v978 = vpack.c.b16 %v845, %v844
  %v979 = vpack.c.b16 %v847, %v846
  %v980 = vpack.c.b16 %v849, %v848
  %v981 = vpack.c.b16 %v851, %v850
  %v982 = vpack.c.b16 %v853, %v852
  %v983 = vpack.c.b16 %v855, %v854
  %1112 = vmatprep.subr.bf16.mxu0 0
  %1113 = vmatpush1.bf16.msra.mxu0 %v856
  %1114 = vmatprep.subr.bf16.mxu0 0
  %1115 = vmatpush1.bf16.msra.mxu0 %v857
  %1116 = vmatprep.subr.bf16.mxu0 0
  %1117 = vmatpush1.bf16.msra.mxu0 %v858
  %1118 = vmatprep.subr.bf16.mxu0 0
  %1119 = vmatpush1.bf16.msra.mxu0 %v859
  %1120 = vmatprep.subr.bf16.mxu0 0
  %1121 = vmatpush1.bf16.msra.mxu0 %v860
  %1122 = vmatprep.subr.bf16.mxu0 0
  %1123 = vmatpush1.bf16.msra.mxu0 %v861
  %1124 = vmatprep.subr.bf16.mxu0 0
  %1125 = vmatpush1.bf16.msra.mxu0 %v862
  %1126 = vmatprep.subr.bf16.mxu0 0
  %1127 = vmatpush1.bf16.msra.mxu0 %v863
  %1128 = vmatprep.subr.bf16.mxu0 0
  %1129 = vmatpush1.bf16.msra.mxu0 %v864
  %1130 = vmatprep.subr.bf16.mxu0 0
  %1131 = vmatpush1.bf16.msra.mxu0 %v865
  %1132 = vmatprep.subr.bf16.mxu0 0
  %1133 = vmatpush1.bf16.msra.mxu0 %v866
  %1134 = vmatprep.subr.bf16.mxu0 0
  %1135 = vmatpush1.bf16.msra.mxu0 %v867
  %1136 = vmatprep.subr.bf16.mxu0 0
  %1137 = vmatpush1.bf16.msra.mxu0 %v868
  %1138 = vmatprep.subr.bf16.mxu0 0
  %1139 = vmatpush1.bf16.msra.mxu0 %v869
  %1140 = vmatprep.subr.bf16.mxu0 0
  %1141 = vmatpush1.bf16.msra.mxu0 %v870
  %1142 = vmatprep.subr.bf16.mxu0 0
  %1143 = vmatpush1.bf16.msra.mxu0 %v871
  %1144 = vmatprep.mubr.bf16.mxu0 %v313
  %1145 = vmatmul.mubr.bf16.gmra.mrb[0].mxu0 %v312
  %v1146 = vpop.f32.mrb[0].mxu0
  %v1147 = vadd.f32 %v286, %v1146
  %v1148 = vpop.f32.mrb[0].mxu0
  %v1149 = vpop.f32.mrb[0].mxu0
  %v1150 = vpop.f32.mrb[0].mxu0
  %1151 = vdwg.mxu0
  %1152 = vmatprep.subr.bf16.mxu0 0
  %1153 = vmatpush1.bf16.msra.mxu0 %v872
  %1154 = vmatprep.subr.bf16.mxu0 0
  %1155 = vmatpush1.bf16.msra.mxu0 %v873
  %1156 = vmatprep.subr.bf16.mxu0 0
  %1157 = vmatpush1.bf16.msra.mxu0 %v874
  %1158 = vmatprep.subr.bf16.mxu0 0
  %1159 = vmatpush1.bf16.msra.mxu0 %v875
  %1160 = vmatprep.subr.bf16.mxu0 0
  %1161 = vmatpush1.bf16.msra.mxu0 %v876
  %1162 = vmatprep.subr.bf16.mxu0 0
  %1163 = vmatpush1.bf16.msra.mxu0 %v877
  %1164 = vmatprep.subr.bf16.mxu0 0
  %1165 = vmatpush1.bf16.msra.mxu0 %v878
  %1166 = vmatprep.subr.bf16.mxu0 0
  %1167 = vmatpush1.bf16.msra.mxu0 %v879
  %1168 = vmatprep.subr.bf16.mxu0 0
  %1169 = vmatpush1.bf16.msra.mxu0 %v880
  %1170 = vmatprep.subr.bf16.mxu0 0
  %1171 = vmatpush1.bf16.msra.mxu0 %v881
  %1172 = vmatprep.subr.bf16.mxu0 0
  %1173 = vmatpush1.bf16.msra.mxu0 %v882
  %1174 = vmatprep.subr.bf16.mxu0 0
  %1175 = vmatpush1.bf16.msra.mxu0 %v883
  %1176 = vmatprep.subr.bf16.mxu0 0
  %1177 = vmatpush1.bf16.msra.mxu0 %v884
  %1178 = vmatprep.subr.bf16.mxu0 0
  %1179 = vmatpush1.bf16.msra.mxu0 %v885
  %1180 = vmatprep.subr.bf16.mxu0 0
  %1181 = vmatpush1.bf16.msra.mxu0 %v886
  %1182 = vmatprep.subr.bf16.mxu0 0
  %1183 = vmatpush1.bf16.msra.mxu0 %v887
  %1184 = vmatprep.mubr.bf16.mxu0 %v315
  %1185 = vmatmul.mubr.bf16.gmra.mrb[0].mxu0 %v314
  %v1186 = vpop.f32.mrb[0].mxu0
  %v1187 = vadd.f32 %v1147, %v1186
  %v1188 = vpop.f32.mrb[0].mxu0
  %v1189 = vpop.f32.mrb[0].mxu0
  %v1190 = vpop.f32.mrb[0].mxu0
  %1191 = vdwg.mxu0
  %1192 = vmatprep.subr.bf16.mxu0 0
  %1193 = vmatpush1.bf16.msra.mxu0 %v888
  %1194 = vmatprep.subr.bf16.mxu0 0
  %1195 = vmatpush1.bf16.msra.mxu0 %v889
  %1196 = vmatprep.subr.bf16.mxu0 0
  %1197 = vmatpush1.bf16.msra.mxu0 %v890
  %1198 = vmatprep.subr.bf16.mxu0 0
  %1199 = vmatpush1.bf16.msra.mxu0 %v891
  %1200 = vmatprep.subr.bf16.mxu0 0
  %1201 = vmatpush1.bf16.msra.mxu0 %v892
  %1202 = vmatprep.subr.bf16.mxu0 0
  %1203 = vmatpush1.bf16.msra.mxu0 %v893
  %1204 = vmatprep.subr.bf16.mxu0 0
  %1205 = vmatpush1.bf16.msra.mxu0 %v894
  %1206 = vmatprep.subr.bf16.mxu0 0
  %1207 = vmatpush1.bf16.msra.mxu0 %v895
  %1208 = vmatprep.subr.bf16.mxu0 0
  %1209 = vmatpush1.bf16.msra.mxu0 %v896
  %1210 = vmatprep.subr.bf16.mxu0 0
  %1211 = vmatpush1.bf16.msra.mxu0 %v897
  %1212 = vmatprep.subr.bf16.mxu0 0
  %1213 = vmatpush1.bf16.msra.mxu0 %v898
  %1214 = vmatprep.subr.bf16.mxu0 0
  %1215 = vmatpush1.bf16.msra.mxu0 %v899
  %1216 = vmatprep.subr.bf16.mxu0 0
  %1217 = vmatpush1.bf16.msra.mxu0 %v900
  %1218 = vmatprep.subr.bf16.mxu0 0
  %1219 = vmatpush1.bf16.msra.mxu0 %v901
  %1220 = vmatprep.subr.bf16.mxu0 0
  %1221 = vmatpush1.bf16.msra.mxu0 %v902
  %1222 = vmatprep.subr.bf16.mxu0 0
  %1223 = vmatpush1.bf16.msra.mxu0 %v903
  %1224 = vmatprep.mubr.bf16.mxu0 %v317
  %1225 = vmatmul.mubr.bf16.gmra.mrb[0].mxu0 %v316
  %v1226 = vpop.f32.mrb[0].mxu0
  %v1227 = vadd.f32 %v1187, %v1226
  %v1228 = vpop.f32.mrb[0].mxu0
  %v1229 = vpop.f32.mrb[0].mxu0
  %v1230 = vpop.f32.mrb[0].mxu0
  %1231 = vdwg.mxu0
  %1232 = vmatprep.subr.bf16.mxu0 0
  %1233 = vmatpush1.bf16.msra.mxu0 %v904
  %1234 = vmatprep.subr.bf16.mxu0 0
  %1235 = vmatpush1.bf16.msra.mxu0 %v905
  %1236 = vmatprep.subr.bf16.mxu0 0
  %1237 = vmatpush1.bf16.msra.mxu0 %v906
  %1238 = vmatprep.subr.bf16.mxu0 0
  %1239 = vmatpush1.bf16.msra.mxu0 %v907
  %1240 = vmatprep.subr.bf16.mxu0 0
  %1241 = vmatpush1.bf16.msra.mxu0 %v908
  %1242 = vmatprep.subr.bf16.mxu0 0
  %1243 = vmatpush1.bf16.msra.mxu0 %v909
  %1244 = vmatprep.subr.bf16.mxu0 0
  %1245 = vmatpush1.bf16.msra.mxu0 %v910
  %1246 = vmatprep.subr.bf16.mxu0 0
  %1247 = vmatpush1.bf16.msra.mxu0 %v911
  %1248 = vmatprep.subr.bf16.mxu0 0
  %1249 = vmatpush1.bf16.msra.mxu0 %v912
  %1250 = vmatprep.subr.bf16.mxu0 0
  %1251 = vmatpush1.bf16.msra.mxu0 %v913
  %1252 = vmatprep.subr.bf16.mxu0 0
  %1253 = vmatpush1.bf16.msra.mxu0 %v914
  %1254 = vmatprep.subr.bf16.mxu0 0
  %1255 = vmatpush1.bf16.msra.mxu0 %v915
  %1256 = vmatprep.subr.bf16.mxu0 0
  %1257 = vmatpush1.bf16.msra.mxu0 %v916
  %1258 = vmatprep.subr.bf16.mxu0 0
  %1259 = vmatpush1.bf16.msra.mxu0 %v917
  %1260 = vmatprep.subr.bf16.mxu0 0
  %1261 = vmatpush1.bf16.msra.mxu0 %v918
  %1262 = vmatprep.subr.bf16.mxu0 0
  %1263 = vmatpush1.bf16.msra.mxu0 %v919
  %1264 = vmatprep.mubr.bf16.mxu0 %v319
  %1265 = vmatmul.mubr.bf16.gmra.mrb[0].mxu0 %v318
  %v1266 = vpop.f32.mrb[0].mxu0
  %v1267 = vadd.f32 %v1227, %v1266
  %v1268 = vpop.f32.mrb[0].mxu0
  %v1269 = vpop.f32.mrb[0].mxu0
  %v1270 = vpop.f32.mrb[0].mxu0
  %1271 = vdwg.mxu0
  %1272 = vmatprep.subr.bf16.mxu0 0
  %1273 = vmatpush1.bf16.msra.mxu0 %v920
  %1274 = vmatprep.subr.bf16.mxu0 0
  %1275 = vmatpush1.bf16.msra.mxu0 %v921
  %1276 = vmatprep.subr.bf16.mxu0 0
  %1277 = vmatpush1.bf16.msra.mxu0 %v922
  %1278 = vmatprep.subr.bf16.mxu0 0
  %1279 = vmatpush1.bf16.msra.mxu0 %v923
  %1280 = vmatprep.subr.bf16.mxu0 0
  %1281 = vmatpush1.bf16.msra.mxu0 %v924
  %1282 = vmatprep.subr.bf16.mxu0 0
  %1283 = vmatpush1.bf16.msra.mxu0 %v925
  %1284 = vmatprep.subr.bf16.mxu0 0
  %1285 = vmatpush1.bf16.msra.mxu0 %v926
  %1286 = vmatprep.subr.bf16.mxu0 0
  %1287 = vmatpush1.bf16.msra.mxu0 %v927
  %1288 = vmatprep.subr.bf16.mxu0 0
  %1289 = vmatpush1.bf16.msra.mxu0 %v928
  %1290 = vmatprep.subr.bf16.mxu0 0
  %1291 = vmatpush1.bf16.msra.mxu0 %v929
  %1292 = vmatprep.subr.bf16.mxu0 0
  %1293 = vmatpush1.bf16.msra.mxu0 %v930
  %1294 = vmatprep.subr.bf16.mxu0 0
  %1295 = vmatpush1.bf16.msra.mxu0 %v931
  %1296 = vmatprep.subr.bf16.mxu0 0
  %1297 = vmatpush1.bf16.msra.mxu0 %v932
  %1298 = vmatprep.subr.bf16.mxu0 0
  %1299 = vmatpush1.bf16.msra.mxu0 %v933
  %1300 = vmatprep.subr.bf16.mxu0 0
  %1301 = vmatpush1.bf16.msra.mxu0 %v934
  %1302 = vmatprep.subr.bf16.mxu0 0
  %1303 = vmatpush1.bf16.msra.mxu0 %v935
  %1304 = vmatprep.mubr.bf16.mxu0 %v321
  %1305 = vmatmul.mubr.bf16.gmra.mrb[0].mxu0 %v320
  %v1306 = vpop.f32.mrb[0].mxu0
  %v1307 = vadd.f32 %v1267, %v1306
  %v1308 = vpop.f32.mrb[0].mxu0
  %v1309 = vpop.f32.mrb[0].mxu0
  %v1310 = vpop.f32.mrb[0].mxu0
  %1311 = vdwg.mxu0
  %1312 = vmatprep.subr.bf16.mxu0 0
  %1313 = vmatpush1.bf16.msra.mxu0 %v936
  %1314 = vmatprep.subr.bf16.mxu0 0
  %1315 = vmatpush1.bf16.msra.mxu0 %v937
  %1316 = vmatprep.subr.bf16.mxu0 0
  %1317 = vmatpush1.bf16.msra.mxu0 %v938
  %1318 = vmatprep.subr.bf16.mxu0 0
  %1319 = vmatpush1.bf16.msra.mxu0 %v939
  %1320 = vmatprep.subr.bf16.mxu0 0
  %1321 = vmatpush1.bf16.msra.mxu0 %v940
  %1322 = vmatprep.subr.bf16.mxu0 0
  %1323 = vmatpush1.bf16.msra.mxu0 %v941
  %1324 = vmatprep.subr.bf16.mxu0 0
  %1325 = vmatpush1.bf16.msra.mxu0 %v942
  %1326 = vmatprep.subr.bf16.mxu0 0
  %1327 = vmatpush1.bf16.msra.mxu0 %v943
  %1328 = vmatprep.subr.bf16.mxu0 0
  %1329 = vmatpush1.bf16.msra.mxu0 %v944
  %1330 = vmatprep.subr.bf16.mxu0 0
  %1331 = vmatpush1.bf16.msra.mxu0 %v945
  %1332 = vmatprep.subr.bf16.mxu0 0
  %1333 = vmatpush1.bf16.msra.mxu0 %v946
  %1334 = vmatprep.subr.bf16.mxu0 0
  %1335 = vmatpush1.bf16.msra.mxu0 %v947
  %1336 = vmatprep.subr.bf16.mxu0 0
  %1337 = vmatpush1.bf16.msra.mxu0 %v948
  %1338 = vmatprep.subr.bf16.mxu0 0
  %1339 = vmatpush1.bf16.msra.mxu0 %v949
  %1340 = vmatprep.subr.bf16.mxu0 0
  %1341 = vmatpush1.bf16.msra.mxu0 %v950
  %1342 = vmatprep.subr.bf16.mxu0 0
  %1343 = vmatpush1.bf16.msra.mxu0 %v951
  %1344 = vmatprep.mubr.bf16.mxu0 %v323
  %1345 = vmatmul.mubr.bf16.gmra.mrb[0].mxu0 %v322
  %v1346 = vpop.f32.mrb[0].mxu0
  %v1347 = vadd.f32 %v1307, %v1346
  %v1348 = vpop.f32.mrb[0].mxu0
  %v1349 = vpop.f32.mrb[0].mxu0
  %v1350 = vpop.f32.mrb[0].mxu0
  %1351 = vdwg.mxu0
  %1352 = vmatprep.subr.bf16.mxu0 0
  %1353 = vmatpush1.bf16.msra.mxu0 %v952
  %1354 = vmatprep.subr.bf16.mxu0 0
  %1355 = vmatpush1.bf16.msra.mxu0 %v953
  %1356 = vmatprep.subr.bf16.mxu0 0
  %1357 = vmatpush1.bf16.msra.mxu0 %v954
  %1358 = vmatprep.subr.bf16.mxu0 0
  %1359 = vmatpush1.bf16.msra.mxu0 %v955
  %1360 = vmatprep.subr.bf16.mxu0 0
  %1361 = vmatpush1.bf16.msra.mxu0 %v956
  %1362 = vmatprep.subr.bf16.mxu0 0
  %1363 = vmatpush1.bf16.msra.mxu0 %v957
  %1364 = vmatprep.subr.bf16.mxu0 0
  %1365 = vmatpush1.bf16.msra.mxu0 %v958
  %1366 = vmatprep.subr.bf16.mxu0 0
  %1367 = vmatpush1.bf16.msra.mxu0 %v959
  %1368 = vmatprep.subr.bf16.mxu0 0
  %1369 = vmatpush1.bf16.msra.mxu0 %v960
  %1370 = vmatprep.subr.bf16.mxu0 0
  %1371 = vmatpush1.bf16.msra.mxu0 %v961
  %1372 = vmatprep.subr.bf16.mxu0 0
  %1373 = vmatpush1.bf16.msra.mxu0 %v962
  %1374 = vmatprep.subr.bf16.mxu0 0
  %1375 = vmatpush1.bf16.msra.mxu0 %v963
  %1376 = vmatprep.subr.bf16.mxu0 0
  %1377 = vmatpush1.bf16.msra.mxu0 %v964
  %1378 = vmatprep.subr.bf16.mxu0 0
  %1379 = vmatpush1.bf16.msra.mxu0 %v965
  %1380 = vmatprep.subr.bf16.mxu0 0
  %1381 = vmatpush1.bf16.msra.mxu0 %v966
  %1382 = vmatprep.subr.bf16.mxu0 0
  %1383 = vmatpush1.bf16.msra.mxu0 %v967
  %1384 = vmatprep.mubr.bf16.mxu0 %v325
  %1385 = vmatmul.mubr.bf16.gmra.mrb[0].mxu0 %v324
  %v1386 = vpop.f32.mrb[0].mxu0
  %v1387 = vadd.f32 %v1347, %v1386
  %v1388 = vpop.f32.mrb[0].mxu0
  %v1389 = vpop.f32.mrb[0].mxu0
  %v1390 = vpop.f32.mrb[0].mxu0
  %1391 = vdwg.mxu0
  %1392 = vmatprep.subr.bf16.mxu0 0
  %1393 = vmatpush1.bf16.msra.mxu0 %v968
  %1394 = vmatprep.subr.bf16.mxu0 0
  %1395 = vmatpush1.bf16.msra.mxu0 %v969
  %1396 = vmatprep.subr.bf16.mxu0 0
  %1397 = vmatpush1.bf16.msra.mxu0 %v970
  %1398 = vmatprep.subr.bf16.mxu0 0
  %1399 = vmatpush1.bf16.msra.mxu0 %v971
  %1400 = vmatprep.subr.bf16.mxu0 0
  %1401 = vmatpush1.bf16.msra.mxu0 %v972
  %1402 = vmatprep.subr.bf16.mxu0 0
  %1403 = vmatpush1.bf16.msra.mxu0 %v973
  %1404 = vmatprep.subr.bf16.mxu0 0
  %1405 = vmatpush1.bf16.msra.mxu0 %v974
  %1406 = vmatprep.subr.bf16.mxu0 0
  %1407 = vmatpush1.bf16.msra.mxu0 %v975
  %1408 = vmatprep.subr.bf16.mxu0 0
  %1409 = vmatpush1.bf16.msra.mxu0 %v976
  %1410 = vmatprep.subr.bf16.mxu0 0
  %1411 = vmatpush1.bf16.msra.mxu0 %v977
  %1412 = vmatprep.subr.bf16.mxu0 0
  %1413 = vmatpush1.bf16.msra.mxu0 %v978
  %1414 = vmatprep.subr.bf16.mxu0 0
  %1415 = vmatpush1.bf16.msra.mxu0 %v979
  %1416 = vmatprep.subr.bf16.mxu0 0
  %1417 = vmatpush1.bf16.msra.mxu0 %v980
  %1418 = vmatprep.subr.bf16.mxu0 0
  %1419 = vmatpush1.bf16.msra.mxu0 %v981
  %1420 = vmatprep.subr.bf16.mxu0 0
  %1421 = vmatpush1.bf16.msra.mxu0 %v982
  %1422 = vmatprep.subr.bf16.mxu0 0
  %1423 = vmatpush1.bf16.msra.mxu0 %v983
  %1424 = vmatprep.mubr.bf16.mxu0 %v327
  %1425 = vmatmul.mubr.bf16.gmra.mrb[0].mxu0 %v326
  %v1426 = vpop.f32.mrb[0].mxu0
  %v1427 = vadd.f32 %v1387, %v1426
  %v1428 = vpop.f32.mrb[0].mxu0
  %v1429 = vpop.f32.mrb[0].mxu0
  %v1430 = vpop.f32.mrb[0].mxu0
  %1431 = vdwg.mxu0
  %1432 = vst [vmem:[%s3] sm:$0xff] %v1427
  %v1433 = vlaneseq
  %v1434 = vshrl.u32 %v1433, 7
  %s1435 = smul.u32 0, 8
  %v1436 = vstv %s1435
  %v1437 = vadd.s32 %v1434, %v1436
  %vm1438 = vcmp.lt.s32.totalorder %v1437, 2
  %v1439 = vsel %vm1438, %v1427, 0.0
  %v1440 = vrot.slane %v1439, 4
  %v1441 = vadd.f32 %v1439, %v1440
  %v1442 = vrot.slane %v1441, 2
  %v1443 = vadd.f32 %v1441, %v1442
  %v1444 = vrot.slane %v1443, 1
  %v1445 = vadd.f32 %v1443, %v1444
  %v1446 = vmul.f32 %v1439, %v1439
  %v1447 = vrot.slane %v1446, 4
  %v1448 = vadd.f32 %v1446, %v1447
  %v1449 = vrot.slane %v1448, 2
  %v1450 = vadd.f32 %v1448, %v1449
  %v1451 = vrot.slane %v1450, 1
  %v1452 = vadd.f32 %v1450, %v1451
  %vm1453 = vcmp.eq.s32.totalorder %v1434, 0
  %v1454 = vsel %vm1453, %v1445, 0.0
  %vm1455 = vcmp.eq.s32.totalorder %v1434, 1
  %v1456 = vsel %vm1455, %v1452, 0.0
  %v1457 = vadd.f32 %v1454, %v1456
  %p1458 = scmp.eq.s32.totalorder 0, 0
  // Predicated region
  $region14: #{n_layer_discriminator.13} parent=0 // pred_check
    %p1459 = pneg %p1458
  $region15: #{n_layer_discriminator.13} parent=0 // pred_check_branch
    %1461 = sbr.rel (%p1459) target = $region17
  $region16: #{n_layer_discriminator.13} parent=0 // pred_region
    %1462 = vst [vmem:[%s4] sm:$0xff] 0.0
  $region17: #{n_layer_discriminator.13} parent=0 // pred_fallthru
    _
  %v1463 = vld [vmem:[%s4] sm:$0xff]
  %v1464 = vadd.f32 %v1463, %v1457
  %1465 = vst [vmem:[%s4] sm:$0xff] %v1464
  // Predicated region
  $region18: #{n_layer_discriminator.13} parent=0 // pred_check
    _
  $region19: #{n_layer_discriminator.13} parent=0 // pred_check_branch
    %1467 = sbr.rel (0) target = $region21
  $region20: #{n_layer_discriminator.13} parent=0 // pred_region
    _
  $region21: #{n_layer_discriminator.13} parent=0 // pred_fallthru
    _
  // Predicated region
  $region22: #{n_layer_discriminator.13} parent=0 // pred_check
    _
  $region23: #{n_layer_discriminator.13} parent=0 // pred_check_branch
    %1469 = sbr.rel (0) target = $region25
  $region24: #{n_layer_discriminator.13} parent=0 // pred_region
    _
  $region25: #{n_layer_discriminator.13} parent=0 // pred_fallthru
    _
  // Predicated region
  $region26: #{n_layer_discriminator.13} parent=0 // pred_check
    _
  $region27: #{n_layer_discriminator.13} parent=0 // pred_check_branch
    %1471 = sbr.rel (0) target = $region29
  $region28: #{n_layer_discriminator.13} parent=0 // pred_region
    _
  $region29: #{n_layer_discriminator.13} parent=0 // pred_fallthru
    _
  // Predicated region
  $region30: #{n_layer_discriminator.13} parent=0 // pred_check
    _
  $region31: #{n_layer_discriminator.13} parent=0 // pred_check_branch
    %1473 = sbr.rel (0) target = $region33
  $region32: #{n_layer_discriminator.13} parent=0 // pred_region
    _
  $region33: #{n_layer_discriminator.13} parent=0 // pred_fallthru
    _

// kernel: n_layer_discriminator.15
$region0: #{n_layer_discriminator.15}
  #allocation0 [shape = 'u32[]', space=smem, size = 0x4, offset = 0x4, fixed_abs, tag = 'smem constant byte address 0x4 - core index']
  #allocation1 [shape = 'u32[144,128]{1,0:T(1,128)}', space=vmem, size = 0x12000, scoped, tag = 'internal scratch']
  %s0 = inlined_call_operand.vmem [shape: bf16[2,8,2048], index: 0, kind: input, shape index: {}]
  %s1 = inlined_call_operand.vmem [shape: bf16[2048,128], index: 1, kind: input, shape index: {}]
  %s2 = inlined_call_operand.vmem [shape: f32[1,128], index: 2, kind: input, shape index: {}]
  %s3 = inlined_call_operand.vmem [shape: f32[2,128], index: 3, kind: output, shape index: {}]
  %s4 = sld [smem:[#allocation0]]
  $region49: #{n_layer_discriminator.15} parent=0
    _
  %s6 = ssub.s32 1, %s4
  %s7 = scalar_select 0, %s6, %s4
  loop: start=0, step=1, limit=4
  $region2: #{n_layer_discriminator.15} parent=0 // loop_pre_header
    _
  $region3: #{n_layer_discriminator.15} parent=0 // loop_header
    %s9 = sphi 0, %s13
    %p10 = scmp.ge.s32.totalorder %s9, 4
    %s16 = sphi 0, %s28
    %s17 = sphi 0, %s24
    %s18 = sphi 0, %s16
    %s19 = sphi 0, %s17
    %s20 = sphi 0, %s18
    %s21 = sphi 0, %s19
    %s33 = sphi 0, %s35
    %s36 = sphi 0, %s33
    %s37 = sphi 0, %s36
    %s53 = sphi 0, %s37
    %s57 = sphi 0, %s57
    %s59 = sphi 0, %s57
    %s60 = sphi 0, %s59
    %s74 = sphi 0, %s60
    %s78 = sphi 0, %s78
    %s80 = sphi 0, %s78
    %s81 = sphi 0, %s80
    %s95 = sphi 0, %s81
    %s99 = sphi 0, %s99
    %s101 = sphi 0, %s99
    %s102 = sphi 0, %s101
    %s116 = sphi 0, %s102
  $region4: #{n_layer_discriminator.15} parent=0 // loop_header_branch
    %12 = sbr.rel (%p10) target = $region8
  $region5: #{n_layer_discriminator.15} parent=0 // loop_body
    %s14 = ssub.s32 %s9, 1
    %s15 = ssub.s32 %s9, 2
    %s22 = sadd.s32 1, %s17
    %p23 = scmp.ge.s32.totalorder %s22, 1
    %s24 = scalar_select %p23, 0, %s22
    %s25 = sadd.s32 1, %s16
    %s26 = scalar_select %p23, %s25, %s16
    %p27 = scmp.ge.s32.totalorder %s26, 2
    %s28 = scalar_select %p27, 0, %s26
    %s29 = ssub.s32 %s16, %s28
    %s30 = ssub.s32 %s17, %s24
    %s31 = sor.u32 %s29, %s30
    %p32 = scmp.eq.s32.totalorder %s31, 0
    %s34 = sadd.s32 %s33, 1
    %s35 = scalar_select %p32, %s33, %s34
    %p38 = pneg %p32
    %p39 = scmp.eq.s32.totalorder %s9, 1
    %p40 = por %p38, %p39
    %p41 = scmp.ne.s32.totalorder %s33, %s36
    %p42 = scmp.eq.s32.totalorder %s9, 0
    %p43 = por %p41, %p42
    %p44 = scmp.ne.s32.totalorder %s33, %s36
    %p45 = scmp.eq.s32.totalorder %s14, 1
    %p46 = por %p44, %p45
    %p47 = scmp.ne.s32.totalorder %s36, %s37
    %p48 = scmp.eq.s32.totalorder %s14, 0
    %p49 = por %p47, %p48
    %p50 = scmp.ne.s32.totalorder %s36, %s37
    %p51 = scmp.eq.s32.totalorder %s15, 1
    %p52 = por %p50, %p51
    %p54 = scmp.ne.s32.totalorder %s37, %s53
    %p55 = scmp.eq.s32.totalorder %s15, 0
    %p56 = por %p54, %p55
    %s58 = sadd.s32 %s57, 1
    %p61 = scmp.eq.s32.totalorder %s9, 1
    %p62 = scmp.ne.s32.totalorder %s57, %s59
    %p63 = scmp.eq.s32.totalorder %s9, 0
    %p64 = por %p62, %p63
    %p65 = scmp.ne.s32.totalorder %s57, %s59
    %p66 = scmp.eq.s32.totalorder %s14, 1
    %p67 = por %p65, %p66
    %p68 = scmp.ne.s32.totalorder %s59, %s60
    %p69 = scmp.eq.s32.totalorder %s14, 0
    %p70 = por %p68, %p69
    %p71 = scmp.ne.s32.totalorder %s59, %s60
    %p72 = scmp.eq.s32.totalorder %s15, 1
    %p73 = por %p71, %p72
    %p75 = scmp.ne.s32.totalorder %s60, %s74
    %p76 = scmp.eq.s32.totalorder %s15, 0
    %p77 = por %p75, %p76
    %s79 = sadd.s32 %s78, 1
    %p82 = scmp.eq.s32.totalorder %s9, 1
    %p83 = scmp.ne.s32.totalorder %s78, %s80
    %p84 = scmp.eq.s32.totalorder %s9, 0
    %p85 = por %p83, %p84
    %p86 = scmp.ne.s32.totalorder %s78, %s80
    %p87 = scmp.eq.s32.totalorder %s14, 1
    %p88 = por %p86, %p87
    %p89 = scmp.ne.s32.totalorder %s80, %s81
    %p90 = scmp.eq.s32.totalorder %s14, 0
    %p91 = por %p89, %p90
    %p92 = scmp.ne.s32.totalorder %s80, %s81
    %p93 = scmp.eq.s32.totalorder %s15, 1
    %p94 = por %p92, %p93
    %p96 = scmp.ne.s32.totalorder %s81, %s95
    %p97 = scmp.eq.s32.totalorder %s15, 0
    %p98 = por %p96, %p97
    %s100 = sadd.s32 %s99, 1
    %p103 = scmp.eq.s32.totalorder %s9, 1
    %p104 = scmp.ne.s32.totalorder %s99, %s101
    %p105 = scmp.eq.s32.totalorder %s9, 0
    %p106 = por %p104, %p105
    %p107 = scmp.ne.s32.totalorder %s99, %s101
    %p108 = scmp.eq.s32.totalorder %s14, 1
    %p109 = por %p107, %p108
    %p110 = scmp.ne.s32.totalorder %s101, %s102
    %p111 = scmp.eq.s32.totalorder %s14, 0
    %p112 = por %p110, %p111
    %p113 = scmp.ne.s32.totalorder %s101, %s102
    %p114 = scmp.eq.s32.totalorder %s15, 1
    %p115 = por %p113, %p114
    %p117 = scmp.ne.s32.totalorder %s102, %s116
    %p118 = scmp.eq.s32.totalorder %s15, 0
    %p119 = por %p117, %p118
    %p120 = scmp.le.s32.totalorder 1, %s9
    %p121 = scmp.lt.s32.totalorder %s9, 3
    %p122 = pnand %p120, %p121
    %p123 = pneg %p122
    // Predicated region
    $region9: #{n_layer_discriminator.15} parent=5 // pred_check
      _
    $region10: #{n_layer_discriminator.15} parent=5 // pred_check_branch
      %125 = sbr.rel (%p122) target = $region12
    $region11: #{n_layer_discriminator.15} parent=5 // pred_region
      %s126 = ssub.s32 %s9, 1
      // Predicated region
      $region13: #{n_layer_discriminator.15} parent=11 // pred_check
        %p127 = pneg %p70
      $region14: #{n_layer_discriminator.15} parent=11 // pred_check_branch
        %129 = sbr.rel (%p127) target = $region16
      $region15: #{n_layer_discriminator.15} parent=11 // pred_region
        _
      $region16: #{n_layer_discriminator.15} parent=11 // pred_fallthru
        _
      // Predicated region
      $region17: #{n_layer_discriminator.15} parent=11 // pred_check
        %p130 = pneg %p91
      $region18: #{n_layer_discriminator.15} parent=11 // pred_check_branch
        %132 = sbr.rel (%p130) target = $region20
      $region19: #{n_layer_discriminator.15} parent=11 // pred_region
        _
      $region20: #{n_layer_discriminator.15} parent=11 // pred_fallthru
        _
    $region12: #{n_layer_discriminator.15} parent=5 // pred_fallthru
      _
    %p133 = scmp.lt.s32.totalorder %s9, 2
    // Predicated region
    $region21: #{n_layer_discriminator.15} parent=5 // pred_check
      %p134 = pneg %p133
    $region22: #{n_layer_discriminator.15} parent=5 // pred_check_branch
      %136 = sbr.rel (%p134) target = $region24
    $region23: #{n_layer_discriminator.15} parent=5 // pred_region
      // Predicated region
      $region25: #{n_layer_discriminator.15} parent=23 // pred_check
        %p137 = pneg %p43
      $region26: #{n_layer_discriminator.15} parent=23 // pred_check_branch
        %139 = sbr.rel (%p137) target = $region28
      $region27: #{n_layer_discriminator.15} parent=23 // pred_region
        %p140 = scmp.lt.s32.totalorder %s16, 1
        %s141 = scalar_select %p140, %s16, 1
        %p142 = scmp.lt.s32.totalorder %s17, 0
        %s143 = scalar_select %p142, %s17, 0
        %s144 = smul.addr %s143, 16
        %s145 = smul.addr %s141, 16
        %s146 = sadd.s32 %s144, %s145
        %s147 = smul.addr %s146, 4
        %s148 = scalar_lea.vmem %s0, %s147
      $region28: #{n_layer_discriminator.15} parent=23 // pred_fallthru
        _
    $region24: #{n_layer_discriminator.15} parent=5 // pred_fallthru
      _
    %p149 = scmp.le.s32.totalorder 1, %s9
    %p150 = scmp.lt.s32.totalorder %s9, 3
    %p151 = pnand %p149, %p150
    %p152 = pneg %p151
    // Predicated region
    $region29: #{n_layer_discriminator.15} parent=5 // pred_check
      _
    $region30: #{n_layer_discriminator.15} parent=5 // pred_check_branch
      %154 = sbr.rel (%p151) target = $region32
    $region31: #{n_layer_discriminator.15} parent=5 // pred_region
      %s155 = ssub.s32 %s9, 1
      %p156 = scmp.lt.s32.totalorder %s18, 1
      %s157 = scalar_select %p156, %s18, 1
      %p158 = scmp.lt.s32.totalorder %s19, 0
      %s159 = scalar_select %p158, %s19, 0
      %s160 = smul.addr %s159, 16
      %s161 = smul.addr %s157, 16
      %s162 = sadd.s32 %s160, %s161
      %s163 = smul.addr %s162, 4
      %s164 = scalar_lea.vmem %s0, %s163
      %p165 = pneg %p49
      %p166 = pneg %p46
      %p167 = pneg %p70
      %p168 = pneg %p67
      %p169 = pneg %p91
      %p170 = pneg %p88
      %p171 = pneg %p112
      %p172 = pneg %p109
      %p173 = scmp.lt.s32.totalorder %s18, 1
      %s174 = scalar_select %p173, %s18, 1
      %p175 = scmp.lt.s32.totalorder %s19, 0
      %s176 = scalar_select %p175, %s19, 0
      %s177 = smul.addr %s176, 16
      %s178 = smul.addr %s174, 16
      %s179 = sadd.s32 %s177, %s178
      %s180 = smul.addr %s179, 4
      %s181 = scalar_lea.vmem %s0, %s180
      %p183 = scmp.eq.s32.totalorder %s18, 0
      %p184 = scmp.eq.s32.totalorder %s19, 0
      %p185 = pnand %p183, %p184
      %p186 = pneg %p185
      // Predicated region
      $region33: #{n_layer_discriminator.15} parent=31 // pred_check
        _
      $region34: #{n_layer_discriminator.15} parent=31 // pred_check_branch
        %188 = sbr.rel (%p185) target = $region36
      $region35: #{n_layer_discriminator.15} parent=31 // pred_region
        %189 = vst [vmem:[%s3] sm:$0x3] 0.0
      $region36: #{n_layer_discriminator.15} parent=31 // pred_fallthru
        _
      %v190 = vld [vmem:[%s181] sm:$0xff]
      %v191 = vld [vmem:[%s181 + $0x8] sm:$0xff]
      %v192 = vld [vmem:[%s181 + $0x10] sm:$0xff]
      %v193 = vld [vmem:[%s181 + $0x18] sm:$0xff]
      %v194 = vld [vmem:[%s181 + $0x20] sm:$0xff]
      %v195 = vld [vmem:[%s181 + $0x28] sm:$0xff]
      %v196 = vld [vmem:[%s181 + $0x30] sm:$0xff]
      %v197 = vld [vmem:[%s181 + $0x38] sm:$0xff]
      %v198 = vld [vmem:[%s1] sm:$0xf]
      %v199 = vld [vmem:[%s1 + $0x4] sm:$0xf]
      %v200 = vld [vmem:[%s1 + $0x8] sm:$0xf]
      %v201 = vld [vmem:[%s1 + $0xc] sm:$0xf]
      %v202 = vld [vmem:[%s1 + $0x10] sm:$0xf]
      %v203 = vld [vmem:[%s1 + $0x14] sm:$0xf]
      %v204 = vld [vmem:[%s1 + $0x18] sm:$0xf]
      %v205 = vld [vmem:[%s1 + $0x1c] sm:$0xf]
      %v206 = vld [vmem:[%s1 + $0x20] sm:$0xf]
      %v207 = vld [vmem:[%s1 + $0x24] sm:$0xf]
      %v208 = vld [vmem:[%s1 + $0x28] sm:$0xf]
      %v209 = vld [vmem:[%s1 + $0x2c] sm:$0xf]
      %v210 = vld [vmem:[%s1 + $0x30] sm:$0xf]
      %v211 = vld [vmem:[%s1 + $0x34] sm:$0xf]
      %v212 = vld [vmem:[%s1 + $0x38] sm:$0xf]
      %v213 = vld [vmem:[%s1 + $0x3c] sm:$0xf]
      %v214 = vld [vmem:[%s1 + $0x40] sm:$0xf]
      %v215 = vld [vmem:[%s1 + $0x44] sm:$0xf]
      %v216 = vld [vmem:[%s1 + $0x48] sm:$0xf]
      %v217 = vld [vmem:[%s1 + $0x4c] sm:$0xf]
      %v218 = vld [vmem:[%s1 + $0x50] sm:$0xf]
      %v219 = vld [vmem:[%s1 + $0x54] sm:$0xf]
      %v220 = vld [vmem:[%s1 + $0x58] sm:$0xf]
      %v221 = vld [vmem:[%s1 + $0x5c] sm:$0xf]
      %v222 = vld [vmem:[%s1 + $0x60] sm:$0xf]
      %v223 = vld [vmem:[%s1 + $0x64] sm:$0xf]
      %v224 = vld [vmem:[%s1 + $0x68] sm:$0xf]
      %v225 = vld [vmem:[%s1 + $0x6c] sm:$0xf]
      %v226 = vld [vmem:[%s1 + $0x70] sm:$0xf]
      %v227 = vld [vmem:[%s1 + $0x74] sm:$0xf]
      %v228 = vld [vmem:[%s1 + $0x78] sm:$0xf]
      %v229 = vld [vmem:[%s1 + $0x7c] sm:$0xf]
      %v230 = vld [vmem:[%s1 + $0x80] sm:$0xf]
      %v231 = vld [vmem:[%s1 + $0x84] sm:$0xf]
      %v232 = vld [vmem:[%s1 + $0x88] sm:$0xf]
      %v233 = vld [vmem:[%s1 + $0x8c] sm:$0xf]
      %v234 = vld [vmem:[%s1 + $0x90] sm:$0xf]
      %v235 = vld [vmem:[%s1 + $0x94] sm:$0xf]
      %v236 = vld [vmem:[%s1 + $0x98] sm:$0xf]
      %v237 = vld [vmem:[%s1 + $0x9c] sm:$0xf]
      %v238 = vld [vmem:[%s1 + $0xa0] sm:$0xf]
      %v239 = vld [vmem:[%s1 + $0xa4] sm:$0xf]
      %v240 = vld [vmem:[%s1 + $0xa8] sm:$0xf]
      %v241 = vld [vmem:[%s1 + $0xac] sm:$0xf]
      %v242 = vld [vmem:[%s1 + $0xb0] sm:$0xf]
      %v243 = vld [vmem:[%s1 + $0xb4] sm:$0xf]
      %v244 = vld [vmem:[%s1 + $0xb8] sm:$0xf]
      %v245 = vld [vmem:[%s1 + $0xbc] sm:$0xf]
      %v246 = vld [vmem:[%s1 + $0xc0] sm:$0xf]
      %v247 = vld [vmem:[%s1 + $0xc4] sm:$0xf]
      %v248 = vld [vmem:[%s1 + $0xc8] sm:$0xf]
      %v249 = vld [vmem:[%s1 + $0xcc] sm:$0xf]
      %v250 = vld [vmem:[%s1 + $0xd0] sm:$0xf]
      %v251 = vld [vmem:[%s1 + $0xd4] sm:$0xf]
      %v252 = vld [vmem:[%s1 + $0xd8] sm:$0xf]
      %v253 = vld [vmem:[%s1 + $0xdc] sm:$0xf]
      %v254 = vld [vmem:[%s1 + $0xe0] sm:$0xf]
      %v255 = vld [vmem:[%s1 + $0xe4] sm:$0xf]
      %v256 = vld [vmem:[%s1 + $0xe8] sm:$0xf]
      %v257 = vld [vmem:[%s1 + $0xec] sm:$0xf]
      %v258 = vld [vmem:[%s1 + $0xf0] sm:$0xf]
      %v259 = vld [vmem:[%s1 + $0xf4] sm:$0xf]
      %v260 = vld [vmem:[%s1 + $0xf8] sm:$0xf]
      %v261 = vld [vmem:[%s1 + $0xfc] sm:$0xf]
      %v262 = vld [vmem:[%s1 + $0x100] sm:$0xf]
      %v263 = vld [vmem:[%s1 + $0x104] sm:$0xf]
      %v264 = vld [vmem:[%s1 + $0x108] sm:$0xf]
      %v265 = vld [vmem:[%s1 + $0x10c] sm:$0xf]
      %v266 = vld [vmem:[%s1 + $0x110] sm:$0xf]
      %v267 = vld [vmem:[%s1 + $0x114] sm:$0xf]
      %v268 = vld [vmem:[%s1 + $0x118] sm:$0xf]
      %v269 = vld [vmem:[%s1 + $0x11c] sm:$0xf]
      %v270 = vld [vmem:[%s1 + $0x120] sm:$0xf]
      %v271 = vld [vmem:[%s1 + $0x124] sm:$0xf]
      %v272 = vld [vmem:[%s1 + $0x128] sm:$0xf]
      %v273 = vld [vmem:[%s1 + $0x12c] sm:$0xf]
      %v274 = vld [vmem:[%s1 + $0x130] sm:$0xf]
      %v275 = vld [vmem:[%s1 + $0x134] sm:$0xf]
      %v276 = vld [vmem:[%s1 + $0x138] sm:$0xf]
      %v277 = vld [vmem:[%s1 + $0x13c] sm:$0xf]
      %v278 = vld [vmem:[%s1 + $0x140] sm:$0xf]
      %v279 = vld [vmem:[%s1 + $0x144] sm:$0xf]
      %v280 = vld [vmem:[%s1 + $0x148] sm:$0xf]
      %v281 = vld [vmem:[%s1 + $0x14c] sm:$0xf]
      %v282 = vld [vmem:[%s1 + $0x150] sm:$0xf]
      %v283 = vld [vmem:[%s1 + $0x154] sm:$0xf]
      %v284 = vld [vmem:[%s1 + $0x158] sm:$0xf]
      %v285 = vld [vmem:[%s1 + $0x15c] sm:$0xf]
      %v286 = vld [vmem:[%s1 + $0x160] sm:$0xf]
      %v287 = vld [vmem:[%s1 + $0x164] sm:$0xf]
      %v288 = vld [vmem:[%s1 + $0x168] sm:$0xf]
      %v289 = vld [vmem:[%s1 + $0x16c] sm:$0xf]
      %v290 = vld [vmem:[%s1 + $0x170] sm:$0xf]
      %v291 = vld [vmem:[%s1 + $0x174] sm:$0xf]
      %v292 = vld [vmem:[%s1 + $0x178] sm:$0xf]
      %v293 = vld [vmem:[%s1 + $0x17c] sm:$0xf]
      %v294 = vld [vmem:[%s1 + $0x180] sm:$0xf]
      %v295 = vld [vmem:[%s1 + $0x184] sm:$0xf]
      %v296 = vld [vmem:[%s1 + $0x188] sm:$0xf]
      %v297 = vld [vmem:[%s1 + $0x18c] sm:$0xf]
      %v298 = vld [vmem:[%s1 + $0x190] sm:$0xf]
      %v299 = vld [vmem:[%s1 + $0x194] sm:$0xf]
      %v300 = vld [vmem:[%s1 + $0x198] sm:$0xf]
      %v301 = vld [vmem:[%s1 + $0x19c] sm:$0xf]
      %v302 = vld [vmem:[%s1 + $0x1a0] sm:$0xf]
      %v303 = vld [vmem:[%s1 + $0x1a4] sm:$0xf]
      %v304 = vld [vmem:[%s1 + $0x1a8] sm:$0xf]
      %v305 = vld [vmem:[%s1 + $0x1ac] sm:$0xf]
      %v306 = vld [vmem:[%s1 + $0x1b0] sm:$0xf]
      %v307 = vld [vmem:[%s1 + $0x1b4] sm:$0xf]
      %v308 = vld [vmem:[%s1 + $0x1b8] sm:$0xf]
      %v309 = vld [vmem:[%s1 + $0x1bc] sm:$0xf]
      %v310 = vld [vmem:[%s1 + $0x1c0] sm:$0xf]
      %v311 = vld [vmem:[%s1 + $0x1c4] sm:$0xf]
      %v312 = vld [vmem:[%s1 + $0x1c8] sm:$0xf]
      %v313 = vld [vmem:[%s1 + $0x1cc] sm:$0xf]
      %v314 = vld [vmem:[%s1 + $0x1d0] sm:$0xf]
      %v315 = vld [vmem:[%s1 + $0x1d4] sm:$0xf]
      %v316 = vld [vmem:[%s1 + $0x1d8] sm:$0xf]
      %v317 = vld [vmem:[%s1 + $0x1dc] sm:$0xf]
      %v318 = vld [vmem:[%s1 + $0x1e0] sm:$0xf]
      %v319 = vld [vmem:[%s1 + $0x1e4] sm:$0xf]
      %v320 = vld [vmem:[%s1 + $0x1e8] sm:$0xf]
      %v321 = vld [vmem:[%s1 + $0x1ec] sm:$0xf]
      %v322 = vld [vmem:[%s1 + $0x1f0] sm:$0xf]
      %v323 = vld [vmem:[%s1 + $0x1f4] sm:$0xf]
      %v324 = vld [vmem:[%s1 + $0x1f8] sm:$0xf]
      %v325 = vld [vmem:[%s1 + $0x1fc] sm:$0xf]
      %v326 = vld [vmem:[%s1 + $0x200] sm:$0xf]
      %v327 = vld [vmem:[%s1 + $0x204] sm:$0xf]
      %v328 = vld [vmem:[%s1 + $0x208] sm:$0xf]
      %v329 = vld [vmem:[%s1 + $0x20c] sm:$0xf]
      %v330 = vld [vmem:[%s1 + $0x210] sm:$0xf]
      %v331 = vld [vmem:[%s1 + $0x214] sm:$0xf]
      %v332 = vld [vmem:[%s1 + $0x218] sm:$0xf]
      %v333 = vld [vmem:[%s1 + $0x21c] sm:$0xf]
      %v334 = vld [vmem:[%s1 + $0x220] sm:$0xf]
      %v335 = vld [vmem:[%s1 + $0x224] sm:$0xf]
      %v336 = vld [vmem:[%s1 + $0x228] sm:$0xf]
      %v337 = vld [vmem:[%s1 + $0x22c] sm:$0xf]
      %v338 = vld [vmem:[%s1 + $0x230] sm:$0xf]
      %v339 = vld [vmem:[%s1 + $0x234] sm:$0xf]
      %v340 = vld [vmem:[%s1 + $0x238] sm:$0xf]
      %v341 = vld [vmem:[%s1 + $0x23c] sm:$0xf]
      %v342 = vld [vmem:[%s1 + $0x240] sm:$0xf]
      %v343 = vld [vmem:[%s1 + $0x244] sm:$0xf]
      %v344 = vld [vmem:[%s1 + $0x248] sm:$0xf]
      %v345 = vld [vmem:[%s1 + $0x24c] sm:$0xf]
      %v346 = vld [vmem:[%s1 + $0x250] sm:$0xf]
      %v347 = vld [vmem:[%s1 + $0x254] sm:$0xf]
      %v348 = vld [vmem:[%s1 + $0x258] sm:$0xf]
      %v349 = vld [vmem:[%s1 + $0x25c] sm:$0xf]
      %v350 = vld [vmem:[%s1 + $0x260] sm:$0xf]
      %v351 = vld [vmem:[%s1 + $0x264] sm:$0xf]
      %v352 = vld [vmem:[%s1 + $0x268] sm:$0xf]
      %v353 = vld [vmem:[%s1 + $0x26c] sm:$0xf]
      %v354 = vld [vmem:[%s1 + $0x270] sm:$0xf]
      %v355 = vld [vmem:[%s1 + $0x274] sm:$0xf]
      %v356 = vld [vmem:[%s1 + $0x278] sm:$0xf]
      %v357 = vld [vmem:[%s1 + $0x27c] sm:$0xf]
      %v358 = vld [vmem:[%s1 + $0x280] sm:$0xf]
      %v359 = vld [vmem:[%s1 + $0x284] sm:$0xf]
      %v360 = vld [vmem:[%s1 + $0x288] sm:$0xf]
      %v361 = vld [vmem:[%s1 + $0x28c] sm:$0xf]
      %v362 = vld [vmem:[%s1 + $0x290] sm:$0xf]
      %v363 = vld [vmem:[%s1 + $0x294] sm:$0xf]
      %v364 = vld [vmem:[%s1 + $0x298] sm:$0xf]
      %v365 = vld [vmem:[%s1 + $0x29c] sm:$0xf]
      %v366 = vld [vmem:[%s1 + $0x2a0] sm:$0xf]
      %v367 = vld [vmem:[%s1 + $0x2a4] sm:$0xf]
      %v368 = vld [vmem:[%s1 + $0x2a8] sm:$0xf]
      %v369 = vld [vmem:[%s1 + $0x2ac] sm:$0xf]
      %v370 = vld [vmem:[%s1 + $0x2b0] sm:$0xf]
      %v371 = vld [vmem:[%s1 + $0x2b4] sm:$0xf]
      %v372 = vld [vmem:[%s1 + $0x2b8] sm:$0xf]
      %v373 = vld [vmem:[%s1 + $0x2bc] sm:$0xf]
      %v374 = vld [vmem:[%s1 + $0x2c0] sm:$0xf]
      %v375 = vld [vmem:[%s1 + $0x2c4] sm:$0xf]
      %v376 = vld [vmem:[%s1 + $0x2c8] sm:$0xf]
      %v377 = vld [vmem:[%s1 + $0x2cc] sm:$0xf]
      %v378 = vld [vmem:[%s1 + $0x2d0] sm:$0xf]
      %v379 = vld [vmem:[%s1 + $0x2d4] sm:$0xf]
      %v380 = vld [vmem:[%s1 + $0x2d8] sm:$0xf]
      %v381 = vld [vmem:[%s1 + $0x2dc] sm:$0xf]
      %v382 = vld [vmem:[%s1 + $0x2e0] sm:$0xf]
      %v383 = vld [vmem:[%s1 + $0x2e4] sm:$0xf]
      %v384 = vld [vmem:[%s1 + $0x2e8] sm:$0xf]
      %v385 = vld [vmem:[%s1 + $0x2ec] sm:$0xf]
      %v386 = vld [vmem:[%s1 + $0x2f0] sm:$0xf]
      %v387 = vld [vmem:[%s1 + $0x2f4] sm:$0xf]
      %v388 = vld [vmem:[%s1 + $0x2f8] sm:$0xf]
      %v389 = vld [vmem:[%s1 + $0x2fc] sm:$0xf]
      %v390 = vld [vmem:[%s1 + $0x300] sm:$0xf]
      %v391 = vld [vmem:[%s1 + $0x304] sm:$0xf]
      %v392 = vld [vmem:[%s1 + $0x308] sm:$0xf]
      %v393 = vld [vmem:[%s1 + $0x30c] sm:$0xf]
      %v394 = vld [vmem:[%s1 + $0x310] sm:$0xf]
      %v395 = vld [vmem:[%s1 + $0x314] sm:$0xf]
      %v396 = vld [vmem:[%s1 + $0x318] sm:$0xf]
      %v397 = vld [vmem:[%s1 + $0x31c] sm:$0xf]
      %v398 = vld [vmem:[%s1 + $0x320] sm:$0xf]
      %v399 = vld [vmem:[%s1 + $0x324] sm:$0xf]
      %v400 = vld [vmem:[%s1 + $0x328] sm:$0xf]
      %v401 = vld [vmem:[%s1 + $0x32c] sm:$0xf]
      %v402 = vld [vmem:[%s1 + $0x330] sm:$0xf]
      %v403 = vld [vmem:[%s1 + $0x334] sm:$0xf]
      %v404 = vld [vmem:[%s1 + $0x338] sm:$0xf]
      %v405 = vld [vmem:[%s1 + $0x33c] sm:$0xf]
      %v406 = vld [vmem:[%s1 + $0x340] sm:$0xf]
      %v407 = vld [vmem:[%s1 + $0x344] sm:$0xf]
      %v408 = vld [vmem:[%s1 + $0x348] sm:$0xf]
      %v409 = vld [vmem:[%s1 + $0x34c] sm:$0xf]
      %v410 = vld [vmem:[%s1 + $0x350] sm:$0xf]
      %v411 = vld [vmem:[%s1 + $0x354] sm:$0xf]
      %v412 = vld [vmem:[%s1 + $0x358] sm:$0xf]
      %v413 = vld [vmem:[%s1 + $0x35c] sm:$0xf]
      %v414 = vld [vmem:[%s1 + $0x360] sm:$0xf]
      %v415 = vld [vmem:[%s1 + $0x364] sm:$0xf]
      %v416 = vld [vmem:[%s1 + $0x368] sm:$0xf]
      %v417 = vld [vmem:[%s1 + $0x36c] sm:$0xf]
      %v418 = vld [vmem:[%s1 + $0x370] sm:$0xf]
      %v419 = vld [vmem:[%s1 + $0x374] sm:$0xf]
      %v420 = vld [vmem:[%s1 + $0x378] sm:$0xf]
      %v421 = vld [vmem:[%s1 + $0x37c] sm:$0xf]
      %v422 = vld [vmem:[%s1 + $0x380] sm:$0xf]
      %v423 = vld [vmem:[%s1 + $0x384] sm:$0xf]
      %v424 = vld [vmem:[%s1 + $0x388] sm:$0xf]
      %v425 = vld [vmem:[%s1 + $0x38c] sm:$0xf]
      %v426 = vld [vmem:[%s1 + $0x390] sm:$0xf]
      %v427 = vld [vmem:[%s1 + $0x394] sm:$0xf]
      %v428 = vld [vmem:[%s1 + $0x398] sm:$0xf]
      %v429 = vld [vmem:[%s1 + $0x39c] sm:$0xf]
      %v430 = vld [vmem:[%s1 + $0x3a0] sm:$0xf]
      %v431 = vld [vmem:[%s1 + $0x3a4] sm:$0xf]
      %v432 = vld [vmem:[%s1 + $0x3a8] sm:$0xf]
      %v433 = vld [vmem:[%s1 + $0x3ac] sm:$0xf]
      %v434 = vld [vmem:[%s1 + $0x3b0] sm:$0xf]
      %v435 = vld [vmem:[%s1 + $0x3b4] sm:$0xf]
      %v436 = vld [vmem:[%s1 + $0x3b8] sm:$0xf]
      %v437 = vld [vmem:[%s1 + $0x3bc] sm:$0xf]
      %v438 = vld [vmem:[%s1 + $0x3c0] sm:$0xf]
      %v439 = vld [vmem:[%s1 + $0x3c4] sm:$0xf]
      %v440 = vld [vmem:[%s1 + $0x3c8] sm:$0xf]
      %v441 = vld [vmem:[%s1 + $0x3cc] sm:$0xf]
      %v442 = vld [vmem:[%s1 + $0x3d0] sm:$0xf]
      %v443 = vld [vmem:[%s1 + $0x3d4] sm:$0xf]
      %v444 = vld [vmem:[%s1 + $0x3d8] sm:$0xf]
      %v445 = vld [vmem:[%s1 + $0x3dc] sm:$0xf]
      %v446 = vld [vmem:[%s1 + $0x3e0] sm:$0xf]
      %v447 = vld [vmem:[%s1 + $0x3e4] sm:$0xf]
      %v448 = vld [vmem:[%s1 + $0x3e8] sm:$0xf]
      %v449 = vld [vmem:[%s1 + $0x3ec] sm:$0xf]
      %v450 = vld [vmem:[%s1 + $0x3f0] sm:$0xf]
      %v451 = vld [vmem:[%s1 + $0x3f4] sm:$0xf]
      %v452 = vld [vmem:[%s1 + $0x3f8] sm:$0xf]
      %v453 = vld [vmem:[%s1 + $0x3fc] sm:$0xf]
      %v454 = vld [vmem:[%s2] sm:$0x1]
      %v456 = vlaneseq
      %v457 = vshrl.u32 %v456, 7
      %v458 = vsub.s32 0, %v457
      %v459 = vrot.slane %v454, %v458
      %v469 = vunpack.c.l.b16 %v190
      %v470 = vunpack.c.h.b16 %v190
      %v471 = vunpack.c.l.b16 %v191
      %v472 = vunpack.c.h.b16 %v191
      %v473 = vunpack.c.l.b16 %v192
      %v474 = vunpack.c.h.b16 %v192
      %v475 = vunpack.c.l.b16 %v193
      %v476 = vunpack.c.h.b16 %v193
      %v477 = vunpack.c.l.b16 %v194
      %v478 = vunpack.c.h.b16 %v194
      %v479 = vunpack.c.l.b16 %v195
      %v480 = vunpack.c.h.b16 %v195
      %v481 = vunpack.c.l.b16 %v196
      %v482 = vunpack.c.h.b16 %v196
      %v483 = vunpack.c.l.b16 %v197
      %v484 = vunpack.c.h.b16 %v197
      %v485 = vpack.c.b16 %v469, %v469
      %v486 = vpack.c.b16 %v470, %v470
      %v487 = vpack.c.b16 %v471, %v471
      %v488 = vpack.c.b16 %v472, %v472
      %v489 = vpack.c.b16 %v473, %v473
      %v490 = vpack.c.b16 %v474, %v474
      %v491 = vpack.c.b16 %v475, %v475
      %v492 = vpack.c.b16 %v476, %v476
      %v493 = vpack.c.b16 %v477, %v477
      %v494 = vpack.c.b16 %v478, %v478
      %v495 = vpack.c.b16 %v479, %v479
      %v496 = vpack.c.b16 %v480, %v480
      %v497 = vpack.c.b16 %v481, %v481
      %v498 = vpack.c.b16 %v482, %v482
      %v499 = vpack.c.b16 %v483, %v483
      %v500 = vpack.c.b16 %v484, %v484
      %v773 = vunpack.c.l.b16 %v198
      %v774 = vunpack.c.l.b16 %v199
      %v775 = vunpack.c.l.b16 %v200
      %v776 = vunpack.c.l.b16 %v201
      %v777 = vunpack.c.l.b16 %v202
      %v778 = vunpack.c.l.b16 %v203
      %v779 = vunpack.c.l.b16 %v204
      %v780 = vunpack.c.l.b16 %v205
      %v781 = vunpack.c.l.b16 %v206
      %v782 = vunpack.c.l.b16 %v207
      %v783 = vunpack.c.l.b16 %v208
      %v784 = vunpack.c.l.b16 %v209
      %v785 = vunpack.c.l.b16 %v210
      %v786 = vunpack.c.l.b16 %v211
      %v787 = vunpack.c.l.b16 %v212
      %v788 = vunpack.c.l.b16 %v213
      %v789 = vunpack.c.l.b16 %v214
      %v790 = vunpack.c.l.b16 %v215
      %v791 = vunpack.c.l.b16 %v216
      %v792 = vunpack.c.l.b16 %v217
      %v793 = vunpack.c.l.b16 %v218
      %v794 = vunpack.c.l.b16 %v219
      %v795 = vunpack.c.l.b16 %v220
      %v796 = vunpack.c.l.b16 %v221
      %v797 = vunpack.c.l.b16 %v222
      %v798 = vunpack.c.l.b16 %v223
      %v799 = vunpack.c.l.b16 %v224
      %v800 = vunpack.c.l.b16 %v225
      %v801 = vunpack.c.l.b16 %v226
      %v802 = vunpack.c.l.b16 %v227
      %v803 = vunpack.c.l.b16 %v228
      %v804 = vunpack.c.l.b16 %v229
      %v805 = vunpack.c.l.b16 %v230
      %v806 = vunpack.c.l.b16 %v231
      %v807 = vunpack.c.l.b16 %v232
      %v808 = vunpack.c.l.b16 %v233
      %v809 = vunpack.c.l.b16 %v234
      %v810 = vunpack.c.l.b16 %v235
      %v811 = vunpack.c.l.b16 %v236
      %v812 = vunpack.c.l.b16 %v237
      %v813 = vunpack.c.l.b16 %v238
      %v814 = vunpack.c.l.b16 %v239
      %v815 = vunpack.c.l.b16 %v240
      %v816 = vunpack.c.l.b16 %v241
      %v817 = vunpack.c.l.b16 %v242
      %v818 = vunpack.c.l.b16 %v243
      %v819 = vunpack.c.l.b16 %v244
      %v820 = vunpack.c.l.b16 %v245
      %v821 = vunpack.c.l.b16 %v246
      %v822 = vunpack.c.l.b16 %v247
      %v823 = vunpack.c.l.b16 %v248
      %v824 = vunpack.c.l.b16 %v249
      %v825 = vunpack.c.l.b16 %v250
      %v826 = vunpack.c.l.b16 %v251
      %v827 = vunpack.c.l.b16 %v252
      %v828 = vunpack.c.l.b16 %v253
      %v829 = vunpack.c.l.b16 %v254
      %v830 = vunpack.c.l.b16 %v255
      %v831 = vunpack.c.l.b16 %v256
      %v832 = vunpack.c.l.b16 %v257
      %v833 = vunpack.c.l.b16 %v258
      %v834 = vunpack.c.l.b16 %v259
      %v835 = vunpack.c.l.b16 %v260
      %v836 = vunpack.c.l.b16 %v261
      %v837 = vunpack.c.l.b16 %v262
      %v838 = vunpack.c.l.b16 %v263
      %v839 = vunpack.c.l.b16 %v264
      %v840 = vunpack.c.l.b16 %v265
      %v841 = vunpack.c.l.b16 %v266
      %v842 = vunpack.c.l.b16 %v267
      %v843 = vunpack.c.l.b16 %v268
      %v844 = vunpack.c.l.b16 %v269
      %v845 = vunpack.c.l.b16 %v270
      %v846 = vunpack.c.l.b16 %v271
      %v847 = vunpack.c.l.b16 %v272
      %v848 = vunpack.c.l.b16 %v273
      %v849 = vunpack.c.l.b16 %v274
      %v850 = vunpack.c.l.b16 %v275
      %v851 = vunpack.c.l.b16 %v276
      %v852 = vunpack.c.l.b16 %v277
      %v853 = vunpack.c.l.b16 %v278
      %v854 = vunpack.c.l.b16 %v279
      %v855 = vunpack.c.l.b16 %v280
      %v856 = vunpack.c.l.b16 %v281
      %v857 = vunpack.c.l.b16 %v282
      %v858 = vunpack.c.l.b16 %v283
      %v859 = vunpack.c.l.b16 %v284
      %v860 = vunpack.c.l.b16 %v285
      %v861 = vunpack.c.l.b16 %v286
      %v862 = vunpack.c.l.b16 %v287
      %v863 = vunpack.c.l.b16 %v288
      %v864 = vunpack.c.l.b16 %v289
      %v865 = vunpack.c.l.b16 %v290
      %v866 = vunpack.c.l.b16 %v291
      %v867 = vunpack.c.l.b16 %v292
      %v868 = vunpack.c.l.b16 %v293
      %v869 = vunpack.c.l.b16 %v294
      %v870 = vunpack.c.l.b16 %v295
      %v871 = vunpack.c.l.b16 %v296
      %v872 = vunpack.c.l.b16 %v297
      %v873 = vunpack.c.l.b16 %v298
      %v874 = vunpack.c.l.b16 %v299
      %v875 = vunpack.c.l.b16 %v300
      %v876 = vunpack.c.l.b16 %v301
      %v877 = vunpack.c.l.b16 %v302
      %v878 = vunpack.c.l.b16 %v303
      %v879 = vunpack.c.l.b16 %v304
      %v880 = vunpack.c.l.b16 %v305
      %v881 = vunpack.c.l.b16 %v306
      %v882 = vunpack.c.l.b16 %v307
      %v883 = vunpack.c.l.b16 %v308
      %v884 = vunpack.c.l.b16 %v309
      %v885 = vunpack.c.l.b16 %v310
      %v886 = vunpack.c.l.b16 %v311
      %v887 = vunpack.c.l.b16 %v312
      %v888 = vunpack.c.l.b16 %v313
      %v889 = vunpack.c.l.b16 %v314
      %v890 = vunpack.c.l.b16 %v315
      %v891 = vunpack.c.l.b16 %v316
      %v892 = vunpack.c.l.b16 %v317
      %v893 = vunpack.c.l.b16 %v318
      %v894 = vunpack.c.l.b16 %v319
      %v895 = vunpack.c.l.b16 %v320
      %v896 = vunpack.c.l.b16 %v321
      %v897 = vunpack.c.l.b16 %v322
      %v898 = vunpack.c.l.b16 %v323
      %v899 = vunpack.c.l.b16 %v324
      %v900 = vunpack.c.l.b16 %v325
      %v901 = vunpack.c.l.b16 %v326
      %v902 = vunpack.c.l.b16 %v327
      %v903 = vunpack.c.l.b16 %v328
      %v904 = vunpack.c.l.b16 %v329
      %v905 = vunpack.c.l.b16 %v330
      %v906 = vunpack.c.l.b16 %v331
      %v907 = vunpack.c.l.b16 %v332
      %v908 = vunpack.c.l.b16 %v333
      %v909 = vunpack.c.l.b16 %v334
      %v910 = vunpack.c.l.b16 %v335
      %v911 = vunpack.c.l.b16 %v336
      %v912 = vunpack.c.l.b16 %v337
      %v913 = vunpack.c.l.b16 %v338
      %v914 = vunpack.c.l.b16 %v339
      %v915 = vunpack.c.l.b16 %v340
      %v916 = vunpack.c.l.b16 %v341
      %v917 = vunpack.c.l.b16 %v342
      %v918 = vunpack.c.l.b16 %v343
      %v919 = vunpack.c.l.b16 %v344
      %v920 = vunpack.c.l.b16 %v345
      %v921 = vunpack.c.l.b16 %v346
      %v922 = vunpack.c.l.b16 %v347
      %v923 = vunpack.c.l.b16 %v348
      %v924 = vunpack.c.l.b16 %v349
      %v925 = vunpack.c.l.b16 %v350
      %v926 = vunpack.c.l.b16 %v351
      %v927 = vunpack.c.l.b16 %v352
      %v928 = vunpack.c.l.b16 %v353
      %v929 = vunpack.c.l.b16 %v354
      %v930 = vunpack.c.l.b16 %v355
      %v931 = vunpack.c.l.b16 %v356
      %v932 = vunpack.c.l.b16 %v357
      %v933 = vunpack.c.l.b16 %v358
      %v934 = vunpack.c.l.b16 %v359
      %v935 = vunpack.c.l.b16 %v360
      %v936 = vunpack.c.l.b16 %v361
      %v937 = vunpack.c.l.b16 %v362
      %v938 = vunpack.c.l.b16 %v363
      %v939 = vunpack.c.l.b16 %v364
      %v940 = vunpack.c.l.b16 %v365
      %v941 = vunpack.c.l.b16 %v366
      %v942 = vunpack.c.l.b16 %v367
      %v943 = vunpack.c.l.b16 %v368
      %v944 = vunpack.c.l.b16 %v369
      %v945 = vunpack.c.l.b16 %v370
      %v946 = vunpack.c.l.b16 %v371
      %v947 = vunpack.c.l.b16 %v372
      %v948 = vunpack.c.l.b16 %v373
      %v949 = vunpack.c.l.b16 %v374
      %v950 = vunpack.c.l.b16 %v375
      %v951 = vunpack.c.l.b16 %v376
      %v952 = vunpack.c.l.b16 %v377
      %v953 = vunpack.c.l.b16 %v378
      %v954 = vunpack.c.l.b16 %v379
      %v955 = vunpack.c.l.b16 %v380
      %v956 = vunpack.c.l.b16 %v381
      %v957 = vunpack.c.l.b16 %v382
      %v958 = vunpack.c.l.b16 %v383
      %v959 = vunpack.c.l.b16 %v384
      %v960 = vunpack.c.l.b16 %v385
      %v961 = vunpack.c.l.b16 %v386
      %v962 = vunpack.c.l.b16 %v387
      %v963 = vunpack.c.l.b16 %v388
      %v964 = vunpack.c.l.b16 %v389
      %v965 = vunpack.c.l.b16 %v390
      %v966 = vunpack.c.l.b16 %v391
      %v967 = vunpack.c.l.b16 %v392
      %v968 = vunpack.c.l.b16 %v393
      %v969 = vunpack.c.l.b16 %v394
      %v970 = vunpack.c.l.b16 %v395
      %v971 = vunpack.c.l.b16 %v396
      %v972 = vunpack.c.l.b16 %v397
      %v973 = vunpack.c.l.b16 %v398
      %v974 = vunpack.c.l.b16 %v399
      %v975 = vunpack.c.l.b16 %v400
      %v976 = vunpack.c.l.b16 %v401
      %v977 = vunpack.c.l.b16 %v402
      %v978 = vunpack.c.l.b16 %v403
      %v979 = vunpack.c.l.b16 %v404
      %v980 = vunpack.c.l.b16 %v405
      %v981 = vunpack.c.l.b16 %v406
      %v982 = vunpack.c.l.b16 %v407
      %v983 = vunpack.c.l.b16 %v408
      %v984 = vunpack.c.l.b16 %v409
      %v985 = vunpack.c.l.b16 %v410
      %v986 = vunpack.c.l.b16 %v411
      %v987 = vunpack.c.l.b16 %v412
      %v988 = vunpack.c.l.b16 %v413
      %v989 = vunpack.c.l.b16 %v414
      %v990 = vunpack.c.l.b16 %v415
      %v991 = vunpack.c.l.b16 %v416
      %v992 = vunpack.c.l.b16 %v417
      %v993 = vunpack.c.l.b16 %v418
      %v994 = vunpack.c.l.b16 %v419
      %v995 = vunpack.c.l.b16 %v420
      %v996 = vunpack.c.l.b16 %v421
      %v997 = vunpack.c.l.b16 %v422
      %v998 = vunpack.c.l.b16 %v423
      %v999 = vunpack.c.l.b16 %v424
      %v1000 = vunpack.c.l.b16 %v425
      %v1001 = vunpack.c.l.b16 %v426
      %v1002 = vunpack.c.l.b16 %v427
      %v1003 = vunpack.c.l.b16 %v428
      %v1004 = vunpack.c.l.b16 %v429
      %v1005 = vunpack.c.l.b16 %v430
      %v1006 = vunpack.c.l.b16 %v431
      %v1007 = vunpack.c.l.b16 %v432
      %v1008 = vunpack.c.l.b16 %v433
      %v1009 = vunpack.c.l.b16 %v434
      %v1010 = vunpack.c.l.b16 %v435
      %v1011 = vunpack.c.l.b16 %v436
      %v1012 = vunpack.c.l.b16 %v437
      %v1013 = vunpack.c.l.b16 %v438
      %v1014 = vunpack.c.l.b16 %v439
      %v1015 = vunpack.c.l.b16 %v440
      %v1016 = vunpack.c.l.b16 %v441
      %v1017 = vunpack.c.l.b16 %v442
      %v1018 = vunpack.c.l.b16 %v443
      %v1019 = vunpack.c.l.b16 %v444
      %v1020 = vunpack.c.l.b16 %v445
      %v1021 = vunpack.c.l.b16 %v446
      %v1022 = vunpack.c.l.b16 %v447
      %v1023 = vunpack.c.l.b16 %v448
      %v1024 = vunpack.c.l.b16 %v449
      %v1025 = vunpack.c.l.b16 %v450
      %v1026 = vunpack.c.l.b16 %v451
      %v1027 = vunpack.c.l.b16 %v452
      %v1028 = vunpack.c.l.b16 %v453
      %v1029 = vpack.c.b16 %v774, %v773
      %v1030 = vpack.c.b16 %v776, %v775
      %v1031 = vpack.c.b16 %v778, %v777
      %v1032 = vpack.c.b16 %v780, %v779
      %v1033 = vpack.c.b16 %v782, %v781
      %v1034 = vpack.c.b16 %v784, %v783
      %v1035 = vpack.c.b16 %v786, %v785
      %v1036 = vpack.c.b16 %v788, %v787
      %v1037 = vpack.c.b16 %v790, %v789
      %v1038 = vpack.c.b16 %v792, %v791
      %v1039 = vpack.c.b16 %v794, %v793
      %v1040 = vpack.c.b16 %v796, %v795
      %v1041 = vpack.c.b16 %v798, %v797
      %v1042 = vpack.c.b16 %v800, %v799
      %v1043 = vpack.c.b16 %v802, %v801
      %v1044 = vpack.c.b16 %v804, %v803
      %v1045 = vpack.c.b16 %v806, %v805
      %v1046 = vpack.c.b16 %v808, %v807
      %v1047 = vpack.c.b16 %v810, %v809
      %v1048 = vpack.c.b16 %v812, %v811
      %v1049 = vpack.c.b16 %v814, %v813
      %v1050 = vpack.c.b16 %v816, %v815
      %v1051 = vpack.c.b16 %v818, %v817
      %v1052 = vpack.c.b16 %v820, %v819
      %v1053 = vpack.c.b16 %v822, %v821
      %v1054 = vpack.c.b16 %v824, %v823
      %v1055 = vpack.c.b16 %v826, %v825
      %v1056 = vpack.c.b16 %v828, %v827
      %v1057 = vpack.c.b16 %v830, %v829
      %v1058 = vpack.c.b16 %v832, %v831
      %v1059 = vpack.c.b16 %v834, %v833
      %v1060 = vpack.c.b16 %v836, %v835
      %v1061 = vpack.c.b16 %v838, %v837
      %v1062 = vpack.c.b16 %v840, %v839
      %v1063 = vpack.c.b16 %v842, %v841
      %v1064 = vpack.c.b16 %v844, %v843
      %v1065 = vpack.c.b16 %v846, %v845
      %v1066 = vpack.c.b16 %v848, %v847
      %v1067 = vpack.c.b16 %v850, %v849
      %v1068 = vpack.c.b16 %v852, %v851
      %v1069 = vpack.c.b16 %v854, %v853
      %v1070 = vpack.c.b16 %v856, %v855
      %v1071 = vpack.c.b16 %v858, %v857
      %v1072 = vpack.c.b16 %v860, %v859
      %v1073 = vpack.c.b16 %v862, %v861
      %v1074 = vpack.c.b16 %v864, %v863
      %v1075 = vpack.c.b16 %v866, %v865
      %v1076 = vpack.c.b16 %v868, %v867
      %v1077 = vpack.c.b16 %v870, %v869
      %v1078 = vpack.c.b16 %v872, %v871
      %v1079 = vpack.c.b16 %v874, %v873
      %v1080 = vpack.c.b16 %v876, %v875
      %v1081 = vpack.c.b16 %v878, %v877
      %v1082 = vpack.c.b16 %v880, %v879
      %v1083 = vpack.c.b16 %v882, %v881
      %v1084 = vpack.c.b16 %v884, %v883
      %v1085 = vpack.c.b16 %v886, %v885
      %v1086 = vpack.c.b16 %v888, %v887
      %v1087 = vpack.c.b16 %v890, %v889
      %v1088 = vpack.c.b16 %v892, %v891
      %v1089 = vpack.c.b16 %v894, %v893
      %v1090 = vpack.c.b16 %v896, %v895
      %v1091 = vpack.c.b16 %v898, %v897
      %v1092 = vpack.c.b16 %v900, %v899
      %v1093 = vpack.c.b16 %v902, %v901
      %v1094 = vpack.c.b16 %v904, %v903
      %v1095 = vpack.c.b16 %v906, %v905
      %v1096 = vpack.c.b16 %v908, %v907
      %v1097 = vpack.c.b16 %v910, %v909
      %v1098 = vpack.c.b16 %v912, %v911
      %v1099 = vpack.c.b16 %v914, %v913
      %v1100 = vpack.c.b16 %v916, %v915
      %v1101 = vpack.c.b16 %v918, %v917
      %v1102 = vpack.c.b16 %v920, %v919
      %v1103 = vpack.c.b16 %v922, %v921
      %v1104 = vpack.c.b16 %v924, %v923
      %v1105 = vpack.c.b16 %v926, %v925
      %v1106 = vpack.c.b16 %v928, %v927
      %v1107 = vpack.c.b16 %v930, %v929
      %v1108 = vpack.c.b16 %v932, %v931
      %v1109 = vpack.c.b16 %v934, %v933
      %v1110 = vpack.c.b16 %v936, %v935
      %v1111 = vpack.c.b16 %v938, %v937
      %v1112 = vpack.c.b16 %v940, %v939
      %v1113 = vpack.c.b16 %v942, %v941
      %v1114 = vpack.c.b16 %v944, %v943
      %v1115 = vpack.c.b16 %v946, %v945
      %v1116 = vpack.c.b16 %v948, %v947
      %v1117 = vpack.c.b16 %v950, %v949
      %v1118 = vpack.c.b16 %v952, %v951
      %v1119 = vpack.c.b16 %v954, %v953
      %v1120 = vpack.c.b16 %v956, %v955
      %v1121 = vpack.c.b16 %v958, %v957
      %v1122 = vpack.c.b16 %v960, %v959
      %v1123 = vpack.c.b16 %v962, %v961
      %v1124 = vpack.c.b16 %v964, %v963
      %v1125 = vpack.c.b16 %v966, %v965
      %v1126 = vpack.c.b16 %v968, %v967
      %v1127 = vpack.c.b16 %v970, %v969
      %v1128 = vpack.c.b16 %v972, %v971
      %v1129 = vpack.c.b16 %v974, %v973
      %v1130 = vpack.c.b16 %v976, %v975
      %v1131 = vpack.c.b16 %v978, %v977
      %v1132 = vpack.c.b16 %v980, %v979
      %v1133 = vpack.c.b16 %v982, %v981
      %v1134 = vpack.c.b16 %v984, %v983
      %v1135 = vpack.c.b16 %v986, %v985
      %v1136 = vpack.c.b16 %v988, %v987
      %v1137 = vpack.c.b16 %v990, %v989
      %v1138 = vpack.c.b16 %v992, %v991
      %v1139 = vpack.c.b16 %v994, %v993
      %v1140 = vpack.c.b16 %v996, %v995
      %v1141 = vpack.c.b16 %v998, %v997
      %v1142 = vpack.c.b16 %v1000, %v999
      %v1143 = vpack.c.b16 %v1002, %v1001
      %v1144 = vpack.c.b16 %v1004, %v1003
      %v1145 = vpack.c.b16 %v1006, %v1005
      %v1146 = vpack.c.b16 %v1008, %v1007
      %v1147 = vpack.c.b16 %v1010, %v1009
      %v1148 = vpack.c.b16 %v1012, %v1011
      %v1149 = vpack.c.b16 %v1014, %v1013
      %v1150 = vpack.c.b16 %v1016, %v1015
      %v1151 = vpack.c.b16 %v1018, %v1017
      %v1152 = vpack.c.b16 %v1020, %v1019
      %v1153 = vpack.c.b16 %v1022, %v1021
      %v1154 = vpack.c.b16 %v1024, %v1023
      %v1155 = vpack.c.b16 %v1026, %v1025
      %v1156 = vpack.c.b16 %v1028, %v1027
      %1285 = vmatprep.subr.bf16.mxu0 0
      %1286 = vmatpush1.bf16.msra.mxu0 %v1029
      %1287 = vmatprep.subr.bf16.mxu0 0
      %1288 = vmatpush1.bf16.msra.mxu0 %v1030
      %1289 = vmatprep.subr.bf16.mxu0 0
      %1290 = vmatpush1.bf16.msra.mxu0 %v1031
      %1291 = vmatprep.subr.bf16.mxu0 0
      %1292 = vmatpush1.bf16.msra.mxu0 %v1032
      %1293 = vmatprep.subr.bf16.mxu0 0
      %1294 = vmatpush1.bf16.msra.mxu0 %v1033
      %1295 = vmatprep.subr.bf16.mxu0 0
      %1296 = vmatpush1.bf16.msra.mxu0 %v1034
      %1297 = vmatprep.subr.bf16.mxu0 0
      %1298 = vmatpush1.bf16.msra.mxu0 %v1035
      %1299 = vmatprep.subr.bf16.mxu0 0
      %1300 = vmatpush1.bf16.msra.mxu0 %v1036
      %1301 = vmatprep.subr.bf16.mxu0 0
      %1302 = vmatpush1.bf16.msra.mxu0 %v1037
      %1303 = vmatprep.subr.bf16.mxu0 0
      %1304 = vmatpush1.bf16.msra.mxu0 %v1038
      %1305 = vmatprep.subr.bf16.mxu0 0
      %1306 = vmatpush1.bf16.msra.mxu0 %v1039
      %1307 = vmatprep.subr.bf16.mxu0 0
      %1308 = vmatpush1.bf16.msra.mxu0 %v1040
      %1309 = vmatprep.subr.bf16.mxu0 0
      %1310 = vmatpush1.bf16.msra.mxu0 %v1041
      %1311 = vmatprep.subr.bf16.mxu0 0
      %1312 = vmatpush1.bf16.msra.mxu0 %v1042
      %1313 = vmatprep.subr.bf16.mxu0 0
      %1314 = vmatpush1.bf16.msra.mxu0 %v1043
      %1315 = vmatprep.subr.bf16.mxu0 0
      %1316 = vmatpush1.bf16.msra.mxu0 %v1044
      %1317 = vmatprep.mubr.bf16.mxu0 %v486
      %1318 = vmatmul.mubr.bf16.gmra.mrb[0].mxu0 %v485
      %v1319 = vpop.f32.mrb[0].mxu0
      %v1320 = vadd.f32 %v459, %v1319
      %v1321 = vpop.f32.mrb[0].mxu0
      %v1322 = vpop.f32.mrb[0].mxu0
      %v1323 = vpop.f32.mrb[0].mxu0
      %1324 = vdwg.mxu0
      %1325 = vmatprep.subr.bf16.mxu0 0
      %1326 = vmatpush1.bf16.msra.mxu0 %v1045
      %1327 = vmatprep.subr.bf16.mxu0 0
      %1328 = vmatpush1.bf16.msra.mxu0 %v1046
      %1329 = vmatprep.subr.bf16.mxu0 0
      %1330 = vmatpush1.bf16.msra.mxu0 %v1047
      %1331 = vmatprep.subr.bf16.mxu0 0
      %1332 = vmatpush1.bf16.msra.mxu0 %v1048
      %1333 = vmatprep.subr.bf16.mxu0 0
      %1334 = vmatpush1.bf16.msra.mxu0 %v1049
      %1335 = vmatprep.subr.bf16.mxu0 0
      %1336 = vmatpush1.bf16.msra.mxu0 %v1050
      %1337 = vmatprep.subr.bf16.mxu0 0
      %1338 = vmatpush1.bf16.msra.mxu0 %v1051
      %1339 = vmatprep.subr.bf16.mxu0 0
      %1340 = vmatpush1.bf16.msra.mxu0 %v1052
      %1341 = vmatprep.subr.bf16.mxu0 0
      %1342 = vmatpush1.bf16.msra.mxu0 %v1053
      %1343 = vmatprep.subr.bf16.mxu0 0
      %1344 = vmatpush1.bf16.msra.mxu0 %v1054
      %1345 = vmatprep.subr.bf16.mxu0 0
      %1346 = vmatpush1.bf16.msra.mxu0 %v1055
      %1347 = vmatprep.subr.bf16.mxu0 0
      %1348 = vmatpush1.bf16.msra.mxu0 %v1056
      %1349 = vmatprep.subr.bf16.mxu0 0
      %1350 = vmatpush1.bf16.msra.mxu0 %v1057
      %1351 = vmatprep.subr.bf16.mxu0 0
      %1352 = vmatpush1.bf16.msra.mxu0 %v1058
      %1353 = vmatprep.subr.bf16.mxu0 0
      %1354 = vmatpush1.bf16.msra.mxu0 %v1059
      %1355 = vmatprep.subr.bf16.mxu0 0
      %1356 = vmatpush1.bf16.msra.mxu0 %v1060
      %1357 = vmatprep.mubr.bf16.mxu0 %v488
      %1358 = vmatmul.mubr.bf16.gmra.mrb[0].mxu0 %v487
      %v1359 = vpop.f32.mrb[0].mxu0
      %v1360 = vadd.f32 %v1320, %v1359
      %v1361 = vpop.f32.mrb[0].mxu0
      %v1362 = vpop.f32.mrb[0].mxu0
      %v1363 = vpop.f32.mrb[0].mxu0
      %1364 = vdwg.mxu0
      %1365 = vmatprep.subr.bf16.mxu0 0
      %1366 = vmatpush1.bf16.msra.mxu0 %v1061
      %1367 = vmatprep.subr.bf16.mxu0 0
      %1368 = vmatpush1.bf16.msra.mxu0 %v1062
      %1369 = vmatprep.subr.bf16.mxu0 0
      %1370 = vmatpush1.bf16.msra.mxu0 %v1063
      %1371 = vmatprep.subr.bf16.mxu0 0
      %1372 = vmatpush1.bf16.msra.mxu0 %v1064
      %1373 = vmatprep.subr.bf16.mxu0 0
      %1374 = vmatpush1.bf16.msra.mxu0 %v1065
      %1375 = vmatprep.subr.bf16.mxu0 0
      %1376 = vmatpush1.bf16.msra.mxu0 %v1066
      %1377 = vmatprep.subr.bf16.mxu0 0
      %1378 = vmatpush1.bf16.msra.mxu0 %v1067
      %1379 = vmatprep.subr.bf16.mxu0 0
      %1380 = vmatpush1.bf16.msra.mxu0 %v1068
      %1381 = vmatprep.subr.bf16.mxu0 0
      %1382 = vmatpush1.bf16.msra.mxu0 %v1069
      %1383 = vmatprep.subr.bf16.mxu0 0
      %1384 = vmatpush1.bf16.msra.mxu0 %v1070
      %1385 = vmatprep.subr.bf16.mxu0 0
      %1386 = vmatpush1.bf16.msra.mxu0 %v1071
      %1387 = vmatprep.subr.bf16.mxu0 0
      %1388 = vmatpush1.bf16.msra.mxu0 %v1072
      %1389 = vmatprep.subr.bf16.mxu0 0
      %1390 = vmatpush1.bf16.msra.mxu0 %v1073
      %1391 = vmatprep.subr.bf16.mxu0 0
      %1392 = vmatpush1.bf16.msra.mxu0 %v1074
      %1393 = vmatprep.subr.bf16.mxu0 0
      %1394 = vmatpush1.bf16.msra.mxu0 %v1075
      %1395 = vmatprep.subr.bf16.mxu0 0
      %1396 = vmatpush1.bf16.msra.mxu0 %v1076
      %1397 = vmatprep.mubr.bf16.mxu0 %v490
      %1398 = vmatmul.mubr.bf16.gmra.mrb[0].mxu0 %v489
      %v1399 = vpop.f32.mrb[0].mxu0
      %v1400 = vadd.f32 %v1360, %v1399
      %v1401 = vpop.f32.mrb[0].mxu0
      %v1402 = vpop.f32.mrb[0].mxu0
      %v1403 = vpop.f32.mrb[0].mxu0
      %1404 = vdwg.mxu0
      %1405 = vmatprep.subr.bf16.mxu0 0
      %1406 = vmatpush1.bf16.msra.mxu0 %v1077
      %1407 = vmatprep.subr.bf16.mxu0 0
      %1408 = vmatpush1.bf16.msra.mxu0 %v1078
      %1409 = vmatprep.subr.bf16.mxu0 0
      %1410 = vmatpush1.bf16.msra.mxu0 %v1079
      %1411 = vmatprep.subr.bf16.mxu0 0
      %1412 = vmatpush1.bf16.msra.mxu0 %v1080
      %1413 = vmatprep.subr.bf16.mxu0 0
      %1414 = vmatpush1.bf16.msra.mxu0 %v1081
      %1415 = vmatprep.subr.bf16.mxu0 0
      %1416 = vmatpush1.bf16.msra.mxu0 %v1082
      %1417 = vmatprep.subr.bf16.mxu0 0
      %1418 = vmatpush1.bf16.msra.mxu0 %v1083
      %1419 = vmatprep.subr.bf16.mxu0 0
      %1420 = vmatpush1.bf16.msra.mxu0 %v1084
      %1421 = vmatprep.subr.bf16.mxu0 0
      %1422 = vmatpush1.bf16.msra.mxu0 %v1085
      %1423 = vmatprep.subr.bf16.mxu0 0
      %1424 = vmatpush1.bf16.msra.mxu0 %v1086
      %1425 = vmatprep.subr.bf16.mxu0 0
      %1426 = vmatpush1.bf16.msra.mxu0 %v1087
      %1427 = vmatprep.subr.bf16.mxu0 0
      %1428 = vmatpush1.bf16.msra.mxu0 %v1088
      %1429 = vmatprep.subr.bf16.mxu0 0
      %1430 = vmatpush1.bf16.msra.mxu0 %v1089
      %1431 = vmatprep.subr.bf16.mxu0 0
      %1432 = vmatpush1.bf16.msra.mxu0 %v1090
      %1433 = vmatprep.subr.bf16.mxu0 0
      %1434 = vmatpush1.bf16.msra.mxu0 %v1091
      %1435 = vmatprep.subr.bf16.mxu0 0
      %1436 = vmatpush1.bf16.msra.mxu0 %v1092
      %1437 = vmatprep.mubr.bf16.mxu0 %v492
      %1438 = vmatmul.mubr.bf16.gmra.mrb[0].mxu0 %v491
      %v1439 = vpop.f32.mrb[0].mxu0
      %v1440 = vadd.f32 %v1400, %v1439
      %v1441 = vpop.f32.mrb[0].mxu0
      %v1442 = vpop.f32.mrb[0].mxu0
      %v1443 = vpop.f32.mrb[0].mxu0
      %1444 = vdwg.mxu0
      %1445 = vmatprep.subr.bf16.mxu0 0
      %1446 = vmatpush1.bf16.msra.mxu0 %v1093
      %1447 = vmatprep.subr.bf16.mxu0 0
      %1448 = vmatpush1.bf16.msra.mxu0 %v1094
      %1449 = vmatprep.subr.bf16.mxu0 0
      %1450 = vmatpush1.bf16.msra.mxu0 %v1095
      %1451 = vmatprep.subr.bf16.mxu0 0
      %1452 = vmatpush1.bf16.msra.mxu0 %v1096
      %1453 = vmatprep.subr.bf16.mxu0 0
      %1454 = vmatpush1.bf16.msra.mxu0 %v1097
      %1455 = vmatprep.subr.bf16.mxu0 0
      %1456 = vmatpush1.bf16.msra.mxu0 %v1098
      %1457 = vmatprep.subr.bf16.mxu0 0
      %1458 = vmatpush1.bf16.msra.mxu0 %v1099
      %1459 = vmatprep.subr.bf16.mxu0 0
      %1460 = vmatpush1.bf16.msra.mxu0 %v1100
      %1461 = vmatprep.subr.bf16.mxu0 0
      %1462 = vmatpush1.bf16.msra.mxu0 %v1101
      %1463 = vmatprep.subr.bf16.mxu0 0
      %1464 = vmatpush1.bf16.msra.mxu0 %v1102
      %1465 = vmatprep.subr.bf16.mxu0 0
      %1466 = vmatpush1.bf16.msra.mxu0 %v1103
      %1467 = vmatprep.subr.bf16.mxu0 0
      %1468 = vmatpush1.bf16.msra.mxu0 %v1104
      %1469 = vmatprep.subr.bf16.mxu0 0
      %1470 = vmatpush1.bf16.msra.mxu0 %v1105
      %1471 = vmatprep.subr.bf16.mxu0 0
      %1472 = vmatpush1.bf16.msra.mxu0 %v1106
      %1473 = vmatprep.subr.bf16.mxu0 0
      %1474 = vmatpush1.bf16.msra.mxu0 %v1107
      %1475 = vmatprep.subr.bf16.mxu0 0
      %1476 = vmatpush1.bf16.msra.mxu0 %v1108
      %1477 = vmatprep.mubr.bf16.mxu0 %v494
      %1478 = vmatmul.mubr.bf16.gmra.mrb[0].mxu0 %v493
      %v1479 = vpop.f32.mrb[0].mxu0
      %v1480 = vadd.f32 %v1440, %v1479
      %v1481 = vpop.f32.mrb[0].mxu0
      %v1482 = vpop.f32.mrb[0].mxu0
      %v1483 = vpop.f32.mrb[0].mxu0
      %1484 = vdwg.mxu0
      %1485 = vmatprep.subr.bf16.mxu0 0
      %1486 = vmatpush1.bf16.msra.mxu0 %v1109
      %1487 = vmatprep.subr.bf16.mxu0 0
      %1488 = vmatpush1.bf16.msra.mxu0 %v1110
      %1489 = vmatprep.subr.bf16.mxu0 0
      %1490 = vmatpush1.bf16.msra.mxu0 %v1111
      %1491 = vmatprep.subr.bf16.mxu0 0
      %1492 = vmatpush1.bf16.msra.mxu0 %v1112
      %1493 = vmatprep.subr.bf16.mxu0 0
      %1494 = vmatpush1.bf16.msra.mxu0 %v1113
      %1495 = vmatprep.subr.bf16.mxu0 0
      %1496 = vmatpush1.bf16.msra.mxu0 %v1114
      %1497 = vmatprep.subr.bf16.mxu0 0
      %1498 = vmatpush1.bf16.msra.mxu0 %v1115
      %1499 = vmatprep.subr.bf16.mxu0 0
      %1500 = vmatpush1.bf16.msra.mxu0 %v1116
      %1501 = vmatprep.subr.bf16.mxu0 0
      %1502 = vmatpush1.bf16.msra.mxu0 %v1117
      %1503 = vmatprep.subr.bf16.mxu0 0
      %1504 = vmatpush1.bf16.msra.mxu0 %v1118
      %1505 = vmatprep.subr.bf16.mxu0 0
      %1506 = vmatpush1.bf16.msra.mxu0 %v1119
      %1507 = vmatprep.subr.bf16.mxu0 0
      %1508 = vmatpush1.bf16.msra.mxu0 %v1120
      %1509 = vmatprep.subr.bf16.mxu0 0
      %1510 = vmatpush1.bf16.msra.mxu0 %v1121
      %1511 = vmatprep.subr.bf16.mxu0 0
      %1512 = vmatpush1.bf16.msra.mxu0 %v1122
      %1513 = vmatprep.subr.bf16.mxu0 0
      %1514 = vmatpush1.bf16.msra.mxu0 %v1123
      %1515 = vmatprep.subr.bf16.mxu0 0
      %1516 = vmatpush1.bf16.msra.mxu0 %v1124
      %1517 = vmatprep.mubr.bf16.mxu0 %v496
      %1518 = vmatmul.mubr.bf16.gmra.mrb[0].mxu0 %v495
      %v1519 = vpop.f32.mrb[0].mxu0
      %v1520 = vadd.f32 %v1480, %v1519
      %v1521 = vpop.f32.mrb[0].mxu0
      %v1522 = vpop.f32.mrb[0].mxu0
      %v1523 = vpop.f32.mrb[0].mxu0
      %1524 = vdwg.mxu0
      %1525 = vmatprep.subr.bf16.mxu0 0
      %1526 = vmatpush1.bf16.msra.mxu0 %v1125
      %1527 = vmatprep.subr.bf16.mxu0 0
      %1528 = vmatpush1.bf16.msra.mxu0 %v1126
      %1529 = vmatprep.subr.bf16.mxu0 0
      %1530 = vmatpush1.bf16.msra.mxu0 %v1127
      %1531 = vmatprep.subr.bf16.mxu0 0
      %1532 = vmatpush1.bf16.msra.mxu0 %v1128
      %1533 = vmatprep.subr.bf16.mxu0 0
      %1534 = vmatpush1.bf16.msra.mxu0 %v1129
      %1535 = vmatprep.subr.bf16.mxu0 0
      %1536 = vmatpush1.bf16.msra.mxu0 %v1130
      %1537 = vmatprep.subr.bf16.mxu0 0
      %1538 = vmatpush1.bf16.msra.mxu0 %v1131
      %1539 = vmatprep.subr.bf16.mxu0 0
      %1540 = vmatpush1.bf16.msra.mxu0 %v1132
      %1541 = vmatprep.subr.bf16.mxu0 0
      %1542 = vmatpush1.bf16.msra.mxu0 %v1133
      %1543 = vmatprep.subr.bf16.mxu0 0
      %1544 = vmatpush1.bf16.msra.mxu0 %v1134
      %1545 = vmatprep.subr.bf16.mxu0 0
      %1546 = vmatpush1.bf16.msra.mxu0 %v1135
      %1547 = vmatprep.subr.bf16.mxu0 0
      %1548 = vmatpush1.bf16.msra.mxu0 %v1136
      %1549 = vmatprep.subr.bf16.mxu0 0
      %1550 = vmatpush1.bf16.msra.mxu0 %v1137
      %1551 = vmatprep.subr.bf16.mxu0 0
      %1552 = vmatpush1.bf16.msra.mxu0 %v1138
      %1553 = vmatprep.subr.bf16.mxu0 0
      %1554 = vmatpush1.bf16.msra.mxu0 %v1139
      %1555 = vmatprep.subr.bf16.mxu0 0
      %1556 = vmatpush1.bf16.msra.mxu0 %v1140
      %1557 = vmatprep.mubr.bf16.mxu0 %v498
      %1558 = vmatmul.mubr.bf16.gmra.mrb[0].mxu0 %v497
      %v1559 = vpop.f32.mrb[0].mxu0
      %v1560 = vadd.f32 %v1520, %v1559
      %v1561 = vpop.f32.mrb[0].mxu0
      %v1562 = vpop.f32.mrb[0].mxu0
      %v1563 = vpop.f32.mrb[0].mxu0
      %1564 = vdwg.mxu0
      %1565 = vmatprep.subr.bf16.mxu0 0
      %1566 = vmatpush1.bf16.msra.mxu0 %v1141
      %1567 = vmatprep.subr.bf16.mxu0 0
      %1568 = vmatpush1.bf16.msra.mxu0 %v1142
      %1569 = vmatprep.subr.bf16.mxu0 0
      %1570 = vmatpush1.bf16.msra.mxu0 %v1143
      %1571 = vmatprep.subr.bf16.mxu0 0
      %1572 = vmatpush1.bf16.msra.mxu0 %v1144
      %1573 = vmatprep.subr.bf16.mxu0 0
      %1574 = vmatpush1.bf16.msra.mxu0 %v1145
      %1575 = vmatprep.subr.bf16.mxu0 0
      %1576 = vmatpush1.bf16.msra.mxu0 %v1146
      %1577 = vmatprep.subr.bf16.mxu0 0
      %1578 = vmatpush1.bf16.msra.mxu0 %v1147
      %1579 = vmatprep.subr.bf16.mxu0 0
      %1580 = vmatpush1.bf16.msra.mxu0 %v1148
      %1581 = vmatprep.subr.bf16.mxu0 0
      %1582 = vmatpush1.bf16.msra.mxu0 %v1149
      %1583 = vmatprep.subr.bf16.mxu0 0
      %1584 = vmatpush1.bf16.msra.mxu0 %v1150
      %1585 = vmatprep.subr.bf16.mxu0 0
      %1586 = vmatpush1.bf16.msra.mxu0 %v1151
      %1587 = vmatprep.subr.bf16.mxu0 0
      %1588 = vmatpush1.bf16.msra.mxu0 %v1152
      %1589 = vmatprep.subr.bf16.mxu0 0
      %1590 = vmatpush1.bf16.msra.mxu0 %v1153
      %1591 = vmatprep.subr.bf16.mxu0 0
      %1592 = vmatpush1.bf16.msra.mxu0 %v1154
      %1593 = vmatprep.subr.bf16.mxu0 0
      %1594 = vmatpush1.bf16.msra.mxu0 %v1155
      %1595 = vmatprep.subr.bf16.mxu0 0
      %1596 = vmatpush1.bf16.msra.mxu0 %v1156
      %1597 = vmatprep.mubr.bf16.mxu0 %v500
      %1598 = vmatmul.mubr.bf16.gmra.mrb[0].mxu0 %v499
      %v1599 = vpop.f32.mrb[0].mxu0
      %v1600 = vadd.f32 %v1560, %v1599
      %v1601 = vpop.f32.mrb[0].mxu0
      %v1602 = vpop.f32.mrb[0].mxu0
      %v1603 = vpop.f32.mrb[0].mxu0
      %1604 = vdwg.mxu0
      %v1605 = vxor.u32 %v1600, 2147483648
      %v1606 = vmul.f32 %v1605, 1.442695
      %v1607 = vpow.pop %v1606
      %v1608 = vadd.f32 %v1607, 1.0
      %v1609 = vrcp.pop %v1608
      %v1610 = vmul.f32 1.0, %v1609
      %v1611 = vlaneseq
      %v1612 = vand.u32 %v1611, 127
      %v1613 = vlaneseq
      %v1614 = vshrl.u32 %v1613, 7
      %s1615 = smul.u32 %s19, 8
      %v1616 = vstv %s1615
      %v1617 = vadd.s32 %v1614, %v1616
      %vm1618 = vcmp.eq.s32.totalorder %v1612, 0
      %vm1619 = vcmp.lt.s32.totalorder %v1617, 4
      %vm1620 = vmand %vm1618, %vm1619
      %v1621 = vsel %vm1620, %v1610, 0.0
      %1622 = vadd.xlane.f32.xlu0 %v1621
      %v1623 = vpop.xlane.xlu0 %1622
      %v1624 = vrot.slane %v1623, 4
      %v1625 = vadd.f32 %v1623, %v1624
      %v1626 = vrot.slane %v1625, 2
      %v1627 = vadd.f32 %v1625, %v1626
      %v1628 = vrot.slane %v1627, 1
      %v1629 = vadd.f32 %v1627, %v1628
      %s1630 = vtos %v1629
      %s1631 = smul.f32 %s1630, 0.25
      %v1632 = vld [vmem:[%s3] sm:$0x3]
      %v1633 = vstv %s18
      %vm1634 = vcmp.eq.s32.totalorder %v1614, %v1633
      %vm1635 = vmand %vm1634, %vm1618
      %v1636 = vstv %s1631
      %v1637 = vsel %vm1635, %v1636, 0.0
      %v1638 = vadd.f32 %v1632, %v1637
      %1639 = vst [vmem:[%s3] sm:$0x3] %v1638
      // Predicated region
      $region37: #{n_layer_discriminator.15} parent=31 // pred_check
        %p1640 = pneg %p109
      $region38: #{n_layer_discriminator.15} parent=31 // pred_check_branch
        %1642 = sbr.rel (%p1640) target = $region40
      $region39: #{n_layer_discriminator.15} parent=31 // pred_region
        _
      $region40: #{n_layer_discriminator.15} parent=31 // pred_fallthru
        _
      // Predicated region
      $region41: #{n_layer_discriminator.15} parent=31 // pred_check
        %p1643 = pneg %p109
      $region42: #{n_layer_discriminator.15} parent=31 // pred_check_branch
        %1645 = sbr.rel (%p1643) target = $region44
      $region43: #{n_layer_discriminator.15} parent=31 // pred_region
        _
      $region44: #{n_layer_discriminator.15} parent=31 // pred_fallthru
        _
    $region32: #{n_layer_discriminator.15} parent=5 // pred_fallthru
      _
    %p1646 = scmp.le.s32.totalorder 2, %s9
    // Predicated region
    $region45: #{n_layer_discriminator.15} parent=5 // pred_check
      %p1647 = pneg %p1646
    $region46: #{n_layer_discriminator.15} parent=5 // pred_check_branch
      %1649 = sbr.rel (%p1647) target = $region48
    $region47: #{n_layer_discriminator.15} parent=5 // pred_region
      %s1650 = ssub.s32 %s9, 2
    $region48: #{n_layer_discriminator.15} parent=5 // pred_fallthru
      _
  $region6: #{n_layer_discriminator.15} parent=0 // loop_footer
    %s13 = sadd.s32 1, %s9
  $region7: #{n_layer_discriminator.15} parent=0 // loop_footer_branch
    %8 = sbr.rel target = $region3
  $region8: #{n_layer_discriminator.15} parent=0 // loop_exit
    _

</llo_original>
